<compile_context>
chip_gen: v5e
topology: v5e:2x2
jax: 0.10.0
libtpu: 0.0.40
codegen_flags: <defaults>
</compile_context>

<pallas_src>
import functools

import jax
import jax.numpy as jnp
import numpy as np
from jax.experimental import pallas as pl
from jax.experimental.pallas import tpu as pltpu


def _silu(x):
    return x * jax.nn.sigmoid(x)


def _resblock_kernel(HW, Wimg, cg,
                     x_ref, emb_ref,
                     gn1_w_ref, gn1_b_ref, c1_w_ref, c1_b_ref,
                     emb_w_ref, emb_b_ref,
                     gn2_w_ref, gn2_b_ref, c2_w_ref, c2_b_ref,
                     mcg_ref, mgc_ref, masks_ref, sel_bm_ref, sel_mb_ref,
                     out_ref,
                     im2col_ref):
    f32 = jnp.float32
    x2d = x_ref[...]                         # (M, C) f32, M = B_tile * H * W
    sel_bm = sel_bm_ref[...]                 # (B, M) sample-selector one-hot
    sel_mb = sel_mb_ref[...]                 # (M, B)
    mcg = mcg_ref[...]                       # (C, G) channel -> group one-hot
    mgc = mgc_ref[...]                       # (G, C)
    cnt_inv = 1.0 / float(HW * cg)

    def group_norm(h, gamma, beta, eps=1e-5):
        # Per-sample / per-group stats as MXU matmuls (kept f32 for stability).
        sum_bc = jnp.dot(sel_bm, h, preferred_element_type=f32)          # (B, C)
        ssq_bc = jnp.dot(sel_bm, h * h, preferred_element_type=f32)      # (B, C)
        mean_bg = jnp.dot(sum_bc, mcg, preferred_element_type=f32) * cnt_inv
        msq_bg = jnp.dot(ssq_bc, mcg, preferred_element_type=f32) * cnt_inv
        var_bg = msq_bg - mean_bg * mean_bg
        inv_bg = jax.lax.rsqrt(var_bg + eps)
        mean_mc = jnp.dot(sel_mb,
                          jnp.dot(mean_bg, mgc, preferred_element_type=f32),
                          preferred_element_type=f32)                    # (M, C)
        inv_mc = jnp.dot(sel_mb,
                         jnp.dot(inv_bg, mgc, preferred_element_type=f32),
                         preferred_element_type=f32)                     # (M, C)
        return (h - mean_mc) * inv_mc * gamma + beta

    def conv3x3(h, w_ref, bias):
        # 3x3 / pad=1 conv as one fused (M, 9*Cin) @ (9*Cin, Cout) bf16 matmul.
        m, cin = h.shape
        for t in range(9):
            dy, dx = t // 3 - 1, t % 3 - 1
            off = dy * Wimg + dx
            rolled = h if off == 0 else pltpu.roll(h, shift=(-off) % m, axis=0)
            if dy == 0 and dx == 0:
                tap = rolled
            else:
                # zero padding + no cross-image leakage inside the folded batch
                tap = rolled * masks_ref[t]
            im2col_ref[:, t * cin:(t + 1) * cin] = tap.astype(jnp.bfloat16)
        return jnp.dot(im2col_ref[...], w_ref[...],
                       preferred_element_type=f32) + bias

    # in_layers: GroupNorm32 -> SiLU -> Conv2d(3x3, pad=1)
    h = group_norm(x2d, gn1_w_ref[...], gn1_b_ref[...])
    h = _silu(h)
    h = conv3x3(h, c1_w_ref, c1_b_ref[...])                              # (M, Cout)

    # emb_layers: SiLU -> Linear ; broadcast per-sample over spatial rows
    e = emb_ref[:, 0, :]                                                 # (B, E)
    eo = jnp.dot(_silu(e).astype(jnp.bfloat16), emb_w_ref[...],
                 preferred_element_type=f32) + emb_b_ref[...]            # (B, Cout)
    h = h + jnp.dot(sel_mb, eo, preferred_element_type=f32)

    # out_layers: GroupNorm32 -> SiLU -> Dropout(p=0 -> identity) -> Conv2d(3x3)
    h = group_norm(h, gn2_w_ref[...], gn2_b_ref[...])
    h = _silu(h)
    h = conv3x3(h, c2_w_ref, c2_b_ref[...])

    # skip_connection: Identity (out_channels == channels)
    out_ref[...] = (x2d + h).astype(out_ref.dtype)


def resblock_forward(x_nchw, emb, params, num_groups=32, batch_tile=None,
                     vmem_limit_bytes=48 * 1024 * 1024):
    N, C, H, W = x_nchw.shape
    E = emb.shape[1]
    Cout = params["c1_w"].shape[0]
    assert Cout == C, "kernel implements the identity-skip configuration"
    # TODO(synk): 1x1-conv skip (out_channels != channels), scale-shift-norm and
    #             up/down resampling variants are not implemented.
    assert C % num_groups == 0
    G = num_groups
    cg = C // G
    HW = H * W

    if batch_tile is None:
        # Fold batch into the matmul M dimension while keeping scratch small.
        batch_tile = 1
        for d in range(1, N + 1):
            ok = (N % d == 0
                  and (d * HW) % 8 == 0
                  and d * HW <= 4096
                  and d * HW * 9 * C * 2 <= 6 * 1024 * 1024)
            if ok:
                batch_tile = d
    B = batch_tile
    assert N % B == 0
    M = B * HW
    assert M % 8 == 0, "flattened spatial tile must be a multiple of 8 rows"
    steps = N // B

    # NHWC, then flatten batch+spatial into the matmul M dimension.
    # TODO(synk): keep activations NHWC across the model to drop these two
    #             whole-tensor HBM transposes per ResBlock.
    x2d = jnp.transpose(x_nchw, (0, 2, 3, 1)).reshape(N * HW, C).astype(jnp.float32)
    emb3 = emb.reshape(N, 1, E).astype(jnp.float32)

    # Pack conv weight (Cout, Cin, 3, 3) -> (9*Cin, Cout), tap-major, bf16.
    def pack(w):
        cout, cin = w.shape[0], w.shape[1]
        return jnp.transpose(w, (2, 3, 1, 0)).reshape(9 * cin, cout).astype(jnp.bfloat16)

    # channel<->group one-hots (GroupNorm stats on the MXU)
    ch = np.arange(C)
    mcg = jnp.asarray((ch[:, None] // cg == np.arange(G)[None, :]).astype(np.float32))
    mgc = mcg.T

    # sample-selector one-hots (per-sample stats / emb broadcast, batch folded into M)
    rows = np.arange(M)
    sel_bm = jnp.asarray((rows[None, :] // HW == np.arange(B)[:, None]).astype(np.float32))
    sel_mb = sel_bm.T

    # per-tap validity masks (zero padding + no cross-sample leakage), (9, M, 1)
    yy = (rows % HW) // W
    xx = rows % W
    masks_np = np.stack([
        (((yy + dy) >= 0) & ((yy + dy) < H) & ((xx + dx) >= 0) & ((xx + dx) < W))
        for dy in (-1, 0, 1) for dx in (-1, 0, 1)
    ]).astype(np.float32)[:, :, None]
    masks = jnp.asarray(masks_np)

    args = (
        x2d, emb3,
        params["gn1_w"].reshape(1, C).astype(jnp.float32),
        params["gn1_b"].reshape(1, C).astype(jnp.float32),
        pack(params["c1_w"]),
        params["c1_b"].reshape(1, Cout).astype(jnp.float32),
        params["emb_w"].T.astype(jnp.bfloat16),
        params["emb_b"].reshape(1, Cout).astype(jnp.float32),
        params["gn2_w"].reshape(1, Cout).astype(jnp.float32),
        params["gn2_b"].reshape(1, Cout).astype(jnp.float32),
        pack(params["c2_w"]),
        params["c2_b"].reshape(1, Cout).astype(jnp.float32),
        mcg, mgc, masks, sel_bm, sel_mb,
    )

    def const_spec(a):
        nd = a.ndim
        return pl.BlockSpec(a.shape, lambda n, _nd=nd: (0,) * _nd)

    in_specs = [
        pl.BlockSpec((M, C), lambda n: (n, 0)),        # x rows for this batch tile
        pl.BlockSpec((B, 1, E), lambda n: (n, 0, 0)),  # emb rows for this batch tile
    ] + [const_spec(a) for a in args[2:]]

    kernel = functools.partial(_resblock_kernel, HW, W, cg)

    out = pl.pallas_call(
        kernel,
        out_shape=jax.ShapeDtypeStruct((N * HW, Cout), jnp.float32),
        grid_spec=pltpu.PrefetchScalarGridSpec(
            num_scalar_prefetch=0,
            grid=(steps,),
            in_specs=in_specs,
            out_specs=pl.BlockSpec((M, Cout), lambda n: (n, 0)),
            scratch_shapes=[pltpu.VMEM((M, 9 * C), jnp.bfloat16)],  # im2col slab
        ),
        compiler_params=pltpu.CompilerParams(
            dimension_semantics=("parallel",),
            vmem_limit_bytes=vmem_limit_bytes),
    )(*args)

    return jnp.transpose(out.reshape(N, H, W, Cout), (0, 3, 1, 2))


# ------------------------- reference (pure JAX) ------------------------------
def _ref_group_norm(h, w, b, G=32, eps=1e-5):
    N, C, H, W = h.shape
    hg = h.reshape(N, G, C // G, H, W)
    m = hg.mean(axis=(2, 3, 4), keepdims=True)
    v = hg.var(axis=(2, 3, 4), keepdims=True)
    hn = ((hg - m) / jnp.sqrt(v + eps)).reshape(N, C, H, W)
    return hn * w[None, :, None, None] + b[None, :, None, None]


def _ref_conv3(h, w, b):
    y = jax.lax.conv_general_dilated(
        h, w, window_strides=(1, 1), padding=((1, 1), (1, 1)),
        dimension_numbers=("NCHW", "OIHW", "NCHW"))
    return y + b[None, :, None, None]


def resblock_reference(x, emb, p):
    silu = jax.nn.silu
    h = _ref_conv3(silu(_ref_group_norm(x, p["gn1_w"], p["gn1_b"])),
                   p["c1_w"], p["c1_b"])
    eo = jnp.dot(silu(emb), p["emb_w"].T) + p["emb_b"]
    h = h + eo[:, :, None, None]
    h = _ref_conv3(silu(_ref_group_norm(h, p["gn2_w"], p["gn2_b"])),
                   p["c2_w"], p["c2_b"])
    return x + h


# ------------------------------ parameters -----------------------------------
def init_params(key, C, E, Cout):
    ks = jax.random.split(key, 6)
    p = {}
    p["gn1_w"] = jnp.ones((C,), jnp.float32)          # GroupNorm default init
    p["gn1_b"] = jnp.zeros((C,), jnp.float32)
    p["c1_w"] = 0.1 * jax.random.normal(ks[0], (Cout, C, 3, 3), jnp.float32)
    p["c1_b"] = 0.1 * jax.random.normal(ks[1], (Cout,), jnp.float32)
    p["emb_w"] = 0.1 * jax.random.normal(ks[2], (Cout, E), jnp.float32)
    p["emb_b"] = 0.1 * jax.random.normal(ks[3], (Cout,), jnp.float32)
    p["gn2_w"] = jnp.ones((Cout,), jnp.float32)
    p["gn2_b"] = jnp.zeros((Cout,), jnp.float32)
    # NOTE: the PyTorch module zero-inits this conv via zero_module(); we use
    # small deterministic random weights so the full kernel path is exercised.
    p["c2_w"] = 0.1 * jax.random.normal(ks[4], (Cout, Cout, 3, 3), jnp.float32)
    p["c2_b"] = jnp.zeros((Cout,), jnp.float32)
    return p


if __name__ == "__main__":
    # channels must be divisible by 32 (GroupNorm32 -> 32 groups)
    N, C, H, W = 2, 32, 8, 8
    E = 16
    Cout = C  # identity skip

    key = jax.random.PRNGKey(0)
    kx, ke, kp = jax.random.split(key, 3)
    x = jax.random.normal(kx, (N, C, H, W), jnp.float32)
    emb = jax.random.normal(ke, (N, E), jnp.float32)
    params = init_params(kp, C, E, Cout)

    # The kernel feeds the MXU in bf16; quantize the matmul weights identically
    # for the reference so the comparison isolates kernel correctness (the
    # remaining delta is bf16 rounding of activations at the matmul inputs).
    qparams = dict(params)
    for k in ("c1_w", "c2_w", "emb_w"):
        qparams[k] = params[k].astype(jnp.bfloat16).astype(jnp.float32)

    out = resblock_forward(x, emb, qparams)
    out = jax.block_until_ready(out)

    ref = resblock_reference(x, emb, qparams)
    assert out.shape == ref.shape == (N, Cout, H, W)
    np.testing.assert_allclose(np.asarray(out), np.asarray(ref),
                               rtol=3e-2, atol=3e-2)
    print("KERNEL_OK")
</pallas_src>

<mosaic_0001>
module attributes {stable_mosaic.version = 11 : i64} {
  func.func @_resblock_kernel(%arg0: i32, %arg1: memref<128x32xf32, #tpu.memory_space<vmem>>, %arg2: memref<2x1x16xf32, #tpu.memory_space<vmem>>, %arg3: memref<1x32xf32, #tpu.memory_space<vmem>>, %arg4: memref<1x32xf32, #tpu.memory_space<vmem>>, %arg5: memref<288x32xbf16, #tpu.memory_space<vmem>>, %arg6: memref<1x32xf32, #tpu.memory_space<vmem>>, %arg7: memref<16x32xbf16, #tpu.memory_space<vmem>>, %arg8: memref<1x32xf32, #tpu.memory_space<vmem>>, %arg9: memref<1x32xf32, #tpu.memory_space<vmem>>, %arg10: memref<1x32xf32, #tpu.memory_space<vmem>>, %arg11: memref<288x32xbf16, #tpu.memory_space<vmem>>, %arg12: memref<1x32xf32, #tpu.memory_space<vmem>>, %arg13: memref<32x32xf32, #tpu.memory_space<vmem>>, %arg14: memref<32x32xf32, #tpu.memory_space<vmem>>, %arg15: memref<9x128x1xf32, #tpu.memory_space<vmem>>, %arg16: memref<2x128xf32, #tpu.memory_space<vmem>>, %arg17: memref<128x2xf32, #tpu.memory_space<vmem>>, %arg18: memref<128x32xf32, #tpu.memory_space<vmem>>, %arg19: memref<128x288xbf16, #tpu.memory_space<vmem>>) attributes {dimension_semantics = [#tpu.dimension_semantics<parallel>], iteration_bounds = array<i64: 1>, scalar_prefetch = 0 : i64, scratch_operands = 1 : i64, tpu.core_type = #tpu.core_type<tc>, window_params = [{transform_indices = @transform_0, window_bounds = array<i64: 128, 32>}, {transform_indices = @transform_1, window_bounds = array<i64: 2, 1, 16>}, {pipeline_mode = #tpu.pipeline_mode<synchronous>, transform_indices = @transform_2, window_bounds = array<i64: 1, 32>}, {pipeline_mode = #tpu.pipeline_mode<synchronous>, transform_indices = @transform_3, window_bounds = array<i64: 1, 32>}, {pipeline_mode = #tpu.pipeline_mode<synchronous>, transform_indices = @transform_4, window_bounds = array<i64: 288, 32>}, {pipeline_mode = #tpu.pipeline_mode<synchronous>, transform_indices = @transform_5, window_bounds = array<i64: 1, 32>}, {pipeline_mode = #tpu.pipeline_mode<synchronous>, transform_indices = @transform_6, window_bounds = array<i64: 16, 32>}, {pipeline_mode = #tpu.pipeline_mode<synchronous>, transform_indices = @transform_7, window_bounds = array<i64: 1, 32>}, {pipeline_mode = #tpu.pipeline_mode<synchronous>, transform_indices = @transform_8, window_bounds = array<i64: 1, 32>}, {pipeline_mode = #tpu.pipeline_mode<synchronous>, transform_indices = @transform_9, window_bounds = array<i64: 1, 32>}, {pipeline_mode = #tpu.pipeline_mode<synchronous>, transform_indices = @transform_10, window_bounds = array<i64: 288, 32>}, {pipeline_mode = #tpu.pipeline_mode<synchronous>, transform_indices = @transform_11, window_bounds = array<i64: 1, 32>}, {pipeline_mode = #tpu.pipeline_mode<synchronous>, transform_indices = @transform_12, window_bounds = array<i64: 32, 32>}, {pipeline_mode = #tpu.pipeline_mode<synchronous>, transform_indices = @transform_13, window_bounds = array<i64: 32, 32>}, {pipeline_mode = #tpu.pipeline_mode<synchronous>, transform_indices = @transform_14, window_bounds = array<i64: 9, 128, 1>}, {pipeline_mode = #tpu.pipeline_mode<synchronous>, transform_indices = @transform_15, window_bounds = array<i64: 2, 128>}, {pipeline_mode = #tpu.pipeline_mode<synchronous>, transform_indices = @transform_16, window_bounds = array<i64: 128, 2>}, {transform_indices = @transform_17, window_bounds = array<i64: 128, 32>}]} {
    %c0 = arith.constant 0 : index
    %c0_0 = arith.constant 0 : index
    %0 = vector.load %arg1[%c0, %c0_0] : memref<128x32xf32, #tpu.memory_space<vmem>>, vector<128x32xf32>
    %c0_1 = arith.constant 0 : index
    %c0_2 = arith.constant 0 : index
    %1 = vector.load %arg16[%c0_1, %c0_2] : memref<2x128xf32, #tpu.memory_space<vmem>>, vector<2x128xf32>
    %c0_3 = arith.constant 0 : index
    %c0_4 = arith.constant 0 : index
    %2 = vector.load %arg17[%c0_3, %c0_4] : memref<128x2xf32, #tpu.memory_space<vmem>>, vector<128x2xf32>
    %c0_5 = arith.constant 0 : index
    %c0_6 = arith.constant 0 : index
    %3 = vector.load %arg13[%c0_5, %c0_6] : memref<32x32xf32, #tpu.memory_space<vmem>>, vector<32x32xf32>
    %c0_7 = arith.constant 0 : index
    %c0_8 = arith.constant 0 : index
    %4 = vector.load %arg14[%c0_7, %c0_8] : memref<32x32xf32, #tpu.memory_space<vmem>>, vector<32x32xf32>
    %c0_9 = arith.constant 0 : index
    %c0_10 = arith.constant 0 : index
    %5 = vector.load %arg3[%c0_9, %c0_10] : memref<1x32xf32, #tpu.memory_space<vmem>>, vector<1x32xf32>
    %c0_11 = arith.constant 0 : index
    %c0_12 = arith.constant 0 : index
    %6 = vector.load %arg4[%c0_11, %c0_12] : memref<1x32xf32, #tpu.memory_space<vmem>>, vector<1x32xf32>
    %cst = arith.constant dense<0.000000e+00> : vector<2x32xf32>
    %7 = tpu.matmul %1, %0, %cst {dimension_numbers = #tpu.dot_dimension_numbers<[1], [0], [0], [1], [0, 0, 1, 1], [], []>} : vector<2x128xf32>, vector<128x32xf32>, vector<2x32xf32> -> vector<2x32xf32>
    %8 = arith.mulf %0, %0 : vector<128x32xf32>
    %cst_13 = arith.constant dense<0.000000e+00> : vector<2x32xf32>
    %9 = tpu.matmul %1, %8, %cst_13 {dimension_numbers = #tpu.dot_dimension_numbers<[1], [0], [0], [1], [0, 0, 1, 1], [], []>} : vector<2x128xf32>, vector<128x32xf32>, vector<2x32xf32> -> vector<2x32xf32>
    %cst_14 = arith.constant dense<0.000000e+00> : vector<2x32xf32>
    %10 = tpu.matmul %7, %3, %cst_14 {dimension_numbers = #tpu.dot_dimension_numbers<[1], [0], [0], [1], [0, 0, 1, 1], [], []>} : vector<2x32xf32>, vector<32x32xf32>, vector<2x32xf32> -> vector<2x32xf32>
    %cst_15 = arith.constant 1.562500e-02 : f32
    %11 = vector.broadcast %cst_15 : f32 to vector<2x32xf32>
    %12 = arith.mulf %10, %11 : vector<2x32xf32>
    %cst_16 = arith.constant dense<0.000000e+00> : vector<2x32xf32>
    %13 = tpu.matmul %9, %3, %cst_16 {dimension_numbers = #tpu.dot_dimension_numbers<[1], [0], [0], [1], [0, 0, 1, 1], [], []>} : vector<2x32xf32>, vector<32x32xf32>, vector<2x32xf32> -> vector<2x32xf32>
    %cst_17 = arith.constant 1.562500e-02 : f32
    %14 = vector.broadcast %cst_17 : f32 to vector<2x32xf32>
    %15 = arith.mulf %13, %14 : vector<2x32xf32>
    %16 = arith.mulf %12, %12 : vector<2x32xf32>
    %17 = arith.subf %15, %16 : vector<2x32xf32>
    %cst_18 = arith.constant 9.99999974E-6 : f32
    %18 = vector.broadcast %cst_18 : f32 to vector<2x32xf32>
    %19 = arith.addf %17, %18 : vector<2x32xf32>
    %20 = math.rsqrt %19 : vector<2x32xf32>
    %cst_19 = arith.constant dense<0.000000e+00> : vector<2x32xf32>
    %21 = tpu.matmul %12, %4, %cst_19 {dimension_numbers = #tpu.dot_dimension_numbers<[1], [0], [0], [1], [0, 0, 1, 1], [], []>} : vector<2x32xf32>, vector<32x32xf32>, vector<2x32xf32> -> vector<2x32xf32>
    %cst_20 = arith.constant dense<0.000000e+00> : vector<128x32xf32>
    %22 = tpu.matmul %2, %21, %cst_20 {dimension_numbers = #tpu.dot_dimension_numbers<[1], [0], [0], [1], [0, 0, 1, 1], [], []>} : vector<128x2xf32>, vector<2x32xf32>, vector<128x32xf32> -> vector<128x32xf32>
    %cst_21 = arith.constant dense<0.000000e+00> : vector<2x32xf32>
    %23 = tpu.matmul %20, %4, %cst_21 {dimension_numbers = #tpu.dot_dimension_numbers<[1], [0], [0], [1], [0, 0, 1, 1], [], []>} : vector<2x32xf32>, vector<32x32xf32>, vector<2x32xf32> -> vector<2x32xf32>
    %cst_22 = arith.constant dense<0.000000e+00> : vector<128x32xf32>
    %24 = tpu.matmul %2, %23, %cst_22 {dimension_numbers = #tpu.dot_dimension_numbers<[1], [0], [0], [1], [0, 0, 1, 1], [], []>} : vector<128x2xf32>, vector<2x32xf32>, vector<128x32xf32> -> vector<128x32xf32>
    %25 = arith.subf %0, %22 : vector<128x32xf32>
    %26 = arith.mulf %25, %24 : vector<128x32xf32>
    %27 = vector.broadcast %5 : vector<1x32xf32> to vector<128x32xf32>
    %28 = arith.mulf %26, %27 : vector<128x32xf32>
    %29 = vector.broadcast %6 : vector<1x32xf32> to vector<128x32xf32>
    %30 = arith.addf %28, %29 : vector<128x32xf32>
    %31 = arith.negf %30 : vector<128x32xf32>
    %32 = math.exp %31 : vector<128x32xf32>
    %cst_23 = arith.constant 1.000000e+00 : f32
    %33 = vector.broadcast %cst_23 : f32 to vector<128x32xf32>
    %34 = arith.addf %33, %32 : vector<128x32xf32>
    %35 = arith.divf %33, %34 : vector<128x32xf32>
    %36 = arith.mulf %30, %35 : vector<128x32xf32>
    %c0_24 = arith.constant 0 : index
    %c0_25 = arith.constant 0 : index
    %37 = vector.load %arg6[%c0_24, %c0_25] : memref<1x32xf32, #tpu.memory_space<vmem>>, vector<1x32xf32>
    %c9_i32 = arith.constant 9 : i32
    %38 = tpu.dynamic_rotate %36 by %c9_i32 dim 0 : vector<128x32xf32>, i32 -> vector<128x32xf32>
    %c0_26 = arith.constant 0 : index
    %c0_27 = arith.constant 0 : index
    %c0_28 = arith.constant 0 : index
    %39 = vector.load %arg15[%c0_26, %c0_27, %c0_28] : memref<9x128x1xf32, #tpu.memory_space<vmem>>, vector<1x128x1xf32>
    %40 = vector.shape_cast %39 : vector<1x128x1xf32> to vector<128x1xf32>
    %41 = vector.broadcast %40 : vector<128x1xf32> to vector<128x32xf32>
    %42 = arith.mulf %38, %41 : vector<128x32xf32>
    %43 = arith.truncf %42 : vector<128x32xf32> to vector<128x32xbf16>
    %c0_29 = arith.constant 0 : index
    %c0_30 = arith.constant 0 : index
    %44 = vector.load %arg19[%c0_29, %c0_30] : memref<128x288xbf16, #tpu.memory_space<vmem>>, vector<128x32xbf16>
    tpu.vector_store %arg19[%c0_29, %c0_30], %43 {strides = array<i32>} : memref<128x288xbf16, #tpu.memory_space<vmem>>, vector<128x32xbf16>,
    %c8_i32 = arith.constant 8 : i32
    %45 = tpu.dynamic_rotate %36 by %c8_i32 dim 0 : vector<128x32xf32>, i32 -> vector<128x32xf32>
    %c1 = arith.constant 1 : index
    %c0_31 = arith.constant 0 : index
    %c0_32 = arith.constant 0 : index
    %46 = vector.load %arg15[%c1, %c0_31, %c0_32] : memref<9x128x1xf32, #tpu.memory_space<vmem>>, vector<1x128x1xf32>
    %47 = vector.shape_cast %46 : vector<1x128x1xf32> to vector<128x1xf32>
    %48 = vector.broadcast %47 : vector<128x1xf32> to vector<128x32xf32>
    %49 = arith.mulf %45, %48 : vector<128x32xf32>
    %50 = arith.truncf %49 : vector<128x32xf32> to vector<128x32xbf16>
    %c0_33 = arith.constant 0 : index
    %c32 = arith.constant 32 : index
    %51 = vector.load %arg19[%c0_33, %c32] : memref<128x288xbf16, #tpu.memory_space<vmem>>, vector<128x32xbf16>
    tpu.vector_store %arg19[%c0_33, %c32], %50 {strides = array<i32>} : memref<128x288xbf16, #tpu.memory_space<vmem>>, vector<128x32xbf16>,
    %c7_i32 = arith.constant 7 : i32
    %52 = tpu.dynamic_rotate %36 by %c7_i32 dim 0 : vector<128x32xf32>, i32 -> vector<128x32xf32>
    %c2 = arith.constant 2 : index
    %c0_34 = arith.constant 0 : index
    %c0_35 = arith.constant 0 : index
    %53 = vector.load %arg15[%c2, %c0_34, %c0_35] : memref<9x128x1xf32, #tpu.memory_space<vmem>>, vector<1x128x1xf32>
    %54 = vector.shape_cast %53 : vector<1x128x1xf32> to vector<128x1xf32>
    %55 = vector.broadcast %54 : vector<128x1xf32> to vector<128x32xf32>
    %56 = arith.mulf %52, %55 : vector<128x32xf32>
    %57 = arith.truncf %56 : vector<128x32xf32> to vector<128x32xbf16>
    %c0_36 = arith.constant 0 : index
    %c64 = arith.constant 64 : index
    %58 = vector.load %arg19[%c0_36, %c64] : memref<128x288xbf16, #tpu.memory_space<vmem>>, vector<128x32xbf16>
    tpu.vector_store %arg19[%c0_36, %c64], %57 {strides = array<i32>} : memref<128x288xbf16, #tpu.memory_space<vmem>>, vector<128x32xbf16>,
    %c1_i32 = arith.constant 1 : i32
    %59 = tpu.dynamic_rotate %36 by %c1_i32 dim 0 : vector<128x32xf32>, i32 -> vector<128x32xf32>
    %c3 = arith.constant 3 : index
    %c0_37 = arith.constant 0 : index
    %c0_38 = arith.constant 0 : index
    %60 = vector.load %arg15[%c3, %c0_37, %c0_38] : memref<9x128x1xf32, #tpu.memory_space<vmem>>, vector<1x128x1xf32>
    %61 = vector.shape_cast %60 : vector<1x128x1xf32> to vector<128x1xf32>
    %62 = vector.broadcast %61 : vector<128x1xf32> to vector<128x32xf32>
    %63 = arith.mulf %59, %62 : vector<128x32xf32>
    %64 = arith.truncf %63 : vector<128x32xf32> to vector<128x32xbf16>
    %c0_39 = arith.constant 0 : index
    %c96 = arith.constant 96 : index
    %65 = vector.load %arg19[%c0_39, %c96] : memref<128x288xbf16, #tpu.memory_space<vmem>>, vector<128x32xbf16>
    tpu.vector_store %arg19[%c0_39, %c96], %64 {strides = array<i32>} : memref<128x288xbf16, #tpu.memory_space<vmem>>, vector<128x32xbf16>,
    %66 = arith.truncf %36 : vector<128x32xf32> to vector<128x32xbf16>
    %c0_40 = arith.constant 0 : index
    %c128 = arith.constant 128 : index
    %67 = vector.load %arg19[%c0_40, %c128] : memref<128x288xbf16, #tpu.memory_space<vmem>>, vector<128x32xbf16>
    tpu.vector_store %arg19[%c0_40, %c128], %66 {strides = array<i32>} : memref<128x288xbf16, #tpu.memory_space<vmem>>, vector<128x32xbf16>,
    %c127_i32 = arith.constant 127 : i32
    %68 = tpu.dynamic_rotate %36 by %c127_i32 dim 0 : vector<128x32xf32>, i32 -> vector<128x32xf32>
    %c5 = arith.constant 5 : index
    %c0_41 = arith.constant 0 : index
    %c0_42 = arith.constant 0 : index
    %69 = vector.load %arg15[%c5, %c0_41, %c0_42] : memref<9x128x1xf32, #tpu.memory_space<vmem>>, vector<1x128x1xf32>
    %70 = vector.shape_cast %69 : vector<1x128x1xf32> to vector<128x1xf32>
    %71 = vector.broadcast %70 : vector<128x1xf32> to vector<128x32xf32>
    %72 = arith.mulf %68, %71 : vector<128x32xf32>
    %73 = arith.truncf %72 : vector<128x32xf32> to vector<128x32xbf16>
    %c0_43 = arith.constant 0 : index
    %c160 = arith.constant 160 : index
    %74 = vector.load %arg19[%c0_43, %c160] : memref<128x288xbf16, #tpu.memory_space<vmem>>, vector<128x32xbf16>
    tpu.vector_store %arg19[%c0_43, %c160], %73 {strides = array<i32>} : memref<128x288xbf16, #tpu.memory_space<vmem>>, vector<128x32xbf16>,
    %c121_i32 = arith.constant 121 : i32
    %75 = tpu.dynamic_rotate %36 by %c121_i32 dim 0 : vector<128x32xf32>, i32 -> vector<128x32xf32>
    %c6 = arith.constant 6 : index
    %c0_44 = arith.constant 0 : index
    %c0_45 = arith.constant 0 : index
    %76 = vector.load %arg15[%c6, %c0_44, %c0_45] : memref<9x128x1xf32, #tpu.memory_space<vmem>>, vector<1x128x1xf32>
    %77 = vector.shape_cast %76 : vector<1x128x1xf32> to vector<128x1xf32>
    %78 = vector.broadcast %77 : vector<128x1xf32> to vector<128x32xf32>
    %79 = arith.mulf %75, %78 : vector<128x32xf32>
    %80 = arith.truncf %79 : vector<128x32xf32> to vector<128x32xbf16>
    %c0_46 = arith.constant 0 : index
    %c192 = arith.constant 192 : index
    %81 = vector.load %arg19[%c0_46, %c192] : memref<128x288xbf16, #tpu.memory_space<vmem>>, vector<128x32xbf16>
    tpu.vector_store %arg19[%c0_46, %c192], %80 {strides = array<i32>} : memref<128x288xbf16, #tpu.memory_space<vmem>>, vector<128x32xbf16>,
    %c120_i32 = arith.constant 120 : i32
    %82 = tpu.dynamic_rotate %36 by %c120_i32 dim 0 : vector<128x32xf32>, i32 -> vector<128x32xf32>
    %c7 = arith.constant 7 : index
    %c0_47 = arith.constant 0 : index
    %c0_48 = arith.constant 0 : index
    %83 = vector.load %arg15[%c7, %c0_47, %c0_48] : memref<9x128x1xf32, #tpu.memory_space<vmem>>, vector<1x128x1xf32>
    %84 = vector.shape_cast %83 : vector<1x128x1xf32> to vector<128x1xf32>
    %85 = vector.broadcast %84 : vector<128x1xf32> to vector<128x32xf32>
    %86 = arith.mulf %82, %85 : vector<128x32xf32>
    %87 = arith.truncf %86 : vector<128x32xf32> to vector<128x32xbf16>
    %c0_49 = arith.constant 0 : index
    %c224 = arith.constant 224 : index
    %88 = vector.load %arg19[%c0_49, %c224] : memref<128x288xbf16, #tpu.memory_space<vmem>>, vector<128x32xbf16>
    tpu.vector_store %arg19[%c0_49, %c224], %87 {strides = array<i32>} : memref<128x288xbf16, #tpu.memory_space<vmem>>, vector<128x32xbf16>,
    %c119_i32 = arith.constant 119 : i32
    %89 = tpu.dynamic_rotate %36 by %c119_i32 dim 0 : vector<128x32xf32>, i32 -> vector<128x32xf32>
    %c8 = arith.constant 8 : index
    %c0_50 = arith.constant 0 : index
    %c0_51 = arith.constant 0 : index
    %90 = vector.load %arg15[%c8, %c0_50, %c0_51] : memref<9x128x1xf32, #tpu.memory_space<vmem>>, vector<1x128x1xf32>
    %91 = vector.shape_cast %90 : vector<1x128x1xf32> to vector<128x1xf32>
    %92 = vector.broadcast %91 : vector<128x1xf32> to vector<128x32xf32>
    %93 = arith.mulf %89, %92 : vector<128x32xf32>
    %94 = arith.truncf %93 : vector<128x32xf32> to vector<128x32xbf16>
    %c0_52 = arith.constant 0 : index
    %c256 = arith.constant 256 : index
    %95 = vector.load %arg19[%c0_52, %c256] : memref<128x288xbf16, #tpu.memory_space<vmem>>, vector<128x32xbf16>
    tpu.vector_store %arg19[%c0_52, %c256], %94 {strides = array<i32>} : memref<128x288xbf16, #tpu.memory_space<vmem>>, vector<128x32xbf16>,
    %c0_53 = arith.constant 0 : index
    %c0_54 = arith.constant 0 : index
    %96 = vector.load %arg19[%c0_53, %c0_54] : memref<128x288xbf16, #tpu.memory_space<vmem>>, vector<128x288xbf16>
    %c0_55 = arith.constant 0 : index
    %c0_56 = arith.constant 0 : index
    %97 = vector.load %arg5[%c0_55, %c0_56] : memref<288x32xbf16, #tpu.memory_space<vmem>>, vector<288x32xbf16>
    %cst_57 = arith.constant dense<0.000000e+00> : vector<128x32xf32>
    %98 = tpu.matmul %96, %97, %cst_57 {dimension_numbers = #tpu.dot_dimension_numbers<[1], [0], [0], [1], [0, 0, 1, 1], [], []>} : vector<128x288xbf16>, vector<288x32xbf16>, vector<128x32xf32> -> vector<128x32xf32>
    %99 = vector.broadcast %37 : vector<1x32xf32> to vector<128x32xf32>
    %100 = arith.addf %98, %99 : vector<128x32xf32>
    %c0_58 = arith.constant 0 : index
    %c0_59 = arith.constant 0 : index
    %c0_60 = arith.constant 0 : index
    %101 = vector.load %arg2[%c0_58, %c0_59, %c0_60] : memref<2x1x16xf32, #tpu.memory_space<vmem>>, vector<2x1x16xf32>
    %102 = vector.shape_cast %101 : vector<2x1x16xf32> to vector<2x16xf32>
    %103 = arith.negf %102 : vector<2x16xf32>
    %104 = math.exp %103 : vector<2x16xf32>
    %cst_61 = arith.constant 1.000000e+00 : f32
    %105 = vector.broadcast %cst_61 : f32 to vector<2x16xf32>
    %106 = arith.addf %105, %104 : vector<2x16xf32>
    %107 = arith.divf %105, %106 : vector<2x16xf32>
    %108 = arith.mulf %102, %107 : vector<2x16xf32>
    %109 = arith.truncf %108 : vector<2x16xf32> to vector<2x16xbf16>
    %c0_62 = arith.constant 0 : index
    %c0_63 = arith.constant 0 : index
    %110 = vector.load %arg7[%c0_62, %c0_63] : memref<16x32xbf16, #tpu.memory_space<vmem>>, vector<16x32xbf16>
    %cst_64 = arith.constant dense<0.000000e+00> : vector<2x32xf32>
    %111 = tpu.matmul %109, %110, %cst_64 {dimension_numbers = #tpu.dot_dimension_numbers<[1], [0], [0], [1], [0, 0, 1, 1], [], []>} : vector<2x16xbf16>, vector<16x32xbf16>, vector<2x32xf32> -> vector<2x32xf32>
    %c0_65 = arith.constant 0 : index
    %c0_66 = arith.constant 0 : index
    %112 = vector.load %arg8[%c0_65, %c0_66] : memref<1x32xf32, #tpu.memory_space<vmem>>, vector<1x32xf32>
    %113 = vector.broadcast %112 : vector<1x32xf32> to vector<2x32xf32>
    %114 = arith.addf %111, %113 : vector<2x32xf32>
    %cst_67 = arith.constant dense<0.000000e+00> : vector<128x32xf32>
    %115 = tpu.matmul %2, %114, %cst_67 {dimension_numbers = #tpu.dot_dimension_numbers<[1], [0], [0], [1], [0, 0, 1, 1], [], []>} : vector<128x2xf32>, vector<2x32xf32>, vector<128x32xf32> -> vector<128x32xf32>
    %116 = arith.addf %100, %115 : vector<128x32xf32>
    %c0_68 = arith.constant 0 : index
    %c0_69 = arith.constant 0 : index
    %117 = vector.load %arg9[%c0_68, %c0_69] : memref<1x32xf32, #tpu.memory_space<vmem>>, vector<1x32xf32>
    %c0_70 = arith.constant 0 : index
    %c0_71 = arith.constant 0 : index
    %118 = vector.load %arg10[%c0_70, %c0_71] : memref<1x32xf32, #tpu.memory_space<vmem>>, vector<1x32xf32>
    %cst_72 = arith.constant dense<0.000000e+00> : vector<2x32xf32>
    %119 = tpu.matmul %1, %116, %cst_72 {dimension_numbers = #tpu.dot_dimension_numbers<[1], [0], [0], [1], [0, 0, 1, 1], [], []>} : vector<2x128xf32>, vector<128x32xf32>, vector<2x32xf32> -> vector<2x32xf32>
    %120 = arith.mulf %116, %116 : vector<128x32xf32>
    %cst_73 = arith.constant dense<0.000000e+00> : vector<2x32xf32>
    %121 = tpu.matmul %1, %120, %cst_73 {dimension_numbers = #tpu.dot_dimension_numbers<[1], [0], [0], [1], [0, 0, 1, 1], [], []>} : vector<2x128xf32>, vector<128x32xf32>, vector<2x32xf32> -> vector<2x32xf32>
    %cst_74 = arith.constant dense<0.000000e+00> : vector<2x32xf32>
    %122 = tpu.matmul %119, %3, %cst_74 {dimension_numbers = #tpu.dot_dimension_numbers<[1], [0], [0], [1], [0, 0, 1, 1], [], []>} : vector<2x32xf32>, vector<32x32xf32>, vector<2x32xf32> -> vector<2x32xf32>
    %cst_75 = arith.constant 1.562500e-02 : f32
    %123 = vector.broadcast %cst_75 : f32 to vector<2x32xf32>
    %124 = arith.mulf %122, %123 : vector<2x32xf32>
    %cst_76 = arith.constant dense<0.000000e+00> : vector<2x32xf32>
    %125 = tpu.matmul %121, %3, %cst_76 {dimension_numbers = #tpu.dot_dimension_numbers<[1], [0], [0], [1], [0, 0, 1, 1], [], []>} : vector<2x32xf32>, vector<32x32xf32>, vector<2x32xf32> -> vector<2x32xf32>
    %cst_77 = arith.constant 1.562500e-02 : f32
    %126 = vector.broadcast %cst_77 : f32 to vector<2x32xf32>
    %127 = arith.mulf %125, %126 : vector<2x32xf32>
    %128 = arith.mulf %124, %124 : vector<2x32xf32>
    %129 = arith.subf %127, %128 : vector<2x32xf32>
    %cst_78 = arith.constant 9.99999974E-6 : f32
    %130 = vector.broadcast %cst_78 : f32 to vector<2x32xf32>
    %131 = arith.addf %129, %130 : vector<2x32xf32>
    %132 = math.rsqrt %131 : vector<2x32xf32>
    %cst_79 = arith.constant dense<0.000000e+00> : vector<2x32xf32>
    %133 = tpu.matmul %124, %4, %cst_79 {dimension_numbers = #tpu.dot_dimension_numbers<[1], [0], [0], [1], [0, 0, 1, 1], [], []>} : vector<2x32xf32>, vector<32x32xf32>, vector<2x32xf32> -> vector<2x32xf32>
    %cst_80 = arith.constant dense<0.000000e+00> : vector<128x32xf32>
    %134 = tpu.matmul %2, %133, %cst_80 {dimension_numbers = #tpu.dot_dimension_numbers<[1], [0], [0], [1], [0, 0, 1, 1], [], []>} : vector<128x2xf32>, vector<2x32xf32>, vector<128x32xf32> -> vector<128x32xf32>
    %cst_81 = arith.constant dense<0.000000e+00> : vector<2x32xf32>
    %135 = tpu.matmul %132, %4, %cst_81 {dimension_numbers = #tpu.dot_dimension_numbers<[1], [0], [0], [1], [0, 0, 1, 1], [], []>} : vector<2x32xf32>, vector<32x32xf32>, vector<2x32xf32> -> vector<2x32xf32>
    %cst_82 = arith.constant dense<0.000000e+00> : vector<128x32xf32>
    %136 = tpu.matmul %2, %135, %cst_82 {dimension_numbers = #tpu.dot_dimension_numbers<[1], [0], [0], [1], [0, 0, 1, 1], [], []>} : vector<128x2xf32>, vector<2x32xf32>, vector<128x32xf32> -> vector<128x32xf32>
    %137 = arith.subf %116, %134 : vector<128x32xf32>
    %138 = arith.mulf %137, %136 : vector<128x32xf32>
    %139 = vector.broadcast %117 : vector<1x32xf32> to vector<128x32xf32>
    %140 = arith.mulf %138, %139 : vector<128x32xf32>
    %141 = vector.broadcast %118 : vector<1x32xf32> to vector<128x32xf32>
    %142 = arith.addf %140, %141 : vector<128x32xf32>
    %143 = arith.negf %142 : vector<128x32xf32>
    %144 = math.exp %143 : vector<128x32xf32>
    %cst_83 = arith.constant 1.000000e+00 : f32
    %145 = vector.broadcast %cst_83 : f32 to vector<128x32xf32>
    %146 = arith.addf %145, %144 : vector<128x32xf32>
    %147 = arith.divf %145, %146 : vector<128x32xf32>
    %148 = arith.mulf %142, %147 : vector<128x32xf32>
    %c0_84 = arith.constant 0 : index
    %c0_85 = arith.constant 0 : index
    %149 = vector.load %arg12[%c0_84, %c0_85] : memref<1x32xf32, #tpu.memory_space<vmem>>, vector<1x32xf32>
    %c9_i32_86 = arith.constant 9 : i32
    %150 = tpu.dynamic_rotate %148 by %c9_i32_86 dim 0 : vector<128x32xf32>, i32 -> vector<128x32xf32>
    %c0_87 = arith.constant 0 : index
    %c0_88 = arith.constant 0 : index
    %c0_89 = arith.constant 0 : index
    %151 = vector.load %arg15[%c0_87, %c0_88, %c0_89] : memref<9x128x1xf32, #tpu.memory_space<vmem>>, vector<1x128x1xf32>
    %152 = vector.shape_cast %151 : vector<1x128x1xf32> to vector<128x1xf32>
    %153 = vector.broadcast %152 : vector<128x1xf32> to vector<128x32xf32>
    %154 = arith.mulf %150, %153 : vector<128x32xf32>
    %155 = arith.truncf %154 : vector<128x32xf32> to vector<128x32xbf16>
    %c0_90 = arith.constant 0 : index
    %c0_91 = arith.constant 0 : index
    %156 = vector.load %arg19[%c0_90, %c0_91] : memref<128x288xbf16, #tpu.memory_space<vmem>>, vector<128x32xbf16>
    tpu.vector_store %arg19[%c0_90, %c0_91], %155 {strides = array<i32>} : memref<128x288xbf16, #tpu.memory_space<vmem>>, vector<128x32xbf16>,
    %c8_i32_92 = arith.constant 8 : i32
    %157 = tpu.dynamic_rotate %148 by %c8_i32_92 dim 0 : vector<128x32xf32>, i32 -> vector<128x32xf32>
    %c1_93 = arith.constant 1 : index
    %c0_94 = arith.constant 0 : index
    %c0_95 = arith.constant 0 : index
    %158 = vector.load %arg15[%c1_93, %c0_94, %c0_95] : memref<9x128x1xf32, #tpu.memory_space<vmem>>, vector<1x128x1xf32>
    %159 = vector.shape_cast %158 : vector<1x128x1xf32> to vector<128x1xf32>
    %160 = vector.broadcast %159 : vector<128x1xf32> to vector<128x32xf32>
    %161 = arith.mulf %157, %160 : vector<128x32xf32>
    %162 = arith.truncf %161 : vector<128x32xf32> to vector<128x32xbf16>
    %c0_96 = arith.constant 0 : index
    %c32_97 = arith.constant 32 : index
    %163 = vector.load %arg19[%c0_96, %c32_97] : memref<128x288xbf16, #tpu.memory_space<vmem>>, vector<128x32xbf16>
    tpu.vector_store %arg19[%c0_96, %c32_97], %162 {strides = array<i32>} : memref<128x288xbf16, #tpu.memory_space<vmem>>, vector<128x32xbf16>,
    %c7_i32_98 = arith.constant 7 : i32
    %164 = tpu.dynamic_rotate %148 by %c7_i32_98 dim 0 : vector<128x32xf32>, i32 -> vector<128x32xf32>
    %c2_99 = arith.constant 2 : index
    %c0_100 = arith.constant 0 : index
    %c0_101 = arith.constant 0 : index
    %165 = vector.load %arg15[%c2_99, %c0_100, %c0_101] : memref<9x128x1xf32, #tpu.memory_space<vmem>>, vector<1x128x1xf32>
    %166 = vector.shape_cast %165 : vector<1x128x1xf32> to vector<128x1xf32>
    %167 = vector.broadcast %166 : vector<128x1xf32> to vector<128x32xf32>
    %168 = arith.mulf %164, %167 : vector<128x32xf32>
    %169 = arith.truncf %168 : vector<128x32xf32> to vector<128x32xbf16>
    %c0_102 = arith.constant 0 : index
    %c64_103 = arith.constant 64 : index
    %170 = vector.load %arg19[%c0_102, %c64_103] : memref<128x288xbf16, #tpu.memory_space<vmem>>, vector<128x32xbf16>
    tpu.vector_store %arg19[%c0_102, %c64_103], %169 {strides = array<i32>} : memref<128x288xbf16, #tpu.memory_space<vmem>>, vector<128x32xbf16>,
    %c1_i32_104 = arith.constant 1 : i32
    %171 = tpu.dynamic_rotate %148 by %c1_i32_104 dim 0 : vector<128x32xf32>, i32 -> vector<128x32xf32>
    %c3_105 = arith.constant 3 : index
    %c0_106 = arith.constant 0 : index
    %c0_107 = arith.constant 0 : index
    %172 = vector.load %arg15[%c3_105, %c0_106, %c0_107] : memref<9x128x1xf32, #tpu.memory_space<vmem>>, vector<1x128x1xf32>
    %173 = vector.shape_cast %172 : vector<1x128x1xf32> to vector<128x1xf32>
    %174 = vector.broadcast %173 : vector<128x1xf32> to vector<128x32xf32>
    %175 = arith.mulf %171, %174 : vector<128x32xf32>
    %176 = arith.truncf %175 : vector<128x32xf32> to vector<128x32xbf16>
    %c0_108 = arith.constant 0 : index
    %c96_109 = arith.constant 96 : index
    %177 = vector.load %arg19[%c0_108, %c96_109] : memref<128x288xbf16, #tpu.memory_space<vmem>>, vector<128x32xbf16>
    tpu.vector_store %arg19[%c0_108, %c96_109], %176 {strides = array<i32>} : memref<128x288xbf16, #tpu.memory_space<vmem>>, vector<128x32xbf16>,
    %178 = arith.truncf %148 : vector<128x32xf32> to vector<128x32xbf16>
    %c0_110 = arith.constant 0 : index
    %c128_111 = arith.constant 128 : index
    %179 = vector.load %arg19[%c0_110, %c128_111] : memref<128x288xbf16, #tpu.memory_space<vmem>>, vector<128x32xbf16>
    tpu.vector_store %arg19[%c0_110, %c128_111], %178 {strides = array<i32>} : memref<128x288xbf16, #tpu.memory_space<vmem>>, vector<128x32xbf16>,
    %c127_i32_112 = arith.constant 127 : i32
    %180 = tpu.dynamic_rotate %148 by %c127_i32_112 dim 0 : vector<128x32xf32>, i32 -> vector<128x32xf32>
    %c5_113 = arith.constant 5 : index
    %c0_114 = arith.constant 0 : index
    %c0_115 = arith.constant 0 : index
    %181 = vector.load %arg15[%c5_113, %c0_114, %c0_115] : memref<9x128x1xf32, #tpu.memory_space<vmem>>, vector<1x128x1xf32>
    %182 = vector.shape_cast %181 : vector<1x128x1xf32> to vector<128x1xf32>
    %183 = vector.broadcast %182 : vector<128x1xf32> to vector<128x32xf32>
    %184 = arith.mulf %180, %183 : vector<128x32xf32>
    %185 = arith.truncf %184 : vector<128x32xf32> to vector<128x32xbf16>
    %c0_116 = arith.constant 0 : index
    %c160_117 = arith.constant 160 : index
    %186 = vector.load %arg19[%c0_116, %c160_117] : memref<128x288xbf16, #tpu.memory_space<vmem>>, vector<128x32xbf16>
    tpu.vector_store %arg19[%c0_116, %c160_117], %185 {strides = array<i32>} : memref<128x288xbf16, #tpu.memory_space<vmem>>, vector<128x32xbf16>,
    %c121_i32_118 = arith.constant 121 : i32
    %187 = tpu.dynamic_rotate %148 by %c121_i32_118 dim 0 : vector<128x32xf32>, i32 -> vector<128x32xf32>
    %c6_119 = arith.constant 6 : index
    %c0_120 = arith.constant 0 : index
    %c0_121 = arith.constant 0 : index
    %188 = vector.load %arg15[%c6_119, %c0_120, %c0_121] : memref<9x128x1xf32, #tpu.memory_space<vmem>>, vector<1x128x1xf32>
    %189 = vector.shape_cast %188 : vector<1x128x1xf32> to vector<128x1xf32>
    %190 = vector.broadcast %189 : vector<128x1xf32> to vector<128x32xf32>
    %191 = arith.mulf %187, %190 : vector<128x32xf32>
    %192 = arith.truncf %191 : vector<128x32xf32> to vector<128x32xbf16>
    %c0_122 = arith.constant 0 : index
    %c192_123 = arith.constant 192 : index
    %193 = vector.load %arg19[%c0_122, %c192_123] : memref<128x288xbf16, #tpu.memory_space<vmem>>, vector<128x32xbf16>
    tpu.vector_store %arg19[%c0_122, %c192_123], %192 {strides = array<i32>} : memref<128x288xbf16, #tpu.memory_space<vmem>>, vector<128x32xbf16>,
    %c120_i32_124 = arith.constant 120 : i32
    %194 = tpu.dynamic_rotate %148 by %c120_i32_124 dim 0 : vector<128x32xf32>, i32 -> vector<128x32xf32>
    %c7_125 = arith.constant 7 : index
    %c0_126 = arith.constant 0 : index
    %c0_127 = arith.constant 0 : index
    %195 = vector.load %arg15[%c7_125, %c0_126, %c0_127] : memref<9x128x1xf32, #tpu.memory_space<vmem>>, vector<1x128x1xf32>
    %196 = vector.shape_cast %195 : vector<1x128x1xf32> to vector<128x1xf32>
    %197 = vector.broadcast %196 : vector<128x1xf32> to vector<128x32xf32>
    %198 = arith.mulf %194, %197 : vector<128x32xf32>
    %199 = arith.truncf %198 : vector<128x32xf32> to vector<128x32xbf16>
    %c0_128 = arith.constant 0 : index
    %c224_129 = arith.constant 224 : index
    %200 = vector.load %arg19[%c0_128, %c224_129] : memref<128x288xbf16, #tpu.memory_space<vmem>>, vector<128x32xbf16>
    tpu.vector_store %arg19[%c0_128, %c224_129], %199 {strides = array<i32>} : memref<128x288xbf16, #tpu.memory_space<vmem>>, vector<128x32xbf16>,
    %c119_i32_130 = arith.constant 119 : i32
    %201 = tpu.dynamic_rotate %148 by %c119_i32_130 dim 0 : vector<128x32xf32>, i32 -> vector<128x32xf32>
    %c8_131 = arith.constant 8 : index
    %c0_132 = arith.constant 0 : index
    %c0_133 = arith.constant 0 : index
    %202 = vector.load %arg15[%c8_131, %c0_132, %c0_133] : memref<9x128x1xf32, #tpu.memory_space<vmem>>, vector<1x128x1xf32>
    %203 = vector.shape_cast %202 : vector<1x128x1xf32> to vector<128x1xf32>
    %204 = vector.broadcast %203 : vector<128x1xf32> to vector<128x32xf32>
    %205 = arith.mulf %201, %204 : vector<128x32xf32>
    %206 = arith.truncf %205 : vector<128x32xf32> to vector<128x32xbf16>
    %c0_134 = arith.constant 0 : index
    %c256_135 = arith.constant 256 : index
    %207 = vector.load %arg19[%c0_134, %c256_135] : memref<128x288xbf16, #tpu.memory_space<vmem>>, vector<128x32xbf16>
    tpu.vector_store %arg19[%c0_134, %c256_135], %206 {strides = array<i32>} : memref<128x288xbf16, #tpu.memory_space<vmem>>, vector<128x32xbf16>,
    %c0_136 = arith.constant 0 : index
    %c0_137 = arith.constant 0 : index
    %208 = vector.load %arg19[%c0_136, %c0_137] : memref<128x288xbf16, #tpu.memory_space<vmem>>, vector<128x288xbf16>
    %c0_138 = arith.constant 0 : index
    %c0_139 = arith.constant 0 : index
    %209 = vector.load %arg11[%c0_138, %c0_139] : memref<288x32xbf16, #tpu.memory_space<vmem>>, vector<288x32xbf16>
    %cst_140 = arith.constant dense<0.000000e+00> : vector<128x32xf32>
    %210 = tpu.matmul %208, %209, %cst_140 {dimension_numbers = #tpu.dot_dimension_numbers<[1], [0], [0], [1], [0, 0, 1, 1], [], []>} : vector<128x288xbf16>, vector<288x32xbf16>, vector<128x32xf32> -> vector<128x32xf32>
    %211 = vector.broadcast %149 : vector<1x32xf32> to vector<128x32xf32>
    %212 = arith.addf %210, %211 : vector<128x32xf32>
    %213 = arith.addf %0, %212 : vector<128x32xf32>
    %c0_141 = arith.constant 0 : index
    %c0_142 = arith.constant 0 : index
    %214 = vector.load %arg18[%c0_141, %c0_142] : memref<128x32xf32, #tpu.memory_space<vmem>>, vector<128x32xf32>
    tpu.vector_store %arg18[%c0_141, %c0_142], %213 {strides = array<i32>} : memref<128x32xf32, #tpu.memory_space<vmem>>, vector<128x32xf32>,
    return
  }
  func.func @transform_0(%arg0: i32) -> (i32, i32) {
    %c0_i32 = arith.constant 0 : i32
    %c0_i32_0 = arith.constant 0 : i32
    return %arg0, %c0_i32 : i32, i32
  }
  func.func @transform_1(%arg0: i32) -> (i32, i32, i32) {
    %c0_i32 = arith.constant 0 : i32
    %c0_i32_0 = arith.constant 0 : i32
    %c0_i32_1 = arith.constant 0 : i32
    return %arg0, %c0_i32, %c0_i32_0 : i32, i32, i32
  }
  func.func @transform_2(%arg0: i32) -> (i32, i32) {
    %c0_i32 = arith.constant 0 : i32
    %c0_i32_0 = arith.constant 0 : i32
    %c0_i32_1 = arith.constant 0 : i32
    return %c0_i32, %c0_i32_0 : i32, i32
  }
  func.func @transform_3(%arg0: i32) -> (i32, i32) {
    %c0_i32 = arith.constant 0 : i32
    %c0_i32_0 = arith.constant 0 : i32
    %c0_i32_1 = arith.constant 0 : i32
    return %c0_i32, %c0_i32_0 : i32, i32
  }
  func.func @transform_4(%arg0: i32) -> (i32, i32) {
    %c0_i32 = arith.constant 0 : i32
    %c0_i32_0 = arith.constant 0 : i32
    %c0_i32_1 = arith.constant 0 : i32
    return %c0_i32, %c0_i32_0 : i32, i32
  }
  func.func @transform_5(%arg0: i32) -> (i32, i32) {
    %c0_i32 = arith.constant 0 : i32
    %c0_i32_0 = arith.constant 0 : i32
    %c0_i32_1 = arith.constant 0 : i32
    return %c0_i32, %c0_i32_0 : i32, i32
  }
  func.func @transform_6(%arg0: i32) -> (i32, i32) {
    %c0_i32 = arith.constant 0 : i32
    %c0_i32_0 = arith.constant 0 : i32
    %c0_i32_1 = arith.constant 0 : i32
    return %c0_i32, %c0_i32_0 : i32, i32
  }
  func.func @transform_7(%arg0: i32) -> (i32, i32) {
    %c0_i32 = arith.constant 0 : i32
    %c0_i32_0 = arith.constant 0 : i32
    %c0_i32_1 = arith.constant 0 : i32
    return %c0_i32, %c0_i32_0 : i32, i32
  }
  func.func @transform_8(%arg0: i32) -> (i32, i32) {
    %c0_i32 = arith.constant 0 : i32
    %c0_i32_0 = arith.constant 0 : i32
    %c0_i32_1 = arith.constant 0 : i32
    return %c0_i32, %c0_i32_0 : i32, i32
  }
  func.func @transform_9(%arg0: i32) -> (i32, i32) {
    %c0_i32 = arith.constant 0 : i32
    %c0_i32_0 = arith.constant 0 : i32
    %c0_i32_1 = arith.constant 0 : i32
    return %c0_i32, %c0_i32_0 : i32, i32
  }
  func.func @transform_10(%arg0: i32) -> (i32, i32) {
    %c0_i32 = arith.constant 0 : i32
    %c0_i32_0 = arith.constant 0 : i32
    %c0_i32_1 = arith.constant 0 : i32
    return %c0_i32, %c0_i32_0 : i32, i32
  }
  func.func @transform_11(%arg0: i32) -> (i32, i32) {
    %c0_i32 = arith.constant 0 : i32
    %c0_i32_0 = arith.constant 0 : i32
    %c0_i32_1 = arith.constant 0 : i32
    return %c0_i32, %c0_i32_0 : i32, i32
  }
  func.func @transform_12(%arg0: i32) -> (i32, i32) {
    %c0_i32 = arith.constant 0 : i32
    %c0_i32_0 = arith.constant 0 : i32
    %c0_i32_1 = arith.constant 0 : i32
    return %c0_i32, %c0_i32_0 : i32, i32
  }
  func.func @transform_13(%arg0: i32) -> (i32, i32) {
    %c0_i32 = arith.constant 0 : i32
    %c0_i32_0 = arith.constant 0 : i32
    %c0_i32_1 = arith.constant 0 : i32
    return %c0_i32, %c0_i32_0 : i32, i32
  }
  func.func @transform_14(%arg0: i32) -> (i32, i32, i32) {
    %c0_i32 = arith.constant 0 : i32
    %c0_i32_0 = arith.constant 0 : i32
    %c0_i32_1 = arith.constant 0 : i32
    %c0_i32_2 = arith.constant 0 : i32
    return %c0_i32, %c0_i32_0, %c0_i32_1 : i32, i32, i32
  }
  func.func @transform_15(%arg0: i32) -> (i32, i32) {
    %c0_i32 = arith.constant 0 : i32
    %c0_i32_0 = arith.constant 0 : i32
    %c0_i32_1 = arith.constant 0 : i32
    return %c0_i32, %c0_i32_0 : i32, i32
  }
  func.func @transform_16(%arg0: i32) -> (i32, i32) {
    %c0_i32 = arith.constant 0 : i32
    %c0_i32_0 = arith.constant 0 : i32
    %c0_i32_1 = arith.constant 0 : i32
    return %c0_i32, %c0_i32_0 : i32, i32
  }
  func.func @transform_17(%arg0: i32) -> (i32, i32) {
    %c0_i32 = arith.constant 0 : i32
    %c0_i32_0 = arith.constant 0 : i32
    return %arg0, %c0_i32 : i32, i32
  }
}

</mosaic_0001>

<llo_original>
// kernel: tpu_custom_call.1
$region0: #{tpu_custom_call.1}
  #allocation0 [shape = 'u32[]', space=smem, size = 0x4, offset = 0x4, fixed_abs, tag = 'smem constant byte address 0x4 - core index']
  #allocation1 [shape = 'u32[72,128]{1,0:T(1,128)}', space=vmem, size = 0x9000, scoped, tag = 'internal scratch']
  #allocation2 [shape = 'bf16[128,288]{1,0:T(8,128)(2,1)}', space=vmem, size = 0x18000, scoped, tag = 'scratch operand']
  %s0 = inlined_call_operand.vmem [shape: f32[128,32], index: 0, kind: input, shape index: {}]
  %s1 = inlined_call_operand.vmem [shape: f32[2,1,16], index: 1, kind: input, shape index: {}]
  %s2 = inlined_call_operand.vmem [shape: f32[1,32], index: 2, kind: input, shape index: {}]
  %s3 = inlined_call_operand.vmem [shape: f32[1,32], index: 3, kind: input, shape index: {}]
  %s4 = inlined_call_operand.vmem [shape: bf16[288,32], index: 4, kind: input, shape index: {}]
  %s5 = inlined_call_operand.vmem [shape: f32[1,32], index: 5, kind: input, shape index: {}]
  %s6 = inlined_call_operand.vmem [shape: bf16[16,32], index: 6, kind: input, shape index: {}]
  %s7 = inlined_call_operand.vmem [shape: f32[1,32], index: 7, kind: input, shape index: {}]
  %s8 = inlined_call_operand.vmem [shape: f32[1,32], index: 8, kind: input, shape index: {}]
  %s9 = inlined_call_operand.vmem [shape: f32[1,32], index: 9, kind: input, shape index: {}]
  %s10 = inlined_call_operand.vmem [shape: bf16[288,32], index: 10, kind: input, shape index: {}]
  %s11 = inlined_call_operand.vmem [shape: f32[1,32], index: 11, kind: input, shape index: {}]
  %s12 = inlined_call_operand.vmem [shape: f32[32,32], index: 12, kind: input, shape index: {}]
  %s13 = inlined_call_operand.vmem [shape: f32[32,32], index: 13, kind: input, shape index: {}]
  %s14 = inlined_call_operand.vmem [shape: f32[9,128,1], index: 14, kind: input, shape index: {}]
  %s15 = inlined_call_operand.vmem [shape: f32[2,128], index: 15, kind: input, shape index: {}]
  %s16 = inlined_call_operand.vmem [shape: f32[128,2], index: 16, kind: input, shape index: {}]
  %s17 = inlined_call_operand.vmem [shape: f32[128,32], index: 17, kind: output, shape index: {}]
  %s18 = sld [smem:[#allocation0]]
  $region78: #{tpu_custom_call.1} parent=0
    _
  %s20 = ssub.s32 1, %s18
  %s21 = scalar_select 0, %s20, %s18
  // Predicated region
  $region2: #{tpu_custom_call.1} parent=0 // pred_check
    _
  $region3: #{tpu_custom_call.1} parent=0 // pred_check_branch
    %23 = sbr.rel (0) target = $region5
  $region4: #{tpu_custom_call.1} parent=0 // pred_region
    _
  $region5: #{tpu_custom_call.1} parent=0 // pred_fallthru
    _
  // Predicated region
  $region6: #{tpu_custom_call.1} parent=0 // pred_check
    _
  $region7: #{tpu_custom_call.1} parent=0 // pred_check_branch
    %25 = sbr.rel (0) target = $region9
  $region8: #{tpu_custom_call.1} parent=0 // pred_region
    _
  $region9: #{tpu_custom_call.1} parent=0 // pred_fallthru
    _
  // Predicated region
  $region10: #{tpu_custom_call.1} parent=0 // pred_check
    _
  $region11: #{tpu_custom_call.1} parent=0 // pred_check_branch
    %27 = sbr.rel (0) target = $region13
  $region12: #{tpu_custom_call.1} parent=0 // pred_region
    _
  $region13: #{tpu_custom_call.1} parent=0 // pred_fallthru
    _
  // Predicated region
  $region14: #{tpu_custom_call.1} parent=0 // pred_check
    _
  $region15: #{tpu_custom_call.1} parent=0 // pred_check_branch
    %29 = sbr.rel (0) target = $region17
  $region16: #{tpu_custom_call.1} parent=0 // pred_region
    _
  $region17: #{tpu_custom_call.1} parent=0 // pred_fallthru
    _
  // Predicated region
  $region18: #{tpu_custom_call.1} parent=0 // pred_check
    _
  $region19: #{tpu_custom_call.1} parent=0 // pred_check_branch
    %31 = sbr.rel (0) target = $region21
  $region20: #{tpu_custom_call.1} parent=0 // pred_region
    _
  $region21: #{tpu_custom_call.1} parent=0 // pred_fallthru
    _
  // Predicated region
  $region22: #{tpu_custom_call.1} parent=0 // pred_check
    _
  $region23: #{tpu_custom_call.1} parent=0 // pred_check_branch
    %33 = sbr.rel (0) target = $region25
  $region24: #{tpu_custom_call.1} parent=0 // pred_region
    _
  $region25: #{tpu_custom_call.1} parent=0 // pred_fallthru
    _
  // Predicated region
  $region26: #{tpu_custom_call.1} parent=0 // pred_check
    _
  $region27: #{tpu_custom_call.1} parent=0 // pred_check_branch
    %35 = sbr.rel (0) target = $region29
  $region28: #{tpu_custom_call.1} parent=0 // pred_region
    _
  $region29: #{tpu_custom_call.1} parent=0 // pred_fallthru
    _
  // Predicated region
  $region30: #{tpu_custom_call.1} parent=0 // pred_check
    _
  $region31: #{tpu_custom_call.1} parent=0 // pred_check_branch
    %37 = sbr.rel (0) target = $region33
  $region32: #{tpu_custom_call.1} parent=0 // pred_region
    _
  $region33: #{tpu_custom_call.1} parent=0 // pred_fallthru
    _
  // Predicated region
  $region34: #{tpu_custom_call.1} parent=0 // pred_check
    _
  $region35: #{tpu_custom_call.1} parent=0 // pred_check_branch
    %39 = sbr.rel (0) target = $region37
  $region36: #{tpu_custom_call.1} parent=0 // pred_region
    _
  $region37: #{tpu_custom_call.1} parent=0 // pred_fallthru
    _
  // Predicated region
  $region38: #{tpu_custom_call.1} parent=0 // pred_check
    _
  $region39: #{tpu_custom_call.1} parent=0 // pred_check_branch
    %41 = sbr.rel (0) target = $region41
  $region40: #{tpu_custom_call.1} parent=0 // pred_region
    _
  $region41: #{tpu_custom_call.1} parent=0 // pred_fallthru
    _
  // Predicated region
  $region42: #{tpu_custom_call.1} parent=0 // pred_check
    _
  $region43: #{tpu_custom_call.1} parent=0 // pred_check_branch
    %43 = sbr.rel (0) target = $region45
  $region44: #{tpu_custom_call.1} parent=0 // pred_region
    _
  $region45: #{tpu_custom_call.1} parent=0 // pred_fallthru
    _
  // Predicated region
  $region46: #{tpu_custom_call.1} parent=0 // pred_check
    _
  $region47: #{tpu_custom_call.1} parent=0 // pred_check_branch
    %45 = sbr.rel (0) target = $region49
  $region48: #{tpu_custom_call.1} parent=0 // pred_region
    _
  $region49: #{tpu_custom_call.1} parent=0 // pred_fallthru
    _
  // Predicated region
  $region50: #{tpu_custom_call.1} parent=0 // pred_check
    _
  $region51: #{tpu_custom_call.1} parent=0 // pred_check_branch
    %47 = sbr.rel (0) target = $region53
  $region52: #{tpu_custom_call.1} parent=0 // pred_region
    _
  $region53: #{tpu_custom_call.1} parent=0 // pred_fallthru
    _
  // Predicated region
  $region54: #{tpu_custom_call.1} parent=0 // pred_check
    _
  $region55: #{tpu_custom_call.1} parent=0 // pred_check_branch
    %49 = sbr.rel (0) target = $region57
  $region56: #{tpu_custom_call.1} parent=0 // pred_region
    _
  $region57: #{tpu_custom_call.1} parent=0 // pred_fallthru
    _
  // Predicated region
  $region58: #{tpu_custom_call.1} parent=0 // pred_check
    _
  $region59: #{tpu_custom_call.1} parent=0 // pred_check_branch
    %51 = sbr.rel (0) target = $region61
  $region60: #{tpu_custom_call.1} parent=0 // pred_region
    _
  $region61: #{tpu_custom_call.1} parent=0 // pred_fallthru
    _
  // Predicated region
  $region62: #{tpu_custom_call.1} parent=0 // pred_check
    _
  $region63: #{tpu_custom_call.1} parent=0 // pred_check_branch
    %53 = sbr.rel (0) target = $region65
  $region64: #{tpu_custom_call.1} parent=0 // pred_region
    _
  $region65: #{tpu_custom_call.1} parent=0 // pred_fallthru
    _
  // Predicated region
  $region66: #{tpu_custom_call.1} parent=0 // pred_check
    _
  $region67: #{tpu_custom_call.1} parent=0 // pred_check_branch
    %55 = sbr.rel (0) target = $region69
  $region68: #{tpu_custom_call.1} parent=0 // pred_region
    _
  $region69: #{tpu_custom_call.1} parent=0 // pred_fallthru
    _
  %v57 = vld [vmem:[%s0] sm:$0xff]
  %v58 = vld [vmem:[%s0 + $0x8] sm:$0xff]
  %v59 = vld [vmem:[%s0 + $0x10] sm:$0xff]
  %v60 = vld [vmem:[%s0 + $0x18] sm:$0xff]
  %v61 = vld [vmem:[%s0 + $0x20] sm:$0xff]
  %v62 = vld [vmem:[%s0 + $0x28] sm:$0xff]
  %v63 = vld [vmem:[%s0 + $0x30] sm:$0xff]
  %v64 = vld [vmem:[%s0 + $0x38] sm:$0xff]
  %v65 = vld [vmem:[%s0 + $0x40] sm:$0xff]
  %v66 = vld [vmem:[%s0 + $0x48] sm:$0xff]
  %v67 = vld [vmem:[%s0 + $0x50] sm:$0xff]
  %v68 = vld [vmem:[%s0 + $0x58] sm:$0xff]
  %v69 = vld [vmem:[%s0 + $0x60] sm:$0xff]
  %v70 = vld [vmem:[%s0 + $0x68] sm:$0xff]
  %v71 = vld [vmem:[%s0 + $0x70] sm:$0xff]
  %v72 = vld [vmem:[%s0 + $0x78] sm:$0xff]
  %v73 = vld [vmem:[%s15] sm:$0x3]
  %v74 = vld [vmem:[%s16] sm:$0xff]
  %v75 = vld [vmem:[%s16 + $0x8] sm:$0xff]
  %v76 = vld [vmem:[%s16 + $0x10] sm:$0xff]
  %v77 = vld [vmem:[%s16 + $0x18] sm:$0xff]
  %v78 = vld [vmem:[%s16 + $0x20] sm:$0xff]
  %v79 = vld [vmem:[%s16 + $0x28] sm:$0xff]
  %v80 = vld [vmem:[%s16 + $0x30] sm:$0xff]
  %v81 = vld [vmem:[%s16 + $0x38] sm:$0xff]
  %v82 = vld [vmem:[%s16 + $0x40] sm:$0xff]
  %v83 = vld [vmem:[%s16 + $0x48] sm:$0xff]
  %v84 = vld [vmem:[%s16 + $0x50] sm:$0xff]
  %v85 = vld [vmem:[%s16 + $0x58] sm:$0xff]
  %v86 = vld [vmem:[%s16 + $0x60] sm:$0xff]
  %v87 = vld [vmem:[%s16 + $0x68] sm:$0xff]
  %v88 = vld [vmem:[%s16 + $0x70] sm:$0xff]
  %v89 = vld [vmem:[%s16 + $0x78] sm:$0xff]
  %v90 = vld [vmem:[%s12] sm:$0xff]
  %v91 = vld [vmem:[%s12 + $0x8] sm:$0xff]
  %v92 = vld [vmem:[%s12 + $0x10] sm:$0xff]
  %v93 = vld [vmem:[%s12 + $0x18] sm:$0xff]
  %v94 = vld [vmem:[%s13] sm:$0xff]
  %v95 = vld [vmem:[%s13 + $0x8] sm:$0xff]
  %v96 = vld [vmem:[%s13 + $0x10] sm:$0xff]
  %v97 = vld [vmem:[%s13 + $0x18] sm:$0xff]
  %v98 = vld [vmem:[%s2] sm:$0x1]
  %v99 = vld [vmem:[%s3] sm:$0x1]
  %100 = vmatpush.msra.mxu0 %v72
  %101 = vmatpush.msra.mxu0 %v71
  %102 = vmatpush.msra.mxu0 %v70
  %103 = vmatpush.msra.mxu0 %v69
  %104 = vmatpush.msra.mxu0 %v68
  %105 = vmatpush.msra.mxu0 %v67
  %106 = vmatpush.msra.mxu0 %v66
  %107 = vmatpush.msra.mxu0 %v65
  %108 = vmatpush.msra.mxu0 %v64
  %109 = vmatpush.msra.mxu0 %v63
  %110 = vmatpush.msra.mxu0 %v62
  %111 = vmatpush.msra.mxu0 %v61
  %112 = vmatpush.msra.mxu0 %v60
  %113 = vmatpush.msra.mxu0 %v59
  %114 = vmatpush.msra.mxu0 %v58
  %115 = vmatpush.msra.mxu0 %v57
  %116 = vmatmul.f32.gmra.mxu0 %v73
  %v117 = vpop.f32.mrf.mxu0
  %v118 = vadd.f32 0.0, %v117
  %119 = vdwg.mxu0
  %v120 = vmul.f32 %v57, %v57
  %v121 = vmul.f32 %v58, %v58
  %v122 = vmul.f32 %v59, %v59
  %v123 = vmul.f32 %v60, %v60
  %v124 = vmul.f32 %v61, %v61
  %v125 = vmul.f32 %v62, %v62
  %v126 = vmul.f32 %v63, %v63
  %v127 = vmul.f32 %v64, %v64
  %v128 = vmul.f32 %v65, %v65
  %v129 = vmul.f32 %v66, %v66
  %v130 = vmul.f32 %v67, %v67
  %v131 = vmul.f32 %v68, %v68
  %v132 = vmul.f32 %v69, %v69
  %v133 = vmul.f32 %v70, %v70
  %v134 = vmul.f32 %v71, %v71
  %v135 = vmul.f32 %v72, %v72
  %136 = vmatpush.msra.mxu0 %v135
  %137 = vmatpush.msra.mxu0 %v134
  %138 = vmatpush.msra.mxu0 %v133
  %139 = vmatpush.msra.mxu0 %v132
  %140 = vmatpush.msra.mxu0 %v131
  %141 = vmatpush.msra.mxu0 %v130
  %142 = vmatpush.msra.mxu0 %v129
  %143 = vmatpush.msra.mxu0 %v128
  %144 = vmatpush.msra.mxu0 %v127
  %145 = vmatpush.msra.mxu0 %v126
  %146 = vmatpush.msra.mxu0 %v125
  %147 = vmatpush.msra.mxu0 %v124
  %148 = vmatpush.msra.mxu0 %v123
  %149 = vmatpush.msra.mxu0 %v122
  %150 = vmatpush.msra.mxu0 %v121
  %151 = vmatpush.msra.mxu0 %v120
  %152 = vmatmul.f32.gmra.mxu0 %v73
  %v153 = vpop.f32.mrf.mxu0
  %v154 = vadd.f32 0.0, %v153
  %155 = vdwg.mxu0
  %vm156 = vcmask 261120
  %v158 = vsel %vm156, %v118, 0
  %160 = vmatpush.msra.mxu0 0.0
  %161 = vmatpush.msra.mxu0 0.0
  %162 = vmatpush.msra.mxu0 0.0
  %163 = vmatpush.msra.mxu0 0.0
  %164 = vmatpush.msra.mxu0 0.0
  %165 = vmatpush.msra.mxu0 0.0
  %166 = vmatpush.msra.mxu0 0.0
  %167 = vmatpush.msra.mxu0 0.0
  %168 = vmatpush.msra.mxu0 0.0
  %169 = vmatpush.msra.mxu0 0.0
  %170 = vmatpush.msra.mxu0 0.0
  %171 = vmatpush.msra.mxu0 0.0
  %172 = vmatpush.msra.mxu0 %v93
  %173 = vmatpush.msra.mxu0 %v92
  %174 = vmatpush.msra.mxu0 %v91
  %175 = vmatpush.msra.mxu0 %v90
  %176 = vmatmul.f32.gmra.mxu0 %v158
  %v177 = vpop.f32.mrf.mxu0
  %v178 = vadd.f32 0.0, %v177
  %179 = vdwg.mxu0
  %v180 = vmul.f32 %v178, 0.015625
  %v182 = vsel %vm156, %v154, 0
  %184 = vmatpush.msra.mxu0 0.0
  %185 = vmatpush.msra.mxu0 0.0
  %186 = vmatpush.msra.mxu0 0.0
  %187 = vmatpush.msra.mxu0 0.0
  %188 = vmatpush.msra.mxu0 0.0
  %189 = vmatpush.msra.mxu0 0.0
  %190 = vmatpush.msra.mxu0 0.0
  %191 = vmatpush.msra.mxu0 0.0
  %192 = vmatpush.msra.mxu0 0.0
  %193 = vmatpush.msra.mxu0 0.0
  %194 = vmatpush.msra.mxu0 0.0
  %195 = vmatpush.msra.mxu0 0.0
  %196 = vmatpush.msra.mxu0 %v93
  %197 = vmatpush.msra.mxu0 %v92
  %198 = vmatpush.msra.mxu0 %v91
  %199 = vmatpush.msra.mxu0 %v90
  %200 = vmatmul.f32.gmra.mxu0 %v182
  %v201 = vpop.f32.mrf.mxu0
  %v202 = vadd.f32 0.0, %v201
  %203 = vdwg.mxu0
  %v204 = vmul.f32 %v202, 0.015625
  %v205 = vmul.f32 %v180, %v180
  %v206 = vsub.f32 %v204, %v205
  %v207 = vadd.f32 %v206, 1e-05
  %v208 = vrsqrt.pop %v207
  %v209 = vmul.f32 %v208, %v207
  %v210 = vmul.f32 %v209, %v208
  %v211 = vmul.f32 0.5, %v210
  %v212 = vsub.f32 1.5, %v211
  %v213 = vmul.f32 %v208, %v212
  %vm214 = vweird.f32 %v207
  %vm215 = vweird.f32 %v208
  %vm216 = vmor %vm214, %vm215
  %v217 = vsel %vm216, %v208, %v213
  %v219 = vsel %vm156, %v180, 0
  %221 = vmatpush.msra.mxu0 0.0
  %222 = vmatpush.msra.mxu0 0.0
  %223 = vmatpush.msra.mxu0 0.0
  %224 = vmatpush.msra.mxu0 0.0
  %225 = vmatpush.msra.mxu0 0.0
  %226 = vmatpush.msra.mxu0 0.0
  %227 = vmatpush.msra.mxu0 0.0
  %228 = vmatpush.msra.mxu0 0.0
  %229 = vmatpush.msra.mxu0 0.0
  %230 = vmatpush.msra.mxu0 0.0
  %231 = vmatpush.msra.mxu0 0.0
  %232 = vmatpush.msra.mxu0 0.0
  %233 = vmatpush.msra.mxu0 %v97
  %234 = vmatpush.msra.mxu0 %v96
  %235 = vmatpush.msra.mxu0 %v95
  %236 = vmatpush.msra.mxu0 %v94
  %237 = vmatmul.f32.gmra.mxu0 %v219
  %v238 = vpop.f32.mrf.mxu0
  %v239 = vadd.f32 0.0, %v238
  %240 = vdwg.mxu0
  %vm241 = vcmask 15360
  %v243 = vsel %vm241, %v74, 0
  %v246 = vsel %vm241, %v75, 0
  %v249 = vsel %vm241, %v76, 0
  %v252 = vsel %vm241, %v77, 0
  %v255 = vsel %vm241, %v78, 0
  %v258 = vsel %vm241, %v79, 0
  %v261 = vsel %vm241, %v80, 0
  %v264 = vsel %vm241, %v81, 0
  %v267 = vsel %vm241, %v82, 0
  %v270 = vsel %vm241, %v83, 0
  %v273 = vsel %vm241, %v84, 0
  %v276 = vsel %vm241, %v85, 0
  %v279 = vsel %vm241, %v86, 0
  %v282 = vsel %vm241, %v87, 0
  %v285 = vsel %vm241, %v88, 0
  %v288 = vsel %vm241, %v89, 0
  %vm290 = vcmask 1041408
  %v292 = vsel %vm290, %v239, 0
  %294 = vmatpush.msra.mxu0 0.0
  %295 = vmatpush.msra.mxu0 0.0
  %296 = vmatpush.msra.mxu0 0.0
  %297 = vmatpush.msra.mxu0 0.0
  %298 = vmatpush.msra.mxu0 0.0
  %299 = vmatpush.msra.mxu0 0.0
  %300 = vmatpush.msra.mxu0 0.0
  %301 = vmatpush.msra.mxu0 0.0
  %302 = vmatpush.msra.mxu0 0.0
  %303 = vmatpush.msra.mxu0 0.0
  %304 = vmatpush.msra.mxu0 0.0
  %305 = vmatpush.msra.mxu0 0.0
  %306 = vmatpush.msra.mxu0 0.0
  %307 = vmatpush.msra.mxu0 0.0
  %308 = vmatpush.msra.mxu0 0.0
  %309 = vmatpush.msra.mxu0 %v292
  %310 = vmatmul.f32.gmra.mxu0 %v243
  %v311 = vpop.f32.mrf.mxu0
  %v312 = vadd.f32 0.0, %v311
  %313 = vmatmul.f32.gmra.mxu0 %v246
  %v314 = vpop.f32.mrf.mxu0
  %v315 = vadd.f32 0.0, %v314
  %316 = vmatmul.f32.gmra.mxu0 %v249
  %v317 = vpop.f32.mrf.mxu0
  %v318 = vadd.f32 0.0, %v317
  %319 = vmatmul.f32.gmra.mxu0 %v252
  %v320 = vpop.f32.mrf.mxu0
  %v321 = vadd.f32 0.0, %v320
  %322 = vmatmul.f32.gmra.mxu0 %v255
  %v323 = vpop.f32.mrf.mxu0
  %v324 = vadd.f32 0.0, %v323
  %325 = vmatmul.f32.gmra.mxu0 %v258
  %v326 = vpop.f32.mrf.mxu0
  %v327 = vadd.f32 0.0, %v326
  %328 = vmatmul.f32.gmra.mxu0 %v261
  %v329 = vpop.f32.mrf.mxu0
  %v330 = vadd.f32 0.0, %v329
  %331 = vmatmul.f32.gmra.mxu0 %v264
  %v332 = vpop.f32.mrf.mxu0
  %v333 = vadd.f32 0.0, %v332
  %334 = vmatmul.f32.gmra.mxu0 %v267
  %v335 = vpop.f32.mrf.mxu0
  %v336 = vadd.f32 0.0, %v335
  %337 = vmatmul.f32.gmra.mxu0 %v270
  %v338 = vpop.f32.mrf.mxu0
  %v339 = vadd.f32 0.0, %v338
  %340 = vmatmul.f32.gmra.mxu0 %v273
  %v341 = vpop.f32.mrf.mxu0
  %v342 = vadd.f32 0.0, %v341
  %343 = vmatmul.f32.gmra.mxu0 %v276
  %v344 = vpop.f32.mrf.mxu0
  %v345 = vadd.f32 0.0, %v344
  %346 = vmatmul.f32.gmra.mxu0 %v279
  %v347 = vpop.f32.mrf.mxu0
  %v348 = vadd.f32 0.0, %v347
  %349 = vmatmul.f32.gmra.mxu0 %v282
  %v350 = vpop.f32.mrf.mxu0
  %v351 = vadd.f32 0.0, %v350
  %352 = vmatmul.f32.gmra.mxu0 %v285
  %v353 = vpop.f32.mrf.mxu0
  %v354 = vadd.f32 0.0, %v353
  %355 = vmatmul.f32.gmra.mxu0 %v288
  %v356 = vpop.f32.mrf.mxu0
  %v357 = vadd.f32 0.0, %v356
  %358 = vdwg.mxu0
  %v360 = vsel %vm156, %v217, 0
  %362 = vmatpush.msra.mxu0 0.0
  %363 = vmatpush.msra.mxu0 0.0
  %364 = vmatpush.msra.mxu0 0.0
  %365 = vmatpush.msra.mxu0 0.0
  %366 = vmatpush.msra.mxu0 0.0
  %367 = vmatpush.msra.mxu0 0.0
  %368 = vmatpush.msra.mxu0 0.0
  %369 = vmatpush.msra.mxu0 0.0
  %370 = vmatpush.msra.mxu0 0.0
  %371 = vmatpush.msra.mxu0 0.0
  %372 = vmatpush.msra.mxu0 0.0
  %373 = vmatpush.msra.mxu0 0.0
  %374 = vmatpush.msra.mxu0 %v97
  %375 = vmatpush.msra.mxu0 %v96
  %376 = vmatpush.msra.mxu0 %v95
  %377 = vmatpush.msra.mxu0 %v94
  %378 = vmatmul.f32.gmra.mxu0 %v360
  %v379 = vpop.f32.mrf.mxu0
  %v380 = vadd.f32 0.0, %v379
  %381 = vdwg.mxu0
  %v383 = vsel %vm290, %v380, 0
  %385 = vmatpush.msra.mxu0 0.0
  %386 = vmatpush.msra.mxu0 0.0
  %387 = vmatpush.msra.mxu0 0.0
  %388 = vmatpush.msra.mxu0 0.0
  %389 = vmatpush.msra.mxu0 0.0
  %390 = vmatpush.msra.mxu0 0.0
  %391 = vmatpush.msra.mxu0 0.0
  %392 = vmatpush.msra.mxu0 0.0
  %393 = vmatpush.msra.mxu0 0.0
  %394 = vmatpush.msra.mxu0 0.0
  %395 = vmatpush.msra.mxu0 0.0
  %396 = vmatpush.msra.mxu0 0.0
  %397 = vmatpush.msra.mxu0 0.0
  %398 = vmatpush.msra.mxu0 0.0
  %399 = vmatpush.msra.mxu0 0.0
  %400 = vmatpush.msra.mxu0 %v383
  %401 = vmatmul.f32.gmra.mxu0 %v243
  %v402 = vpop.f32.mrf.mxu0
  %v403 = vadd.f32 0.0, %v402
  %404 = vmatmul.f32.gmra.mxu0 %v246
  %v405 = vpop.f32.mrf.mxu0
  %v406 = vadd.f32 0.0, %v405
  %407 = vmatmul.f32.gmra.mxu0 %v249
  %v408 = vpop.f32.mrf.mxu0
  %v409 = vadd.f32 0.0, %v408
  %410 = vmatmul.f32.gmra.mxu0 %v252
  %v411 = vpop.f32.mrf.mxu0
  %v412 = vadd.f32 0.0, %v411
  %413 = vmatmul.f32.gmra.mxu0 %v255
  %v414 = vpop.f32.mrf.mxu0
  %v415 = vadd.f32 0.0, %v414
  %416 = vmatmul.f32.gmra.mxu0 %v258
  %v417 = vpop.f32.mrf.mxu0
  %v418 = vadd.f32 0.0, %v417
  %419 = vmatmul.f32.gmra.mxu0 %v261
  %v420 = vpop.f32.mrf.mxu0
  %v421 = vadd.f32 0.0, %v420
  %422 = vmatmul.f32.gmra.mxu0 %v264
  %v423 = vpop.f32.mrf.mxu0
  %v424 = vadd.f32 0.0, %v423
  %425 = vmatmul.f32.gmra.mxu0 %v267
  %v426 = vpop.f32.mrf.mxu0
  %v427 = vadd.f32 0.0, %v426
  %428 = vmatmul.f32.gmra.mxu0 %v270
  %v429 = vpop.f32.mrf.mxu0
  %v430 = vadd.f32 0.0, %v429
  %431 = vmatmul.f32.gmra.mxu0 %v273
  %v432 = vpop.f32.mrf.mxu0
  %v433 = vadd.f32 0.0, %v432
  %434 = vmatmul.f32.gmra.mxu0 %v276
  %v435 = vpop.f32.mrf.mxu0
  %v436 = vadd.f32 0.0, %v435
  %437 = vmatmul.f32.gmra.mxu0 %v279
  %v438 = vpop.f32.mrf.mxu0
  %v439 = vadd.f32 0.0, %v438
  %440 = vmatmul.f32.gmra.mxu0 %v282
  %v441 = vpop.f32.mrf.mxu0
  %v442 = vadd.f32 0.0, %v441
  %443 = vmatmul.f32.gmra.mxu0 %v285
  %v444 = vpop.f32.mrf.mxu0
  %v445 = vadd.f32 0.0, %v444
  %446 = vmatmul.f32.gmra.mxu0 %v288
  %v447 = vpop.f32.mrf.mxu0
  %v448 = vadd.f32 0.0, %v447
  %449 = vdwg.mxu0
  %v450 = vsub.f32 %v57, %v312
  %v451 = vsub.f32 %v58, %v315
  %v452 = vsub.f32 %v59, %v318
  %v453 = vsub.f32 %v60, %v321
  %v454 = vsub.f32 %v61, %v324
  %v455 = vsub.f32 %v62, %v327
  %v456 = vsub.f32 %v63, %v330
  %v457 = vsub.f32 %v64, %v333
  %v458 = vsub.f32 %v65, %v336
  %v459 = vsub.f32 %v66, %v339
  %v460 = vsub.f32 %v67, %v342
  %v461 = vsub.f32 %v68, %v345
  %v462 = vsub.f32 %v69, %v348
  %v463 = vsub.f32 %v70, %v351
  %v464 = vsub.f32 %v71, %v354
  %v465 = vsub.f32 %v72, %v357
  %v466 = vmul.f32 %v450, %v403
  %v467 = vmul.f32 %v451, %v406
  %v468 = vmul.f32 %v452, %v409
  %v469 = vmul.f32 %v453, %v412
  %v470 = vmul.f32 %v454, %v415
  %v471 = vmul.f32 %v455, %v418
  %v472 = vmul.f32 %v456, %v421
  %v473 = vmul.f32 %v457, %v424
  %v474 = vmul.f32 %v458, %v427
  %v475 = vmul.f32 %v459, %v430
  %v476 = vmul.f32 %v460, %v433
  %v477 = vmul.f32 %v461, %v436
  %v478 = vmul.f32 %v462, %v439
  %v479 = vmul.f32 %v463, %v442
  %v480 = vmul.f32 %v464, %v445
  %v481 = vmul.f32 %v465, %v448
  %v483 = vperm.slane %v98, 0
  %v485 = vmul.f32 %v466, %v483
  %v486 = vmul.f32 %v467, %v483
  %v487 = vmul.f32 %v468, %v483
  %v488 = vmul.f32 %v469, %v483
  %v489 = vmul.f32 %v470, %v483
  %v490 = vmul.f32 %v471, %v483
  %v491 = vmul.f32 %v472, %v483
  %v492 = vmul.f32 %v473, %v483
  %v493 = vmul.f32 %v474, %v483
  %v494 = vmul.f32 %v475, %v483
  %v495 = vmul.f32 %v476, %v483
  %v496 = vmul.f32 %v477, %v483
  %v497 = vmul.f32 %v478, %v483
  %v498 = vmul.f32 %v479, %v483
  %v499 = vmul.f32 %v480, %v483
  %v500 = vmul.f32 %v481, %v483
  %v502 = vperm.slane %v99, 0
  %v504 = vadd.f32 %v485, %v502
  %v505 = vadd.f32 %v486, %v502
  %v506 = vadd.f32 %v487, %v502
  %v507 = vadd.f32 %v488, %v502
  %v508 = vadd.f32 %v489, %v502
  %v509 = vadd.f32 %v490, %v502
  %v510 = vadd.f32 %v491, %v502
  %v511 = vadd.f32 %v492, %v502
  %v512 = vadd.f32 %v493, %v502
  %v513 = vadd.f32 %v494, %v502
  %v514 = vadd.f32 %v495, %v502
  %v515 = vadd.f32 %v496, %v502
  %v516 = vadd.f32 %v497, %v502
  %v517 = vadd.f32 %v498, %v502
  %v518 = vadd.f32 %v499, %v502
  %v519 = vadd.f32 %v500, %v502
  %v520 = vxor.u32 %v504, 2147483648
  %v521 = vxor.u32 %v505, 2147483648
  %v522 = vxor.u32 %v506, 2147483648
  %v523 = vxor.u32 %v507, 2147483648
  %v524 = vxor.u32 %v508, 2147483648
  %v525 = vxor.u32 %v509, 2147483648
  %v526 = vxor.u32 %v510, 2147483648
  %v527 = vxor.u32 %v511, 2147483648
  %v528 = vxor.u32 %v512, 2147483648
  %v529 = vxor.u32 %v513, 2147483648
  %v530 = vxor.u32 %v514, 2147483648
  %v531 = vxor.u32 %v515, 2147483648
  %v532 = vxor.u32 %v516, 2147483648
  %v533 = vxor.u32 %v517, 2147483648
  %v534 = vxor.u32 %v518, 2147483648
  %v535 = vxor.u32 %v519, 2147483648
  %v536 = vmul.f32 %v520, 1.442695
  %v537 = vpow.pop %v536
  %v538 = vmul.f32 %v521, 1.442695
  %v539 = vpow.pop %v538
  %v540 = vmul.f32 %v522, 1.442695
  %v541 = vpow.pop %v540
  %v542 = vmul.f32 %v523, 1.442695
  %v543 = vpow.pop %v542
  %v544 = vmul.f32 %v524, 1.442695
  %v545 = vpow.pop %v544
  %v546 = vmul.f32 %v525, 1.442695
  %v547 = vpow.pop %v546
  %v548 = vmul.f32 %v526, 1.442695
  %v549 = vpow.pop %v548
  %v550 = vmul.f32 %v527, 1.442695
  %v551 = vpow.pop %v550
  %v552 = vmul.f32 %v528, 1.442695
  %v553 = vpow.pop %v552
  %v554 = vmul.f32 %v529, 1.442695
  %v555 = vpow.pop %v554
  %v556 = vmul.f32 %v530, 1.442695
  %v557 = vpow.pop %v556
  %v558 = vmul.f32 %v531, 1.442695
  %v559 = vpow.pop %v558
  %v560 = vmul.f32 %v532, 1.442695
  %v561 = vpow.pop %v560
  %v562 = vmul.f32 %v533, 1.442695
  %v563 = vpow.pop %v562
  %v564 = vmul.f32 %v534, 1.442695
  %v565 = vpow.pop %v564
  %v566 = vmul.f32 %v535, 1.442695
  %v567 = vpow.pop %v566
  %v568 = vadd.f32 %v537, 1.0
  %v569 = vadd.f32 %v539, 1.0
  %v570 = vadd.f32 %v541, 1.0
  %v571 = vadd.f32 %v543, 1.0
  %v572 = vadd.f32 %v545, 1.0
  %v573 = vadd.f32 %v547, 1.0
  %v574 = vadd.f32 %v549, 1.0
  %v575 = vadd.f32 %v551, 1.0
  %v576 = vadd.f32 %v553, 1.0
  %v577 = vadd.f32 %v555, 1.0
  %v578 = vadd.f32 %v557, 1.0
  %v579 = vadd.f32 %v559, 1.0
  %v580 = vadd.f32 %v561, 1.0
  %v581 = vadd.f32 %v563, 1.0
  %v582 = vadd.f32 %v565, 1.0
  %v583 = vadd.f32 %v567, 1.0
  %v584 = vrcp.pop %v568
  %v585 = vmul.f32 %v568, %v584
  %v586 = vsub.f32 1.0, %v585
  %v587 = vmul.f32 %v584, %v586
  %v588 = vadd.f32 %v584, %v587
  %vm589 = vweird.f32 %v568
  %vm590 = vweird.f32 %v584
  %vm591 = vmor %vm589, %vm590
  %v592 = vsel %vm591, %v584, %v588
  %v593 = vand.u32 2147483647, %v568
  %vm594 = vcmp.eq.f32.partialorder %v593, 8.507059e+37
  %v595 = vand.u32 %v568, 2147483648
  %v596 = vor.u32 1.1754944e-38, %v595
  %v597 = vsel %vm594, %v596, %v592
  %v598 = vmul.f32 1.0, %v597
  %v599 = vrcp.pop %v569
  %v600 = vmul.f32 %v569, %v599
  %v601 = vsub.f32 1.0, %v600
  %v602 = vmul.f32 %v599, %v601
  %v603 = vadd.f32 %v599, %v602
  %vm604 = vweird.f32 %v569
  %vm605 = vweird.f32 %v599
  %vm606 = vmor %vm604, %vm605
  %v607 = vsel %vm606, %v599, %v603
  %v608 = vand.u32 2147483647, %v569
  %vm609 = vcmp.eq.f32.partialorder %v608, 8.507059e+37
  %v610 = vand.u32 %v569, 2147483648
  %v611 = vor.u32 1.1754944e-38, %v610
  %v612 = vsel %vm609, %v611, %v607
  %v613 = vmul.f32 1.0, %v612
  %v614 = vrcp.pop %v570
  %v615 = vmul.f32 %v570, %v614
  %v616 = vsub.f32 1.0, %v615
  %v617 = vmul.f32 %v614, %v616
  %v618 = vadd.f32 %v614, %v617
  %vm619 = vweird.f32 %v570
  %vm620 = vweird.f32 %v614
  %vm621 = vmor %vm619, %vm620
  %v622 = vsel %vm621, %v614, %v618
  %v623 = vand.u32 2147483647, %v570
  %vm624 = vcmp.eq.f32.partialorder %v623, 8.507059e+37
  %v625 = vand.u32 %v570, 2147483648
  %v626 = vor.u32 1.1754944e-38, %v625
  %v627 = vsel %vm624, %v626, %v622
  %v628 = vmul.f32 1.0, %v627
  %v629 = vrcp.pop %v571
  %v630 = vmul.f32 %v571, %v629
  %v631 = vsub.f32 1.0, %v630
  %v632 = vmul.f32 %v629, %v631
  %v633 = vadd.f32 %v629, %v632
  %vm634 = vweird.f32 %v571
  %vm635 = vweird.f32 %v629
  %vm636 = vmor %vm634, %vm635
  %v637 = vsel %vm636, %v629, %v633
  %v638 = vand.u32 2147483647, %v571
  %vm639 = vcmp.eq.f32.partialorder %v638, 8.507059e+37
  %v640 = vand.u32 %v571, 2147483648
  %v641 = vor.u32 1.1754944e-38, %v640
  %v642 = vsel %vm639, %v641, %v637
  %v643 = vmul.f32 1.0, %v642
  %v644 = vrcp.pop %v572
  %v645 = vmul.f32 %v572, %v644
  %v646 = vsub.f32 1.0, %v645
  %v647 = vmul.f32 %v644, %v646
  %v648 = vadd.f32 %v644, %v647
  %vm649 = vweird.f32 %v572
  %vm650 = vweird.f32 %v644
  %vm651 = vmor %vm649, %vm650
  %v652 = vsel %vm651, %v644, %v648
  %v653 = vand.u32 2147483647, %v572
  %vm654 = vcmp.eq.f32.partialorder %v653, 8.507059e+37
  %v655 = vand.u32 %v572, 2147483648
  %v656 = vor.u32 1.1754944e-38, %v655
  %v657 = vsel %vm654, %v656, %v652
  %v658 = vmul.f32 1.0, %v657
  %v659 = vrcp.pop %v573
  %v660 = vmul.f32 %v573, %v659
  %v661 = vsub.f32 1.0, %v660
  %v662 = vmul.f32 %v659, %v661
  %v663 = vadd.f32 %v659, %v662
  %vm664 = vweird.f32 %v573
  %vm665 = vweird.f32 %v659
  %vm666 = vmor %vm664, %vm665
  %v667 = vsel %vm666, %v659, %v663
  %v668 = vand.u32 2147483647, %v573
  %vm669 = vcmp.eq.f32.partialorder %v668, 8.507059e+37
  %v670 = vand.u32 %v573, 2147483648
  %v671 = vor.u32 1.1754944e-38, %v670
  %v672 = vsel %vm669, %v671, %v667
  %v673 = vmul.f32 1.0, %v672
  %v674 = vrcp.pop %v574
  %v675 = vmul.f32 %v574, %v674
  %v676 = vsub.f32 1.0, %v675
  %v677 = vmul.f32 %v674, %v676
  %v678 = vadd.f32 %v674, %v677
  %vm679 = vweird.f32 %v574
  %vm680 = vweird.f32 %v674
  %vm681 = vmor %vm679, %vm680
  %v682 = vsel %vm681, %v674, %v678
  %v683 = vand.u32 2147483647, %v574
  %vm684 = vcmp.eq.f32.partialorder %v683, 8.507059e+37
  %v685 = vand.u32 %v574, 2147483648
  %v686 = vor.u32 1.1754944e-38, %v685
  %v687 = vsel %vm684, %v686, %v682
  %v688 = vmul.f32 1.0, %v687
  %v689 = vrcp.pop %v575
  %v690 = vmul.f32 %v575, %v689
  %v691 = vsub.f32 1.0, %v690
  %v692 = vmul.f32 %v689, %v691
  %v693 = vadd.f32 %v689, %v692
  %vm694 = vweird.f32 %v575
  %vm695 = vweird.f32 %v689
  %vm696 = vmor %vm694, %vm695
  %v697 = vsel %vm696, %v689, %v693
  %v698 = vand.u32 2147483647, %v575
  %vm699 = vcmp.eq.f32.partialorder %v698, 8.507059e+37
  %v700 = vand.u32 %v575, 2147483648
  %v701 = vor.u32 1.1754944e-38, %v700
  %v702 = vsel %vm699, %v701, %v697
  %v703 = vmul.f32 1.0, %v702
  %v704 = vrcp.pop %v576
  %v705 = vmul.f32 %v576, %v704
  %v706 = vsub.f32 1.0, %v705
  %v707 = vmul.f32 %v704, %v706
  %v708 = vadd.f32 %v704, %v707
  %vm709 = vweird.f32 %v576
  %vm710 = vweird.f32 %v704
  %vm711 = vmor %vm709, %vm710
  %v712 = vsel %vm711, %v704, %v708
  %v713 = vand.u32 2147483647, %v576
  %vm714 = vcmp.eq.f32.partialorder %v713, 8.507059e+37
  %v715 = vand.u32 %v576, 2147483648
  %v716 = vor.u32 1.1754944e-38, %v715
  %v717 = vsel %vm714, %v716, %v712
  %v718 = vmul.f32 1.0, %v717
  %v719 = vrcp.pop %v577
  %v720 = vmul.f32 %v577, %v719
  %v721 = vsub.f32 1.0, %v720
  %v722 = vmul.f32 %v719, %v721
  %v723 = vadd.f32 %v719, %v722
  %vm724 = vweird.f32 %v577
  %vm725 = vweird.f32 %v719
  %vm726 = vmor %vm724, %vm725
  %v727 = vsel %vm726, %v719, %v723
  %v728 = vand.u32 2147483647, %v577
  %vm729 = vcmp.eq.f32.partialorder %v728, 8.507059e+37
  %v730 = vand.u32 %v577, 2147483648
  %v731 = vor.u32 1.1754944e-38, %v730
  %v732 = vsel %vm729, %v731, %v727
  %v733 = vmul.f32 1.0, %v732
  %v734 = vrcp.pop %v578
  %v735 = vmul.f32 %v578, %v734
  %v736 = vsub.f32 1.0, %v735
  %v737 = vmul.f32 %v734, %v736
  %v738 = vadd.f32 %v734, %v737
  %vm739 = vweird.f32 %v578
  %vm740 = vweird.f32 %v734
  %vm741 = vmor %vm739, %vm740
  %v742 = vsel %vm741, %v734, %v738
  %v743 = vand.u32 2147483647, %v578
  %vm744 = vcmp.eq.f32.partialorder %v743, 8.507059e+37
  %v745 = vand.u32 %v578, 2147483648
  %v746 = vor.u32 1.1754944e-38, %v745
  %v747 = vsel %vm744, %v746, %v742
  %v748 = vmul.f32 1.0, %v747
  %v749 = vrcp.pop %v579
  %v750 = vmul.f32 %v579, %v749
  %v751 = vsub.f32 1.0, %v750
  %v752 = vmul.f32 %v749, %v751
  %v753 = vadd.f32 %v749, %v752
  %vm754 = vweird.f32 %v579
  %vm755 = vweird.f32 %v749
  %vm756 = vmor %vm754, %vm755
  %v757 = vsel %vm756, %v749, %v753
  %v758 = vand.u32 2147483647, %v579
  %vm759 = vcmp.eq.f32.partialorder %v758, 8.507059e+37
  %v760 = vand.u32 %v579, 2147483648
  %v761 = vor.u32 1.1754944e-38, %v760
  %v762 = vsel %vm759, %v761, %v757
  %v763 = vmul.f32 1.0, %v762
  %v764 = vrcp.pop %v580
  %v765 = vmul.f32 %v580, %v764
  %v766 = vsub.f32 1.0, %v765
  %v767 = vmul.f32 %v764, %v766
  %v768 = vadd.f32 %v764, %v767
  %vm769 = vweird.f32 %v580
  %vm770 = vweird.f32 %v764
  %vm771 = vmor %vm769, %vm770
  %v772 = vsel %vm771, %v764, %v768
  %v773 = vand.u32 2147483647, %v580
  %vm774 = vcmp.eq.f32.partialorder %v773, 8.507059e+37
  %v775 = vand.u32 %v580, 2147483648
  %v776 = vor.u32 1.1754944e-38, %v775
  %v777 = vsel %vm774, %v776, %v772
  %v778 = vmul.f32 1.0, %v777
  %v779 = vrcp.pop %v581
  %v780 = vmul.f32 %v581, %v779
  %v781 = vsub.f32 1.0, %v780
  %v782 = vmul.f32 %v779, %v781
  %v783 = vadd.f32 %v779, %v782
  %vm784 = vweird.f32 %v581
  %vm785 = vweird.f32 %v779
  %vm786 = vmor %vm784, %vm785
  %v787 = vsel %vm786, %v779, %v783
  %v788 = vand.u32 2147483647, %v581
  %vm789 = vcmp.eq.f32.partialorder %v788, 8.507059e+37
  %v790 = vand.u32 %v581, 2147483648
  %v791 = vor.u32 1.1754944e-38, %v790
  %v792 = vsel %vm789, %v791, %v787
  %v793 = vmul.f32 1.0, %v792
  %v794 = vrcp.pop %v582
  %v795 = vmul.f32 %v582, %v794
  %v796 = vsub.f32 1.0, %v795
  %v797 = vmul.f32 %v794, %v796
  %v798 = vadd.f32 %v794, %v797
  %vm799 = vweird.f32 %v582
  %vm800 = vweird.f32 %v794
  %vm801 = vmor %vm799, %vm800
  %v802 = vsel %vm801, %v794, %v798
  %v803 = vand.u32 2147483647, %v582
  %vm804 = vcmp.eq.f32.partialorder %v803, 8.507059e+37
  %v805 = vand.u32 %v582, 2147483648
  %v806 = vor.u32 1.1754944e-38, %v805
  %v807 = vsel %vm804, %v806, %v802
  %v808 = vmul.f32 1.0, %v807
  %v809 = vrcp.pop %v583
  %v810 = vmul.f32 %v583, %v809
  %v811 = vsub.f32 1.0, %v810
  %v812 = vmul.f32 %v809, %v811
  %v813 = vadd.f32 %v809, %v812
  %vm814 = vweird.f32 %v583
  %vm815 = vweird.f32 %v809
  %vm816 = vmor %vm814, %vm815
  %v817 = vsel %vm816, %v809, %v813
  %v818 = vand.u32 2147483647, %v583
  %vm819 = vcmp.eq.f32.partialorder %v818, 8.507059e+37
  %v820 = vand.u32 %v583, 2147483648
  %v821 = vor.u32 1.1754944e-38, %v820
  %v822 = vsel %vm819, %v821, %v817
  %v823 = vmul.f32 1.0, %v822
  %v824 = vmul.f32 %v504, %v598
  %v825 = vmul.f32 %v505, %v613
  %v826 = vmul.f32 %v506, %v628
  %v827 = vmul.f32 %v507, %v643
  %v828 = vmul.f32 %v508, %v658
  %v829 = vmul.f32 %v509, %v673
  %v830 = vmul.f32 %v510, %v688
  %v831 = vmul.f32 %v511, %v703
  %v832 = vmul.f32 %v512, %v718
  %v833 = vmul.f32 %v513, %v733
  %v834 = vmul.f32 %v514, %v748
  %v835 = vmul.f32 %v515, %v763
  %v836 = vmul.f32 %v516, %v778
  %v837 = vmul.f32 %v517, %v793
  %v838 = vmul.f32 %v518, %v808
  %v839 = vmul.f32 %v519, %v823
  %v840 = vld [vmem:[%s5] sm:$0x1]
  %v841 = vrot.slane %v824, 7
  %v842 = vrot.slane %v825, 7
  %v843 = vrot.slane %v826, 7
  %v844 = vrot.slane %v827, 7
  %v845 = vrot.slane %v828, 7
  %v846 = vrot.slane %v829, 7
  %v847 = vrot.slane %v830, 7
  %v848 = vrot.slane %v831, 7
  %v849 = vrot.slane %v832, 7
  %v850 = vrot.slane %v833, 7
  %v851 = vrot.slane %v834, 7
  %v852 = vrot.slane %v835, 7
  %v853 = vrot.slane %v836, 7
  %v854 = vrot.slane %v837, 7
  %v855 = vrot.slane %v838, 7
  %v856 = vrot.slane %v839, 7
  %v857 = vlaneseq
  %v858 = vshrl.u32 %v857, 7
  %vm859 = vcmp.lt.s32.totalorder %v858, 1
  %v860 = vsel %vm859, %v855, %v856
  %v861 = vsel %vm859, %v854, %v855
  %v862 = vsel %vm859, %v853, %v854
  %v863 = vsel %vm859, %v852, %v853
  %v864 = vsel %vm859, %v851, %v852
  %v865 = vsel %vm859, %v850, %v851
  %v866 = vsel %vm859, %v849, %v850
  %v867 = vsel %vm859, %v848, %v849
  %v868 = vsel %vm859, %v847, %v848
  %v869 = vsel %vm859, %v846, %v847
  %v870 = vsel %vm859, %v845, %v846
  %v871 = vsel %vm859, %v844, %v845
  %v872 = vsel %vm859, %v843, %v844
  %v873 = vsel %vm859, %v842, %v843
  %v874 = vsel %vm859, %v841, %v842
  %v875 = vsel %vm859, %v856, %v841
  %v876 = vld [vmem:[%s14] sm:$0xff]
  %v877 = vld [vmem:[%s14 + $0x8] sm:$0xff]
  %v878 = vld [vmem:[%s14 + $0x10] sm:$0xff]
  %v879 = vld [vmem:[%s14 + $0x18] sm:$0xff]
  %v880 = vld [vmem:[%s14 + $0x20] sm:$0xff]
  %v881 = vld [vmem:[%s14 + $0x28] sm:$0xff]
  %v882 = vld [vmem:[%s14 + $0x30] sm:$0xff]
  %v883 = vld [vmem:[%s14 + $0x38] sm:$0xff]
  %v884 = vld [vmem:[%s14 + $0x40] sm:$0xff]
  %v885 = vld [vmem:[%s14 + $0x48] sm:$0xff]
  %v886 = vld [vmem:[%s14 + $0x50] sm:$0xff]
  %v887 = vld [vmem:[%s14 + $0x58] sm:$0xff]
  %v888 = vld [vmem:[%s14 + $0x60] sm:$0xff]
  %v889 = vld [vmem:[%s14 + $0x68] sm:$0xff]
  %v890 = vld [vmem:[%s14 + $0x70] sm:$0xff]
  %v891 = vld [vmem:[%s14 + $0x78] sm:$0xff]
  %893 = vset.pattern.permute.xlu0 0
  %894 = vperm.xlu0 %893, %v876
  %v895 = vpop.permute.xlu0 %894
  %898 = vset.pattern.permute.xlu0 0
  %899 = vperm.xlu0 %898, %v877
  %v900 = vpop.permute.xlu0 %899
  %903 = vset.pattern.permute.xlu0 0
  %904 = vperm.xlu0 %903, %v878
  %v905 = vpop.permute.xlu0 %904
  %908 = vset.pattern.permute.xlu0 0
  %909 = vperm.xlu0 %908, %v879
  %v910 = vpop.permute.xlu0 %909
  %913 = vset.pattern.permute.xlu0 0
  %914 = vperm.xlu0 %913, %v880
  %v915 = vpop.permute.xlu0 %914
  %918 = vset.pattern.permute.xlu0 0
  %919 = vperm.xlu0 %918, %v881
  %v920 = vpop.permute.xlu0 %919
  %923 = vset.pattern.permute.xlu0 0
  %924 = vperm.xlu0 %923, %v882
  %v925 = vpop.permute.xlu0 %924
  %928 = vset.pattern.permute.xlu0 0
  %929 = vperm.xlu0 %928, %v883
  %v930 = vpop.permute.xlu0 %929
  %933 = vset.pattern.permute.xlu0 0
  %934 = vperm.xlu0 %933, %v884
  %v935 = vpop.permute.xlu0 %934
  %938 = vset.pattern.permute.xlu0 0
  %939 = vperm.xlu0 %938, %v885
  %v940 = vpop.permute.xlu0 %939
  %943 = vset.pattern.permute.xlu0 0
  %944 = vperm.xlu0 %943, %v886
  %v945 = vpop.permute.xlu0 %944
  %948 = vset.pattern.permute.xlu0 0
  %949 = vperm.xlu0 %948, %v887
  %v950 = vpop.permute.xlu0 %949
  %953 = vset.pattern.permute.xlu0 0
  %954 = vperm.xlu0 %953, %v888
  %v955 = vpop.permute.xlu0 %954
  %958 = vset.pattern.permute.xlu0 0
  %959 = vperm.xlu0 %958, %v889
  %v960 = vpop.permute.xlu0 %959
  %963 = vset.pattern.permute.xlu0 0
  %964 = vperm.xlu0 %963, %v890
  %v965 = vpop.permute.xlu0 %964
  %968 = vset.pattern.permute.xlu0 0
  %969 = vperm.xlu0 %968, %v891
  %v970 = vpop.permute.xlu0 %969
  %v972 = vmul.f32 %v860, %v895
  %v973 = vmul.f32 %v875, %v900
  %v974 = vmul.f32 %v874, %v905
  %v975 = vmul.f32 %v873, %v910
  %v976 = vmul.f32 %v872, %v915
  %v977 = vmul.f32 %v871, %v920
  %v978 = vmul.f32 %v870, %v925
  %v979 = vmul.f32 %v869, %v930
  %v980 = vmul.f32 %v868, %v935
  %v981 = vmul.f32 %v867, %v940
  %v982 = vmul.f32 %v866, %v945
  %v983 = vmul.f32 %v865, %v950
  %v984 = vmul.f32 %v864, %v955
  %v985 = vmul.f32 %v863, %v960
  %v986 = vmul.f32 %v862, %v965
  %v987 = vmul.f32 %v861, %v970
  %v988 = vpack.c.bf16 %v972, %v972
  %v989 = vpack.c.bf16 %v973, %v973
  %v990 = vpack.c.bf16 %v974, %v974
  %v991 = vpack.c.bf16 %v975, %v975
  %v992 = vpack.c.bf16 %v976, %v976
  %v993 = vpack.c.bf16 %v977, %v977
  %v994 = vpack.c.bf16 %v978, %v978
  %v995 = vpack.c.bf16 %v979, %v979
  %v996 = vpack.c.bf16 %v980, %v980
  %v997 = vpack.c.bf16 %v981, %v981
  %v998 = vpack.c.bf16 %v982, %v982
  %v999 = vpack.c.bf16 %v983, %v983
  %v1000 = vpack.c.bf16 %v984, %v984
  %v1001 = vpack.c.bf16 %v985, %v985
  %v1002 = vpack.c.bf16 %v986, %v986
  %v1003 = vpack.c.bf16 %v987, %v987
  %vm1004 = vcmask 257024
  %1005 = vst.msk [vmem:[#allocation2] sm:$0xf] %vm1004, %v988
  %1006 = vst.msk [vmem:[#allocation2 + $0xc] sm:$0xf] %vm1004, %v989
  %1007 = vst.msk [vmem:[#allocation2 + $0x18] sm:$0xf] %vm1004, %v990
  %1008 = vst.msk [vmem:[#allocation2 + $0x24] sm:$0xf] %vm1004, %v991
  %1009 = vst.msk [vmem:[#allocation2 + $0x30] sm:$0xf] %vm1004, %v992
  %1010 = vst.msk [vmem:[#allocation2 + $0x3c] sm:$0xf] %vm1004, %v993
  %1011 = vst.msk [vmem:[#allocation2 + $0x48] sm:$0xf] %vm1004, %v994
  %1012 = vst.msk [vmem:[#allocation2 + $0x54] sm:$0xf] %vm1004, %v995
  %1013 = vst.msk [vmem:[#allocation2 + $0x60] sm:$0xf] %vm1004, %v996
  %1014 = vst.msk [vmem:[#allocation2 + $0x6c] sm:$0xf] %vm1004, %v997
  %1015 = vst.msk [vmem:[#allocation2 + $0x78] sm:$0xf] %vm1004, %v998
  %1016 = vst.msk [vmem:[#allocation2 + $0x84] sm:$0xf] %vm1004, %v999
  %1017 = vst.msk [vmem:[#allocation2 + $0x90] sm:$0xf] %vm1004, %v1000
  %1018 = vst.msk [vmem:[#allocation2 + $0x9c] sm:$0xf] %vm1004, %v1001
  %1019 = vst.msk [vmem:[#allocation2 + $0xa8] sm:$0xf] %vm1004, %v1002
  %1020 = vst.msk [vmem:[#allocation2 + $0xb4] sm:$0xf] %vm1004, %v1003
  %s1021 = scalar_lea.vmem %s14, 128
  %v1022 = vld [vmem:[%s1021] sm:$0xff]
  %v1023 = vld [vmem:[%s1021 + $0x8] sm:$0xff]
  %v1024 = vld [vmem:[%s1021 + $0x10] sm:$0xff]
  %v1025 = vld [vmem:[%s1021 + $0x18] sm:$0xff]
  %v1026 = vld [vmem:[%s1021 + $0x20] sm:$0xff]
  %v1027 = vld [vmem:[%s1021 + $0x28] sm:$0xff]
  %v1028 = vld [vmem:[%s1021 + $0x30] sm:$0xff]
  %v1029 = vld [vmem:[%s1021 + $0x38] sm:$0xff]
  %v1030 = vld [vmem:[%s1021 + $0x40] sm:$0xff]
  %v1031 = vld [vmem:[%s1021 + $0x48] sm:$0xff]
  %v1032 = vld [vmem:[%s1021 + $0x50] sm:$0xff]
  %v1033 = vld [vmem:[%s1021 + $0x58] sm:$0xff]
  %v1034 = vld [vmem:[%s1021 + $0x60] sm:$0xff]
  %v1035 = vld [vmem:[%s1021 + $0x68] sm:$0xff]
  %v1036 = vld [vmem:[%s1021 + $0x70] sm:$0xff]
  %v1037 = vld [vmem:[%s1021 + $0x78] sm:$0xff]
  %1039 = vset.pattern.permute.xlu0 0
  %1040 = vperm.xlu0 %1039, %v1022
  %v1041 = vpop.permute.xlu0 %1040
  %1044 = vset.pattern.permute.xlu0 0
  %1045 = vperm.xlu0 %1044, %v1023
  %v1046 = vpop.permute.xlu0 %1045
  %1049 = vset.pattern.permute.xlu0 0
  %1050 = vperm.xlu0 %1049, %v1024
  %v1051 = vpop.permute.xlu0 %1050
  %1054 = vset.pattern.permute.xlu0 0
  %1055 = vperm.xlu0 %1054, %v1025
  %v1056 = vpop.permute.xlu0 %1055
  %1059 = vset.pattern.permute.xlu0 0
  %1060 = vperm.xlu0 %1059, %v1026
  %v1061 = vpop.permute.xlu0 %1060
  %1064 = vset.pattern.permute.xlu0 0
  %1065 = vperm.xlu0 %1064, %v1027
  %v1066 = vpop.permute.xlu0 %1065
  %1069 = vset.pattern.permute.xlu0 0
  %1070 = vperm.xlu0 %1069, %v1028
  %v1071 = vpop.permute.xlu0 %1070
  %1074 = vset.pattern.permute.xlu0 0
  %1075 = vperm.xlu0 %1074, %v1029
  %v1076 = vpop.permute.xlu0 %1075
  %1079 = vset.pattern.permute.xlu0 0
  %1080 = vperm.xlu0 %1079, %v1030
  %v1081 = vpop.permute.xlu0 %1080
  %1084 = vset.pattern.permute.xlu0 0
  %1085 = vperm.xlu0 %1084, %v1031
  %v1086 = vpop.permute.xlu0 %1085
  %1089 = vset.pattern.permute.xlu0 0
  %1090 = vperm.xlu0 %1089, %v1032
  %v1091 = vpop.permute.xlu0 %1090
  %1094 = vset.pattern.permute.xlu0 0
  %1095 = vperm.xlu0 %1094, %v1033
  %v1096 = vpop.permute.xlu0 %1095
  %1099 = vset.pattern.permute.xlu0 0
  %1100 = vperm.xlu0 %1099, %v1034
  %v1101 = vpop.permute.xlu0 %1100
  %1104 = vset.pattern.permute.xlu0 0
  %1105 = vperm.xlu0 %1104, %v1035
  %v1106 = vpop.permute.xlu0 %1105
  %1109 = vset.pattern.permute.xlu0 0
  %1110 = vperm.xlu0 %1109, %v1036
  %v1111 = vpop.permute.xlu0 %1110
  %1114 = vset.pattern.permute.xlu0 0
  %1115 = vperm.xlu0 %1114, %v1037
  %v1116 = vpop.permute.xlu0 %1115
  %v1118 = vmul.f32 %v839, %v1041
  %v1119 = vmul.f32 %v824, %v1046
  %v1120 = vmul.f32 %v825, %v1051
  %v1121 = vmul.f32 %v826, %v1056
  %v1122 = vmul.f32 %v827, %v1061
  %v1123 = vmul.f32 %v828, %v1066
  %v1124 = vmul.f32 %v829, %v1071
  %v1125 = vmul.f32 %v830, %v1076
  %v1126 = vmul.f32 %v831, %v1081
  %v1127 = vmul.f32 %v832, %v1086
  %v1128 = vmul.f32 %v833, %v1091
  %v1129 = vmul.f32 %v834, %v1096
  %v1130 = vmul.f32 %v835, %v1101
  %v1131 = vmul.f32 %v836, %v1106
  %v1132 = vmul.f32 %v837, %v1111
  %v1133 = vmul.f32 %v838, %v1116
  %v1134 = vpack.c.bf16 %v1118, %v1118
  %v1135 = vpack.c.bf16 %v1119, %v1119
  %v1136 = vpack.c.bf16 %v1120, %v1120
  %v1137 = vpack.c.bf16 %v1121, %v1121
  %v1138 = vpack.c.bf16 %v1122, %v1122
  %v1139 = vpack.c.bf16 %v1123, %v1123
  %v1140 = vpack.c.bf16 %v1124, %v1124
  %v1141 = vpack.c.bf16 %v1125, %v1125
  %v1142 = vpack.c.bf16 %v1126, %v1126
  %v1143 = vpack.c.bf16 %v1127, %v1127
  %v1144 = vpack.c.bf16 %v1128, %v1128
  %v1145 = vpack.c.bf16 %v1129, %v1129
  %v1146 = vpack.c.bf16 %v1130, %v1130
  %v1147 = vpack.c.bf16 %v1131, %v1131
  %v1148 = vpack.c.bf16 %v1132, %v1132
  %v1149 = vpack.c.bf16 %v1133, %v1133
  %1166 = vrot.lane.b32.xlu0 %v1134, 32
  %v1167 = vpop.permute.xlu0 %1166
  %1168 = vrot.lane.b32.xlu0 %v1135, 32
  %v1169 = vpop.permute.xlu0 %1168
  %1170 = vrot.lane.b32.xlu0 %v1136, 32
  %v1171 = vpop.permute.xlu0 %1170
  %1172 = vrot.lane.b32.xlu0 %v1137, 32
  %v1173 = vpop.permute.xlu0 %1172
  %1174 = vrot.lane.b32.xlu0 %v1138, 32
  %v1175 = vpop.permute.xlu0 %1174
  %1176 = vrot.lane.b32.xlu0 %v1139, 32
  %v1177 = vpop.permute.xlu0 %1176
  %1178 = vrot.lane.b32.xlu0 %v1140, 32
  %v1179 = vpop.permute.xlu0 %1178
  %1180 = vrot.lane.b32.xlu0 %v1141, 32
  %v1181 = vpop.permute.xlu0 %1180
  %1182 = vrot.lane.b32.xlu0 %v1142, 32
  %v1183 = vpop.permute.xlu0 %1182
  %1184 = vrot.lane.b32.xlu0 %v1143, 32
  %v1185 = vpop.permute.xlu0 %1184
  %1186 = vrot.lane.b32.xlu0 %v1144, 32
  %v1187 = vpop.permute.xlu0 %1186
  %1188 = vrot.lane.b32.xlu0 %v1145, 32
  %v1189 = vpop.permute.xlu0 %1188
  %1190 = vrot.lane.b32.xlu0 %v1146, 32
  %v1191 = vpop.permute.xlu0 %1190
  %1192 = vrot.lane.b32.xlu0 %v1147, 32
  %v1193 = vpop.permute.xlu0 %1192
  %1194 = vrot.lane.b32.xlu0 %v1148, 32
  %v1195 = vpop.permute.xlu0 %1194
  %1196 = vrot.lane.b32.xlu0 %v1149, 32
  %v1197 = vpop.permute.xlu0 %1196
  %vm1214 = vcmask 519424
  %1215 = vst.msk [vmem:[#allocation2] sm:$0xf] %vm1214, %v1167
  %1216 = vst.msk [vmem:[#allocation2 + $0xc] sm:$0xf] %vm1214, %v1169
  %1217 = vst.msk [vmem:[#allocation2 + $0x18] sm:$0xf] %vm1214, %v1171
  %1218 = vst.msk [vmem:[#allocation2 + $0x24] sm:$0xf] %vm1214, %v1173
  %1219 = vst.msk [vmem:[#allocation2 + $0x30] sm:$0xf] %vm1214, %v1175
  %1220 = vst.msk [vmem:[#allocation2 + $0x3c] sm:$0xf] %vm1214, %v1177
  %1221 = vst.msk [vmem:[#allocation2 + $0x48] sm:$0xf] %vm1214, %v1179
  %1222 = vst.msk [vmem:[#allocation2 + $0x54] sm:$0xf] %vm1214, %v1181
  %1223 = vst.msk [vmem:[#allocation2 + $0x60] sm:$0xf] %vm1214, %v1183
  %1224 = vst.msk [vmem:[#allocation2 + $0x6c] sm:$0xf] %vm1214, %v1185
  %1225 = vst.msk [vmem:[#allocation2 + $0x78] sm:$0xf] %vm1214, %v1187
  %1226 = vst.msk [vmem:[#allocation2 + $0x84] sm:$0xf] %vm1214, %v1189
  %1227 = vst.msk [vmem:[#allocation2 + $0x90] sm:$0xf] %vm1214, %v1191
  %1228 = vst.msk [vmem:[#allocation2 + $0x9c] sm:$0xf] %vm1214, %v1193
  %1229 = vst.msk [vmem:[#allocation2 + $0xa8] sm:$0xf] %vm1214, %v1195
  %1230 = vst.msk [vmem:[#allocation2 + $0xb4] sm:$0xf] %vm1214, %v1197
  %v1231 = vrot.slane %v824, 1
  %v1232 = vrot.slane %v825, 1
  %v1233 = vrot.slane %v826, 1
  %v1234 = vrot.slane %v827, 1
  %v1235 = vrot.slane %v828, 1
  %v1236 = vrot.slane %v829, 1
  %v1237 = vrot.slane %v830, 1
  %v1238 = vrot.slane %v831, 1
  %v1239 = vrot.slane %v832, 1
  %v1240 = vrot.slane %v833, 1
  %v1241 = vrot.slane %v834, 1
  %v1242 = vrot.slane %v835, 1
  %v1243 = vrot.slane %v836, 1
  %v1244 = vrot.slane %v837, 1
  %v1245 = vrot.slane %v838, 1
  %v1246 = vrot.slane %v839, 1
  %vm1247 = vcmp.lt.s32.totalorder %v858, 7
  %v1248 = vsel %vm1247, %v1245, %v1246
  %v1249 = vsel %vm1247, %v1244, %v1245
  %v1250 = vsel %vm1247, %v1243, %v1244
  %v1251 = vsel %vm1247, %v1242, %v1243
  %v1252 = vsel %vm1247, %v1241, %v1242
  %v1253 = vsel %vm1247, %v1240, %v1241
  %v1254 = vsel %vm1247, %v1239, %v1240
  %v1255 = vsel %vm1247, %v1238, %v1239
  %v1256 = vsel %vm1247, %v1237, %v1238
  %v1257 = vsel %vm1247, %v1236, %v1237
  %v1258 = vsel %vm1247, %v1235, %v1236
  %v1259 = vsel %vm1247, %v1234, %v1235
  %v1260 = vsel %vm1247, %v1233, %v1234
  %v1261 = vsel %vm1247, %v1232, %v1233
  %v1262 = vsel %vm1247, %v1231, %v1232
  %v1263 = vsel %vm1247, %v1246, %v1231
  %s1264 = scalar_lea.vmem %s14, 256
  %v1265 = vld [vmem:[%s1264] sm:$0xff]
  %v1266 = vld [vmem:[%s1264 + $0x8] sm:$0xff]
  %v1267 = vld [vmem:[%s1264 + $0x10] sm:$0xff]
  %v1268 = vld [vmem:[%s1264 + $0x18] sm:$0xff]
  %v1269 = vld [vmem:[%s1264 + $0x20] sm:$0xff]
  %v1270 = vld [vmem:[%s1264 + $0x28] sm:$0xff]
  %v1271 = vld [vmem:[%s1264 + $0x30] sm:$0xff]
  %v1272 = vld [vmem:[%s1264 + $0x38] sm:$0xff]
  %v1273 = vld [vmem:[%s1264 + $0x40] sm:$0xff]
  %v1274 = vld [vmem:[%s1264 + $0x48] sm:$0xff]
  %v1275 = vld [vmem:[%s1264 + $0x50] sm:$0xff]
  %v1276 = vld [vmem:[%s1264 + $0x58] sm:$0xff]
  %v1277 = vld [vmem:[%s1264 + $0x60] sm:$0xff]
  %v1278 = vld [vmem:[%s1264 + $0x68] sm:$0xff]
  %v1279 = vld [vmem:[%s1264 + $0x70] sm:$0xff]
  %v1280 = vld [vmem:[%s1264 + $0x78] sm:$0xff]
  %1282 = vset.pattern.permute.xlu0 0
  %1283 = vperm.xlu0 %1282, %v1265
  %v1284 = vpop.permute.xlu0 %1283
  %1287 = vset.pattern.permute.xlu0 0
  %1288 = vperm.xlu0 %1287, %v1266
  %v1289 = vpop.permute.xlu0 %1288
  %1292 = vset.pattern.permute.xlu0 0
  %1293 = vperm.xlu0 %1292, %v1267
  %v1294 = vpop.permute.xlu0 %1293
  %1297 = vset.pattern.permute.xlu0 0
  %1298 = vperm.xlu0 %1297, %v1268
  %v1299 = vpop.permute.xlu0 %1298
  %1302 = vset.pattern.permute.xlu0 0
  %1303 = vperm.xlu0 %1302, %v1269
  %v1304 = vpop.permute.xlu0 %1303
  %1307 = vset.pattern.permute.xlu0 0
  %1308 = vperm.xlu0 %1307, %v1270
  %v1309 = vpop.permute.xlu0 %1308
  %1312 = vset.pattern.permute.xlu0 0
  %1313 = vperm.xlu0 %1312, %v1271
  %v1314 = vpop.permute.xlu0 %1313
  %1317 = vset.pattern.permute.xlu0 0
  %1318 = vperm.xlu0 %1317, %v1272
  %v1319 = vpop.permute.xlu0 %1318
  %1322 = vset.pattern.permute.xlu0 0
  %1323 = vperm.xlu0 %1322, %v1273
  %v1324 = vpop.permute.xlu0 %1323
  %1327 = vset.pattern.permute.xlu0 0
  %1328 = vperm.xlu0 %1327, %v1274
  %v1329 = vpop.permute.xlu0 %1328
  %1332 = vset.pattern.permute.xlu0 0
  %1333 = vperm.xlu0 %1332, %v1275
  %v1334 = vpop.permute.xlu0 %1333
  %1337 = vset.pattern.permute.xlu0 0
  %1338 = vperm.xlu0 %1337, %v1276
  %v1339 = vpop.permute.xlu0 %1338
  %1342 = vset.pattern.permute.xlu0 0
  %1343 = vperm.xlu0 %1342, %v1277
  %v1344 = vpop.permute.xlu0 %1343
  %1347 = vset.pattern.permute.xlu0 0
  %1348 = vperm.xlu0 %1347, %v1278
  %v1349 = vpop.permute.xlu0 %1348
  %1352 = vset.pattern.permute.xlu0 0
  %1353 = vperm.xlu0 %1352, %v1279
  %v1354 = vpop.permute.xlu0 %1353
  %1357 = vset.pattern.permute.xlu0 0
  %1358 = vperm.xlu0 %1357, %v1280
  %v1359 = vpop.permute.xlu0 %1358
  %v1361 = vmul.f32 %v1263, %v1284
  %v1362 = vmul.f32 %v1262, %v1289
  %v1363 = vmul.f32 %v1261, %v1294
  %v1364 = vmul.f32 %v1260, %v1299
  %v1365 = vmul.f32 %v1259, %v1304
  %v1366 = vmul.f32 %v1258, %v1309
  %v1367 = vmul.f32 %v1257, %v1314
  %v1368 = vmul.f32 %v1256, %v1319
  %v1369 = vmul.f32 %v1255, %v1324
  %v1370 = vmul.f32 %v1254, %v1329
  %v1371 = vmul.f32 %v1253, %v1334
  %v1372 = vmul.f32 %v1252, %v1339
  %v1373 = vmul.f32 %v1251, %v1344
  %v1374 = vmul.f32 %v1250, %v1349
  %v1375 = vmul.f32 %v1249, %v1354
  %v1376 = vmul.f32 %v1248, %v1359
  %v1377 = vpack.c.bf16 %v1361, %v1361
  %v1378 = vpack.c.bf16 %v1362, %v1362
  %v1379 = vpack.c.bf16 %v1363, %v1363
  %v1380 = vpack.c.bf16 %v1364, %v1364
  %v1381 = vpack.c.bf16 %v1365, %v1365
  %v1382 = vpack.c.bf16 %v1366, %v1366
  %v1383 = vpack.c.bf16 %v1367, %v1367
  %v1384 = vpack.c.bf16 %v1368, %v1368
  %v1385 = vpack.c.bf16 %v1369, %v1369
  %v1386 = vpack.c.bf16 %v1370, %v1370
  %v1387 = vpack.c.bf16 %v1371, %v1371
  %v1388 = vpack.c.bf16 %v1372, %v1372
  %v1389 = vpack.c.bf16 %v1373, %v1373
  %v1390 = vpack.c.bf16 %v1374, %v1374
  %v1391 = vpack.c.bf16 %v1375, %v1375
  %v1392 = vpack.c.bf16 %v1376, %v1376
  %1409 = vrot.lane.b32.xlu0 %v1377, 64
  %v1410 = vpop.permute.xlu0 %1409
  %1411 = vrot.lane.b32.xlu0 %v1378, 64
  %v1412 = vpop.permute.xlu0 %1411
  %1413 = vrot.lane.b32.xlu0 %v1379, 64
  %v1414 = vpop.permute.xlu0 %1413
  %1415 = vrot.lane.b32.xlu0 %v1380, 64
  %v1416 = vpop.permute.xlu0 %1415
  %1417 = vrot.lane.b32.xlu0 %v1381, 64
  %v1418 = vpop.permute.xlu0 %1417
  %1419 = vrot.lane.b32.xlu0 %v1382, 64
  %v1420 = vpop.permute.xlu0 %1419
  %1421 = vrot.lane.b32.xlu0 %v1383, 64
  %v1422 = vpop.permute.xlu0 %1421
  %1423 = vrot.lane.b32.xlu0 %v1384, 64
  %v1424 = vpop.permute.xlu0 %1423
  %1425 = vrot.lane.b32.xlu0 %v1385, 64
  %v1426 = vpop.permute.xlu0 %1425
  %1427 = vrot.lane.b32.xlu0 %v1386, 64
  %v1428 = vpop.permute.xlu0 %1427
  %1429 = vrot.lane.b32.xlu0 %v1387, 64
  %v1430 = vpop.permute.xlu0 %1429
  %1431 = vrot.lane.b32.xlu0 %v1388, 64
  %v1432 = vpop.permute.xlu0 %1431
  %1433 = vrot.lane.b32.xlu0 %v1389, 64
  %v1434 = vpop.permute.xlu0 %1433
  %1435 = vrot.lane.b32.xlu0 %v1390, 64
  %v1436 = vpop.permute.xlu0 %1435
  %1437 = vrot.lane.b32.xlu0 %v1391, 64
  %v1438 = vpop.permute.xlu0 %1437
  %1439 = vrot.lane.b32.xlu0 %v1392, 64
  %v1440 = vpop.permute.xlu0 %1439
  %vm1457 = vcmask 781824
  %1458 = vst.msk [vmem:[#allocation2] sm:$0xf] %vm1457, %v1410
  %1459 = vst.msk [vmem:[#allocation2 + $0xc] sm:$0xf] %vm1457, %v1412
  %1460 = vst.msk [vmem:[#allocation2 + $0x18] sm:$0xf] %vm1457, %v1414
  %1461 = vst.msk [vmem:[#allocation2 + $0x24] sm:$0xf] %vm1457, %v1416
  %1462 = vst.msk [vmem:[#allocation2 + $0x30] sm:$0xf] %vm1457, %v1418
  %1463 = vst.msk [vmem:[#allocation2 + $0x3c] sm:$0xf] %vm1457, %v1420
  %1464 = vst.msk [vmem:[#allocation2 + $0x48] sm:$0xf] %vm1457, %v1422
  %1465 = vst.msk [vmem:[#allocation2 + $0x54] sm:$0xf] %vm1457, %v1424
  %1466 = vst.msk [vmem:[#allocation2 + $0x60] sm:$0xf] %vm1457, %v1426
  %1467 = vst.msk [vmem:[#allocation2 + $0x6c] sm:$0xf] %vm1457, %v1428
  %1468 = vst.msk [vmem:[#allocation2 + $0x78] sm:$0xf] %vm1457, %v1430
  %1469 = vst.msk [vmem:[#allocation2 + $0x84] sm:$0xf] %vm1457, %v1432
  %1470 = vst.msk [vmem:[#allocation2 + $0x90] sm:$0xf] %vm1457, %v1434
  %1471 = vst.msk [vmem:[#allocation2 + $0x9c] sm:$0xf] %vm1457, %v1436
  %1472 = vst.msk [vmem:[#allocation2 + $0xa8] sm:$0xf] %vm1457, %v1438
  %1473 = vst.msk [vmem:[#allocation2 + $0xb4] sm:$0xf] %vm1457, %v1440
  %s1474 = scalar_lea.vmem %s14, 384
  %v1475 = vld [vmem:[%s1474] sm:$0xff]
  %v1476 = vld [vmem:[%s1474 + $0x8] sm:$0xff]
  %v1477 = vld [vmem:[%s1474 + $0x10] sm:$0xff]
  %v1478 = vld [vmem:[%s1474 + $0x18] sm:$0xff]
  %v1479 = vld [vmem:[%s1474 + $0x20] sm:$0xff]
  %v1480 = vld [vmem:[%s1474 + $0x28] sm:$0xff]
  %v1481 = vld [vmem:[%s1474 + $0x30] sm:$0xff]
  %v1482 = vld [vmem:[%s1474 + $0x38] sm:$0xff]
  %v1483 = vld [vmem:[%s1474 + $0x40] sm:$0xff]
  %v1484 = vld [vmem:[%s1474 + $0x48] sm:$0xff]
  %v1485 = vld [vmem:[%s1474 + $0x50] sm:$0xff]
  %v1486 = vld [vmem:[%s1474 + $0x58] sm:$0xff]
  %v1487 = vld [vmem:[%s1474 + $0x60] sm:$0xff]
  %v1488 = vld [vmem:[%s1474 + $0x68] sm:$0xff]
  %v1489 = vld [vmem:[%s1474 + $0x70] sm:$0xff]
  %v1490 = vld [vmem:[%s1474 + $0x78] sm:$0xff]
  %1492 = vset.pattern.permute.xlu0 0
  %1493 = vperm.xlu0 %1492, %v1475
  %v1494 = vpop.permute.xlu0 %1493
  %1497 = vset.pattern.permute.xlu0 0
  %1498 = vperm.xlu0 %1497, %v1476
  %v1499 = vpop.permute.xlu0 %1498
  %1502 = vset.pattern.permute.xlu0 0
  %1503 = vperm.xlu0 %1502, %v1477
  %v1504 = vpop.permute.xlu0 %1503
  %1507 = vset.pattern.permute.xlu0 0
  %1508 = vperm.xlu0 %1507, %v1478
  %v1509 = vpop.permute.xlu0 %1508
  %1512 = vset.pattern.permute.xlu0 0
  %1513 = vperm.xlu0 %1512, %v1479
  %v1514 = vpop.permute.xlu0 %1513
  %1517 = vset.pattern.permute.xlu0 0
  %1518 = vperm.xlu0 %1517, %v1480
  %v1519 = vpop.permute.xlu0 %1518
  %1522 = vset.pattern.permute.xlu0 0
  %1523 = vperm.xlu0 %1522, %v1481
  %v1524 = vpop.permute.xlu0 %1523
  %1527 = vset.pattern.permute.xlu0 0
  %1528 = vperm.xlu0 %1527, %v1482
  %v1529 = vpop.permute.xlu0 %1528
  %1532 = vset.pattern.permute.xlu0 0
  %1533 = vperm.xlu0 %1532, %v1483
  %v1534 = vpop.permute.xlu0 %1533
  %1537 = vset.pattern.permute.xlu0 0
  %1538 = vperm.xlu0 %1537, %v1484
  %v1539 = vpop.permute.xlu0 %1538
  %1542 = vset.pattern.permute.xlu0 0
  %1543 = vperm.xlu0 %1542, %v1485
  %v1544 = vpop.permute.xlu0 %1543
  %1547 = vset.pattern.permute.xlu0 0
  %1548 = vperm.xlu0 %1547, %v1486
  %v1549 = vpop.permute.xlu0 %1548
  %1552 = vset.pattern.permute.xlu0 0
  %1553 = vperm.xlu0 %1552, %v1487
  %v1554 = vpop.permute.xlu0 %1553
  %1557 = vset.pattern.permute.xlu0 0
  %1558 = vperm.xlu0 %1557, %v1488
  %v1559 = vpop.permute.xlu0 %1558
  %1562 = vset.pattern.permute.xlu0 0
  %1563 = vperm.xlu0 %1562, %v1489
  %v1564 = vpop.permute.xlu0 %1563
  %1567 = vset.pattern.permute.xlu0 0
  %1568 = vperm.xlu0 %1567, %v1490
  %v1569 = vpop.permute.xlu0 %1568
  %v1571 = vmul.f32 %v875, %v1494
  %v1572 = vmul.f32 %v874, %v1499
  %v1573 = vmul.f32 %v873, %v1504
  %v1574 = vmul.f32 %v872, %v1509
  %v1575 = vmul.f32 %v871, %v1514
  %v1576 = vmul.f32 %v870, %v1519
  %v1577 = vmul.f32 %v869, %v1524
  %v1578 = vmul.f32 %v868, %v1529
  %v1579 = vmul.f32 %v867, %v1534
  %v1580 = vmul.f32 %v866, %v1539
  %v1581 = vmul.f32 %v865, %v1544
  %v1582 = vmul.f32 %v864, %v1549
  %v1583 = vmul.f32 %v863, %v1554
  %v1584 = vmul.f32 %v862, %v1559
  %v1585 = vmul.f32 %v861, %v1564
  %v1586 = vmul.f32 %v860, %v1569
  %v1587 = vpack.c.bf16 %v1571, %v1571
  %v1588 = vpack.c.bf16 %v1572, %v1572
  %v1589 = vpack.c.bf16 %v1573, %v1573
  %v1590 = vpack.c.bf16 %v1574, %v1574
  %v1591 = vpack.c.bf16 %v1575, %v1575
  %v1592 = vpack.c.bf16 %v1576, %v1576
  %v1593 = vpack.c.bf16 %v1577, %v1577
  %v1594 = vpack.c.bf16 %v1578, %v1578
  %v1595 = vpack.c.bf16 %v1579, %v1579
  %v1596 = vpack.c.bf16 %v1580, %v1580
  %v1597 = vpack.c.bf16 %v1581, %v1581
  %v1598 = vpack.c.bf16 %v1582, %v1582
  %v1599 = vpack.c.bf16 %v1583, %v1583
  %v1600 = vpack.c.bf16 %v1584, %v1584
  %v1601 = vpack.c.bf16 %v1585, %v1585
  %v1602 = vpack.c.bf16 %v1586, %v1586
  %1619 = vrot.lane.b32.xlu0 %v1587, 96
  %v1620 = vpop.permute.xlu0 %1619
  %1621 = vrot.lane.b32.xlu0 %v1588, 96
  %v1622 = vpop.permute.xlu0 %1621
  %1623 = vrot.lane.b32.xlu0 %v1589, 96
  %v1624 = vpop.permute.xlu0 %1623
  %1625 = vrot.lane.b32.xlu0 %v1590, 96
  %v1626 = vpop.permute.xlu0 %1625
  %1627 = vrot.lane.b32.xlu0 %v1591, 96
  %v1628 = vpop.permute.xlu0 %1627
  %1629 = vrot.lane.b32.xlu0 %v1592, 96
  %v1630 = vpop.permute.xlu0 %1629
  %1631 = vrot.lane.b32.xlu0 %v1593, 96
  %v1632 = vpop.permute.xlu0 %1631
  %1633 = vrot.lane.b32.xlu0 %v1594, 96
  %v1634 = vpop.permute.xlu0 %1633
  %1635 = vrot.lane.b32.xlu0 %v1595, 96
  %v1636 = vpop.permute.xlu0 %1635
  %1637 = vrot.lane.b32.xlu0 %v1596, 96
  %v1638 = vpop.permute.xlu0 %1637
  %1639 = vrot.lane.b32.xlu0 %v1597, 96
  %v1640 = vpop.permute.xlu0 %1639
  %1641 = vrot.lane.b32.xlu0 %v1598, 96
  %v1642 = vpop.permute.xlu0 %1641
  %1643 = vrot.lane.b32.xlu0 %v1599, 96
  %v1644 = vpop.permute.xlu0 %1643
  %1645 = vrot.lane.b32.xlu0 %v1600, 96
  %v1646 = vpop.permute.xlu0 %1645
  %1647 = vrot.lane.b32.xlu0 %v1601, 96
  %v1648 = vpop.permute.xlu0 %1647
  %1649 = vrot.lane.b32.xlu0 %v1602, 96
  %v1650 = vpop.permute.xlu0 %1649
  %vm1667 = vcmask 1044224
  %1668 = vst.msk [vmem:[#allocation2] sm:$0xf] %vm1667, %v1620
  %1669 = vst.msk [vmem:[#allocation2 + $0xc] sm:$0xf] %vm1667, %v1622
  %1670 = vst.msk [vmem:[#allocation2 + $0x18] sm:$0xf] %vm1667, %v1624
  %1671 = vst.msk [vmem:[#allocation2 + $0x24] sm:$0xf] %vm1667, %v1626
  %1672 = vst.msk [vmem:[#allocation2 + $0x30] sm:$0xf] %vm1667, %v1628
  %1673 = vst.msk [vmem:[#allocation2 + $0x3c] sm:$0xf] %vm1667, %v1630
  %1674 = vst.msk [vmem:[#allocation2 + $0x48] sm:$0xf] %vm1667, %v1632
  %1675 = vst.msk [vmem:[#allocation2 + $0x54] sm:$0xf] %vm1667, %v1634
  %1676 = vst.msk [vmem:[#allocation2 + $0x60] sm:$0xf] %vm1667, %v1636
  %1677 = vst.msk [vmem:[#allocation2 + $0x6c] sm:$0xf] %vm1667, %v1638
  %1678 = vst.msk [vmem:[#allocation2 + $0x78] sm:$0xf] %vm1667, %v1640
  %1679 = vst.msk [vmem:[#allocation2 + $0x84] sm:$0xf] %vm1667, %v1642
  %1680 = vst.msk [vmem:[#allocation2 + $0x90] sm:$0xf] %vm1667, %v1644
  %1681 = vst.msk [vmem:[#allocation2 + $0x9c] sm:$0xf] %vm1667, %v1646
  %1682 = vst.msk [vmem:[#allocation2 + $0xa8] sm:$0xf] %vm1667, %v1648
  %1683 = vst.msk [vmem:[#allocation2 + $0xb4] sm:$0xf] %vm1667, %v1650
  %v1684 = vpack.c.bf16 %v824, %v824
  %v1685 = vpack.c.bf16 %v825, %v825
  %v1686 = vpack.c.bf16 %v826, %v826
  %v1687 = vpack.c.bf16 %v827, %v827
  %v1688 = vpack.c.bf16 %v828, %v828
  %v1689 = vpack.c.bf16 %v829, %v829
  %v1690 = vpack.c.bf16 %v830, %v830
  %v1691 = vpack.c.bf16 %v831, %v831
  %v1692 = vpack.c.bf16 %v832, %v832
  %v1693 = vpack.c.bf16 %v833, %v833
  %v1694 = vpack.c.bf16 %v834, %v834
  %v1695 = vpack.c.bf16 %v835, %v835
  %v1696 = vpack.c.bf16 %v836, %v836
  %v1697 = vpack.c.bf16 %v837, %v837
  %v1698 = vpack.c.bf16 %v838, %v838
  %v1699 = vpack.c.bf16 %v839, %v839
  %1700 = vst.msk [vmem:[#allocation2 + $0x4] sm:$0xf] %vm1004, %v1684
  %1701 = vst.msk [vmem:[#allocation2 + $0x10] sm:$0xf] %vm1004, %v1685
  %1702 = vst.msk [vmem:[#allocation2 + $0x1c] sm:$0xf] %vm1004, %v1686
  %1703 = vst.msk [vmem:[#allocation2 + $0x28] sm:$0xf] %vm1004, %v1687
  %1704 = vst.msk [vmem:[#allocation2 + $0x34] sm:$0xf] %vm1004, %v1688
  %1705 = vst.msk [vmem:[#allocation2 + $0x40] sm:$0xf] %vm1004, %v1689
  %1706 = vst.msk [vmem:[#allocation2 + $0x4c] sm:$0xf] %vm1004, %v1690
  %1707 = vst.msk [vmem:[#allocation2 + $0x58] sm:$0xf] %vm1004, %v1691
  %1708 = vst.msk [vmem:[#allocation2 + $0x64] sm:$0xf] %vm1004, %v1692
  %1709 = vst.msk [vmem:[#allocation2 + $0x70] sm:$0xf] %vm1004, %v1693
  %1710 = vst.msk [vmem:[#allocation2 + $0x7c] sm:$0xf] %vm1004, %v1694
  %1711 = vst.msk [vmem:[#allocation2 + $0x88] sm:$0xf] %vm1004, %v1695
  %1712 = vst.msk [vmem:[#allocation2 + $0x94] sm:$0xf] %vm1004, %v1696
  %1713 = vst.msk [vmem:[#allocation2 + $0xa0] sm:$0xf] %vm1004, %v1697
  %1714 = vst.msk [vmem:[#allocation2 + $0xac] sm:$0xf] %vm1004, %v1698
  %1715 = vst.msk [vmem:[#allocation2 + $0xb8] sm:$0xf] %vm1004, %v1699
  %s1716 = scalar_lea.vmem %s14, 640
  %v1717 = vld [vmem:[%s1716] sm:$0xff]
  %v1718 = vld [vmem:[%s1716 + $0x8] sm:$0xff]
  %v1719 = vld [vmem:[%s1716 + $0x10] sm:$0xff]
  %v1720 = vld [vmem:[%s1716 + $0x18] sm:$0xff]
  %v1721 = vld [vmem:[%s1716 + $0x20] sm:$0xff]
  %v1722 = vld [vmem:[%s1716 + $0x28] sm:$0xff]
  %v1723 = vld [vmem:[%s1716 + $0x30] sm:$0xff]
  %v1724 = vld [vmem:[%s1716 + $0x38] sm:$0xff]
  %v1725 = vld [vmem:[%s1716 + $0x40] sm:$0xff]
  %v1726 = vld [vmem:[%s1716 + $0x48] sm:$0xff]
  %v1727 = vld [vmem:[%s1716 + $0x50] sm:$0xff]
  %v1728 = vld [vmem:[%s1716 + $0x58] sm:$0xff]
  %v1729 = vld [vmem:[%s1716 + $0x60] sm:$0xff]
  %v1730 = vld [vmem:[%s1716 + $0x68] sm:$0xff]
  %v1731 = vld [vmem:[%s1716 + $0x70] sm:$0xff]
  %v1732 = vld [vmem:[%s1716 + $0x78] sm:$0xff]
  %1734 = vset.pattern.permute.xlu0 0
  %1735 = vperm.xlu0 %1734, %v1717
  %v1736 = vpop.permute.xlu0 %1735
  %1739 = vset.pattern.permute.xlu0 0
  %1740 = vperm.xlu0 %1739, %v1718
  %v1741 = vpop.permute.xlu0 %1740
  %1744 = vset.pattern.permute.xlu0 0
  %1745 = vperm.xlu0 %1744, %v1719
  %v1746 = vpop.permute.xlu0 %1745
  %1749 = vset.pattern.permute.xlu0 0
  %1750 = vperm.xlu0 %1749, %v1720
  %v1751 = vpop.permute.xlu0 %1750
  %1754 = vset.pattern.permute.xlu0 0
  %1755 = vperm.xlu0 %1754, %v1721
  %v1756 = vpop.permute.xlu0 %1755
  %1759 = vset.pattern.permute.xlu0 0
  %1760 = vperm.xlu0 %1759, %v1722
  %v1761 = vpop.permute.xlu0 %1760
  %1764 = vset.pattern.permute.xlu0 0
  %1765 = vperm.xlu0 %1764, %v1723
  %v1766 = vpop.permute.xlu0 %1765
  %1769 = vset.pattern.permute.xlu0 0
  %1770 = vperm.xlu0 %1769, %v1724
  %v1771 = vpop.permute.xlu0 %1770
  %1774 = vset.pattern.permute.xlu0 0
  %1775 = vperm.xlu0 %1774, %v1725
  %v1776 = vpop.permute.xlu0 %1775
  %1779 = vset.pattern.permute.xlu0 0
  %1780 = vperm.xlu0 %1779, %v1726
  %v1781 = vpop.permute.xlu0 %1780
  %1784 = vset.pattern.permute.xlu0 0
  %1785 = vperm.xlu0 %1784, %v1727
  %v1786 = vpop.permute.xlu0 %1785
  %1789 = vset.pattern.permute.xlu0 0
  %1790 = vperm.xlu0 %1789, %v1728
  %v1791 = vpop.permute.xlu0 %1790
  %1794 = vset.pattern.permute.xlu0 0
  %1795 = vperm.xlu0 %1794, %v1729
  %v1796 = vpop.permute.xlu0 %1795
  %1799 = vset.pattern.permute.xlu0 0
  %1800 = vperm.xlu0 %1799, %v1730
  %v1801 = vpop.permute.xlu0 %1800
  %1804 = vset.pattern.permute.xlu0 0
  %1805 = vperm.xlu0 %1804, %v1731
  %v1806 = vpop.permute.xlu0 %1805
  %1809 = vset.pattern.permute.xlu0 0
  %1810 = vperm.xlu0 %1809, %v1732
  %v1811 = vpop.permute.xlu0 %1810
  %v1813 = vmul.f32 %v1262, %v1736
  %v1814 = vmul.f32 %v1261, %v1741
  %v1815 = vmul.f32 %v1260, %v1746
  %v1816 = vmul.f32 %v1259, %v1751
  %v1817 = vmul.f32 %v1258, %v1756
  %v1818 = vmul.f32 %v1257, %v1761
  %v1819 = vmul.f32 %v1256, %v1766
  %v1820 = vmul.f32 %v1255, %v1771
  %v1821 = vmul.f32 %v1254, %v1776
  %v1822 = vmul.f32 %v1253, %v1781
  %v1823 = vmul.f32 %v1252, %v1786
  %v1824 = vmul.f32 %v1251, %v1791
  %v1825 = vmul.f32 %v1250, %v1796
  %v1826 = vmul.f32 %v1249, %v1801
  %v1827 = vmul.f32 %v1248, %v1806
  %v1828 = vmul.f32 %v1263, %v1811
  %v1829 = vpack.c.bf16 %v1813, %v1813
  %v1830 = vpack.c.bf16 %v1814, %v1814
  %v1831 = vpack.c.bf16 %v1815, %v1815
  %v1832 = vpack.c.bf16 %v1816, %v1816
  %v1833 = vpack.c.bf16 %v1817, %v1817
  %v1834 = vpack.c.bf16 %v1818, %v1818
  %v1835 = vpack.c.bf16 %v1819, %v1819
  %v1836 = vpack.c.bf16 %v1820, %v1820
  %v1837 = vpack.c.bf16 %v1821, %v1821
  %v1838 = vpack.c.bf16 %v1822, %v1822
  %v1839 = vpack.c.bf16 %v1823, %v1823
  %v1840 = vpack.c.bf16 %v1824, %v1824
  %v1841 = vpack.c.bf16 %v1825, %v1825
  %v1842 = vpack.c.bf16 %v1826, %v1826
  %v1843 = vpack.c.bf16 %v1827, %v1827
  %v1844 = vpack.c.bf16 %v1828, %v1828
  %1861 = vrot.lane.b32.xlu0 %v1829, 32
  %v1862 = vpop.permute.xlu0 %1861
  %1863 = vrot.lane.b32.xlu0 %v1830, 32
  %v1864 = vpop.permute.xlu0 %1863
  %1865 = vrot.lane.b32.xlu0 %v1831, 32
  %v1866 = vpop.permute.xlu0 %1865
  %1867 = vrot.lane.b32.xlu0 %v1832, 32
  %v1868 = vpop.permute.xlu0 %1867
  %1869 = vrot.lane.b32.xlu0 %v1833, 32
  %v1870 = vpop.permute.xlu0 %1869
  %1871 = vrot.lane.b32.xlu0 %v1834, 32
  %v1872 = vpop.permute.xlu0 %1871
  %1873 = vrot.lane.b32.xlu0 %v1835, 32
  %v1874 = vpop.permute.xlu0 %1873
  %1875 = vrot.lane.b32.xlu0 %v1836, 32
  %v1876 = vpop.permute.xlu0 %1875
  %1877 = vrot.lane.b32.xlu0 %v1837, 32
  %v1878 = vpop.permute.xlu0 %1877
  %1879 = vrot.lane.b32.xlu0 %v1838, 32
  %v1880 = vpop.permute.xlu0 %1879
  %1881 = vrot.lane.b32.xlu0 %v1839, 32
  %v1882 = vpop.permute.xlu0 %1881
  %1883 = vrot.lane.b32.xlu0 %v1840, 32
  %v1884 = vpop.permute.xlu0 %1883
  %1885 = vrot.lane.b32.xlu0 %v1841, 32
  %v1886 = vpop.permute.xlu0 %1885
  %1887 = vrot.lane.b32.xlu0 %v1842, 32
  %v1888 = vpop.permute.xlu0 %1887
  %1889 = vrot.lane.b32.xlu0 %v1843, 32
  %v1890 = vpop.permute.xlu0 %1889
  %1891 = vrot.lane.b32.xlu0 %v1844, 32
  %v1892 = vpop.permute.xlu0 %1891
  %1909 = vst.msk [vmem:[#allocation2 + $0x4] sm:$0xf] %vm1214, %v1862
  %1910 = vst.msk [vmem:[#allocation2 + $0x10] sm:$0xf] %vm1214, %v1864
  %1911 = vst.msk [vmem:[#allocation2 + $0x1c] sm:$0xf] %vm1214, %v1866
  %1912 = vst.msk [vmem:[#allocation2 + $0x28] sm:$0xf] %vm1214, %v1868
  %1913 = vst.msk [vmem:[#allocation2 + $0x34] sm:$0xf] %vm1214, %v1870
  %1914 = vst.msk [vmem:[#allocation2 + $0x40] sm:$0xf] %vm1214, %v1872
  %1915 = vst.msk [vmem:[#allocation2 + $0x4c] sm:$0xf] %vm1214, %v1874
  %1916 = vst.msk [vmem:[#allocation2 + $0x58] sm:$0xf] %vm1214, %v1876
  %1917 = vst.msk [vmem:[#allocation2 + $0x64] sm:$0xf] %vm1214, %v1878
  %1918 = vst.msk [vmem:[#allocation2 + $0x70] sm:$0xf] %vm1214, %v1880
  %1919 = vst.msk [vmem:[#allocation2 + $0x7c] sm:$0xf] %vm1214, %v1882
  %1920 = vst.msk [vmem:[#allocation2 + $0x88] sm:$0xf] %vm1214, %v1884
  %1921 = vst.msk [vmem:[#allocation2 + $0x94] sm:$0xf] %vm1214, %v1886
  %1922 = vst.msk [vmem:[#allocation2 + $0xa0] sm:$0xf] %vm1214, %v1888
  %1923 = vst.msk [vmem:[#allocation2 + $0xac] sm:$0xf] %vm1214, %v1890
  %1924 = vst.msk [vmem:[#allocation2 + $0xb8] sm:$0xf] %vm1214, %v1892
  %s1925 = scalar_lea.vmem %s14, 768
  %v1926 = vld [vmem:[%s1925] sm:$0xff]
  %v1927 = vld [vmem:[%s1925 + $0x8] sm:$0xff]
  %v1928 = vld [vmem:[%s1925 + $0x10] sm:$0xff]
  %v1929 = vld [vmem:[%s1925 + $0x18] sm:$0xff]
  %v1930 = vld [vmem:[%s1925 + $0x20] sm:$0xff]
  %v1931 = vld [vmem:[%s1925 + $0x28] sm:$0xff]
  %v1932 = vld [vmem:[%s1925 + $0x30] sm:$0xff]
  %v1933 = vld [vmem:[%s1925 + $0x38] sm:$0xff]
  %v1934 = vld [vmem:[%s1925 + $0x40] sm:$0xff]
  %v1935 = vld [vmem:[%s1925 + $0x48] sm:$0xff]
  %v1936 = vld [vmem:[%s1925 + $0x50] sm:$0xff]
  %v1937 = vld [vmem:[%s1925 + $0x58] sm:$0xff]
  %v1938 = vld [vmem:[%s1925 + $0x60] sm:$0xff]
  %v1939 = vld [vmem:[%s1925 + $0x68] sm:$0xff]
  %v1940 = vld [vmem:[%s1925 + $0x70] sm:$0xff]
  %v1941 = vld [vmem:[%s1925 + $0x78] sm:$0xff]
  %1943 = vset.pattern.permute.xlu0 0
  %1944 = vperm.xlu0 %1943, %v1926
  %v1945 = vpop.permute.xlu0 %1944
  %1948 = vset.pattern.permute.xlu0 0
  %1949 = vperm.xlu0 %1948, %v1927
  %v1950 = vpop.permute.xlu0 %1949
  %1953 = vset.pattern.permute.xlu0 0
  %1954 = vperm.xlu0 %1953, %v1928
  %v1955 = vpop.permute.xlu0 %1954
  %1958 = vset.pattern.permute.xlu0 0
  %1959 = vperm.xlu0 %1958, %v1929
  %v1960 = vpop.permute.xlu0 %1959
  %1963 = vset.pattern.permute.xlu0 0
  %1964 = vperm.xlu0 %1963, %v1930
  %v1965 = vpop.permute.xlu0 %1964
  %1968 = vset.pattern.permute.xlu0 0
  %1969 = vperm.xlu0 %1968, %v1931
  %v1970 = vpop.permute.xlu0 %1969
  %1973 = vset.pattern.permute.xlu0 0
  %1974 = vperm.xlu0 %1973, %v1932
  %v1975 = vpop.permute.xlu0 %1974
  %1978 = vset.pattern.permute.xlu0 0
  %1979 = vperm.xlu0 %1978, %v1933
  %v1980 = vpop.permute.xlu0 %1979
  %1983 = vset.pattern.permute.xlu0 0
  %1984 = vperm.xlu0 %1983, %v1934
  %v1985 = vpop.permute.xlu0 %1984
  %1988 = vset.pattern.permute.xlu0 0
  %1989 = vperm.xlu0 %1988, %v1935
  %v1990 = vpop.permute.xlu0 %1989
  %1993 = vset.pattern.permute.xlu0 0
  %1994 = vperm.xlu0 %1993, %v1936
  %v1995 = vpop.permute.xlu0 %1994
  %1998 = vset.pattern.permute.xlu0 0
  %1999 = vperm.xlu0 %1998, %v1937
  %v2000 = vpop.permute.xlu0 %1999
  %2003 = vset.pattern.permute.xlu0 0
  %2004 = vperm.xlu0 %2003, %v1938
  %v2005 = vpop.permute.xlu0 %2004
  %2008 = vset.pattern.permute.xlu0 0
  %2009 = vperm.xlu0 %2008, %v1939
  %v2010 = vpop.permute.xlu0 %2009
  %2013 = vset.pattern.permute.xlu0 0
  %2014 = vperm.xlu0 %2013, %v1940
  %v2015 = vpop.permute.xlu0 %2014
  %2018 = vset.pattern.permute.xlu0 0
  %2019 = vperm.xlu0 %2018, %v1941
  %v2020 = vpop.permute.xlu0 %2019
  %v2022 = vmul.f32 %v874, %v1945
  %v2023 = vmul.f32 %v873, %v1950
  %v2024 = vmul.f32 %v872, %v1955
  %v2025 = vmul.f32 %v871, %v1960
  %v2026 = vmul.f32 %v870, %v1965
  %v2027 = vmul.f32 %v869, %v1970
  %v2028 = vmul.f32 %v868, %v1975
  %v2029 = vmul.f32 %v867, %v1980
  %v2030 = vmul.f32 %v866, %v1985
  %v2031 = vmul.f32 %v865, %v1990
  %v2032 = vmul.f32 %v864, %v1995
  %v2033 = vmul.f32 %v863, %v2000
  %v2034 = vmul.f32 %v862, %v2005
  %v2035 = vmul.f32 %v861, %v2010
  %v2036 = vmul.f32 %v860, %v2015
  %v2037 = vmul.f32 %v875, %v2020
  %v2038 = vpack.c.bf16 %v2022, %v2022
  %v2039 = vpack.c.bf16 %v2023, %v2023
  %v2040 = vpack.c.bf16 %v2024, %v2024
  %v2041 = vpack.c.bf16 %v2025, %v2025
  %v2042 = vpack.c.bf16 %v2026, %v2026
  %v2043 = vpack.c.bf16 %v2027, %v2027
  %v2044 = vpack.c.bf16 %v2028, %v2028
  %v2045 = vpack.c.bf16 %v2029, %v2029
  %v2046 = vpack.c.bf16 %v2030, %v2030
  %v2047 = vpack.c.bf16 %v2031, %v2031
  %v2048 = vpack.c.bf16 %v2032, %v2032
  %v2049 = vpack.c.bf16 %v2033, %v2033
  %v2050 = vpack.c.bf16 %v2034, %v2034
  %v2051 = vpack.c.bf16 %v2035, %v2035
  %v2052 = vpack.c.bf16 %v2036, %v2036
  %v2053 = vpack.c.bf16 %v2037, %v2037
  %2070 = vrot.lane.b32.xlu0 %v2038, 64
  %v2071 = vpop.permute.xlu0 %2070
  %2072 = vrot.lane.b32.xlu0 %v2039, 64
  %v2073 = vpop.permute.xlu0 %2072
  %2074 = vrot.lane.b32.xlu0 %v2040, 64
  %v2075 = vpop.permute.xlu0 %2074
  %2076 = vrot.lane.b32.xlu0 %v2041, 64
  %v2077 = vpop.permute.xlu0 %2076
  %2078 = vrot.lane.b32.xlu0 %v2042, 64
  %v2079 = vpop.permute.xlu0 %2078
  %2080 = vrot.lane.b32.xlu0 %v2043, 64
  %v2081 = vpop.permute.xlu0 %2080
  %2082 = vrot.lane.b32.xlu0 %v2044, 64
  %v2083 = vpop.permute.xlu0 %2082
  %2084 = vrot.lane.b32.xlu0 %v2045, 64
  %v2085 = vpop.permute.xlu0 %2084
  %2086 = vrot.lane.b32.xlu0 %v2046, 64
  %v2087 = vpop.permute.xlu0 %2086
  %2088 = vrot.lane.b32.xlu0 %v2047, 64
  %v2089 = vpop.permute.xlu0 %2088
  %2090 = vrot.lane.b32.xlu0 %v2048, 64
  %v2091 = vpop.permute.xlu0 %2090
  %2092 = vrot.lane.b32.xlu0 %v2049, 64
  %v2093 = vpop.permute.xlu0 %2092
  %2094 = vrot.lane.b32.xlu0 %v2050, 64
  %v2095 = vpop.permute.xlu0 %2094
  %2096 = vrot.lane.b32.xlu0 %v2051, 64
  %v2097 = vpop.permute.xlu0 %2096
  %2098 = vrot.lane.b32.xlu0 %v2052, 64
  %v2099 = vpop.permute.xlu0 %2098
  %2100 = vrot.lane.b32.xlu0 %v2053, 64
  %v2101 = vpop.permute.xlu0 %2100
  %2118 = vst.msk [vmem:[#allocation2 + $0x4] sm:$0xf] %vm1457, %v2071
  %2119 = vst.msk [vmem:[#allocation2 + $0x10] sm:$0xf] %vm1457, %v2073
  %2120 = vst.msk [vmem:[#allocation2 + $0x1c] sm:$0xf] %vm1457, %v2075
  %2121 = vst.msk [vmem:[#allocation2 + $0x28] sm:$0xf] %vm1457, %v2077
  %2122 = vst.msk [vmem:[#allocation2 + $0x34] sm:$0xf] %vm1457, %v2079
  %2123 = vst.msk [vmem:[#allocation2 + $0x40] sm:$0xf] %vm1457, %v2081
  %2124 = vst.msk [vmem:[#allocation2 + $0x4c] sm:$0xf] %vm1457, %v2083
  %2125 = vst.msk [vmem:[#allocation2 + $0x58] sm:$0xf] %vm1457, %v2085
  %2126 = vst.msk [vmem:[#allocation2 + $0x64] sm:$0xf] %vm1457, %v2087
  %2127 = vst.msk [vmem:[#allocation2 + $0x70] sm:$0xf] %vm1457, %v2089
  %2128 = vst.msk [vmem:[#allocation2 + $0x7c] sm:$0xf] %vm1457, %v2091
  %2129 = vst.msk [vmem:[#allocation2 + $0x88] sm:$0xf] %vm1457, %v2093
  %2130 = vst.msk [vmem:[#allocation2 + $0x94] sm:$0xf] %vm1457, %v2095
  %2131 = vst.msk [vmem:[#allocation2 + $0xa0] sm:$0xf] %vm1457, %v2097
  %2132 = vst.msk [vmem:[#allocation2 + $0xac] sm:$0xf] %vm1457, %v2099
  %2133 = vst.msk [vmem:[#allocation2 + $0xb8] sm:$0xf] %vm1457, %v2101
  %s2134 = scalar_lea.vmem %s14, 896
  %v2135 = vld [vmem:[%s2134] sm:$0xff]
  %v2136 = vld [vmem:[%s2134 + $0x8] sm:$0xff]
  %v2137 = vld [vmem:[%s2134 + $0x10] sm:$0xff]
  %v2138 = vld [vmem:[%s2134 + $0x18] sm:$0xff]
  %v2139 = vld [vmem:[%s2134 + $0x20] sm:$0xff]
  %v2140 = vld [vmem:[%s2134 + $0x28] sm:$0xff]
  %v2141 = vld [vmem:[%s2134 + $0x30] sm:$0xff]
  %v2142 = vld [vmem:[%s2134 + $0x38] sm:$0xff]
  %v2143 = vld [vmem:[%s2134 + $0x40] sm:$0xff]
  %v2144 = vld [vmem:[%s2134 + $0x48] sm:$0xff]
  %v2145 = vld [vmem:[%s2134 + $0x50] sm:$0xff]
  %v2146 = vld [vmem:[%s2134 + $0x58] sm:$0xff]
  %v2147 = vld [vmem:[%s2134 + $0x60] sm:$0xff]
  %v2148 = vld [vmem:[%s2134 + $0x68] sm:$0xff]
  %v2149 = vld [vmem:[%s2134 + $0x70] sm:$0xff]
  %v2150 = vld [vmem:[%s2134 + $0x78] sm:$0xff]
  %2152 = vset.pattern.permute.xlu0 0
  %2153 = vperm.xlu0 %2152, %v2135
  %v2154 = vpop.permute.xlu0 %2153
  %2157 = vset.pattern.permute.xlu0 0
  %2158 = vperm.xlu0 %2157, %v2136
  %v2159 = vpop.permute.xlu0 %2158
  %2162 = vset.pattern.permute.xlu0 0
  %2163 = vperm.xlu0 %2162, %v2137
  %v2164 = vpop.permute.xlu0 %2163
  %2167 = vset.pattern.permute.xlu0 0
  %2168 = vperm.xlu0 %2167, %v2138
  %v2169 = vpop.permute.xlu0 %2168
  %2172 = vset.pattern.permute.xlu0 0
  %2173 = vperm.xlu0 %2172, %v2139
  %v2174 = vpop.permute.xlu0 %2173
  %2177 = vset.pattern.permute.xlu0 0
  %2178 = vperm.xlu0 %2177, %v2140
  %v2179 = vpop.permute.xlu0 %2178
  %2182 = vset.pattern.permute.xlu0 0
  %2183 = vperm.xlu0 %2182, %v2141
  %v2184 = vpop.permute.xlu0 %2183
  %2187 = vset.pattern.permute.xlu0 0
  %2188 = vperm.xlu0 %2187, %v2142
  %v2189 = vpop.permute.xlu0 %2188
  %2192 = vset.pattern.permute.xlu0 0
  %2193 = vperm.xlu0 %2192, %v2143
  %v2194 = vpop.permute.xlu0 %2193
  %2197 = vset.pattern.permute.xlu0 0
  %2198 = vperm.xlu0 %2197, %v2144
  %v2199 = vpop.permute.xlu0 %2198
  %2202 = vset.pattern.permute.xlu0 0
  %2203 = vperm.xlu0 %2202, %v2145
  %v2204 = vpop.permute.xlu0 %2203
  %2207 = vset.pattern.permute.xlu0 0
  %2208 = vperm.xlu0 %2207, %v2146
  %v2209 = vpop.permute.xlu0 %2208
  %2212 = vset.pattern.permute.xlu0 0
  %2213 = vperm.xlu0 %2212, %v2147
  %v2214 = vpop.permute.xlu0 %2213
  %2217 = vset.pattern.permute.xlu0 0
  %2218 = vperm.xlu0 %2217, %v2148
  %v2219 = vpop.permute.xlu0 %2218
  %2222 = vset.pattern.permute.xlu0 0
  %2223 = vperm.xlu0 %2222, %v2149
  %v2224 = vpop.permute.xlu0 %2223
  %2227 = vset.pattern.permute.xlu0 0
  %2228 = vperm.xlu0 %2227, %v2150
  %v2229 = vpop.permute.xlu0 %2228
  %v2231 = vmul.f32 %v825, %v2154
  %v2232 = vmul.f32 %v826, %v2159
  %v2233 = vmul.f32 %v827, %v2164
  %v2234 = vmul.f32 %v828, %v2169
  %v2235 = vmul.f32 %v829, %v2174
  %v2236 = vmul.f32 %v830, %v2179
  %v2237 = vmul.f32 %v831, %v2184
  %v2238 = vmul.f32 %v832, %v2189
  %v2239 = vmul.f32 %v833, %v2194
  %v2240 = vmul.f32 %v834, %v2199
  %v2241 = vmul.f32 %v835, %v2204
  %v2242 = vmul.f32 %v836, %v2209
  %v2243 = vmul.f32 %v837, %v2214
  %v2244 = vmul.f32 %v838, %v2219
  %v2245 = vmul.f32 %v839, %v2224
  %v2246 = vmul.f32 %v824, %v2229
  %v2247 = vpack.c.bf16 %v2231, %v2231
  %v2248 = vpack.c.bf16 %v2232, %v2232
  %v2249 = vpack.c.bf16 %v2233, %v2233
  %v2250 = vpack.c.bf16 %v2234, %v2234
  %v2251 = vpack.c.bf16 %v2235, %v2235
  %v2252 = vpack.c.bf16 %v2236, %v2236
  %v2253 = vpack.c.bf16 %v2237, %v2237
  %v2254 = vpack.c.bf16 %v2238, %v2238
  %v2255 = vpack.c.bf16 %v2239, %v2239
  %v2256 = vpack.c.bf16 %v2240, %v2240
  %v2257 = vpack.c.bf16 %v2241, %v2241
  %v2258 = vpack.c.bf16 %v2242, %v2242
  %v2259 = vpack.c.bf16 %v2243, %v2243
  %v2260 = vpack.c.bf16 %v2244, %v2244
  %v2261 = vpack.c.bf16 %v2245, %v2245
  %v2262 = vpack.c.bf16 %v2246, %v2246
  %2279 = vrot.lane.b32.xlu0 %v2247, 96
  %v2280 = vpop.permute.xlu0 %2279
  %2281 = vrot.lane.b32.xlu0 %v2248, 96
  %v2282 = vpop.permute.xlu0 %2281
  %2283 = vrot.lane.b32.xlu0 %v2249, 96
  %v2284 = vpop.permute.xlu0 %2283
  %2285 = vrot.lane.b32.xlu0 %v2250, 96
  %v2286 = vpop.permute.xlu0 %2285
  %2287 = vrot.lane.b32.xlu0 %v2251, 96
  %v2288 = vpop.permute.xlu0 %2287
  %2289 = vrot.lane.b32.xlu0 %v2252, 96
  %v2290 = vpop.permute.xlu0 %2289
  %2291 = vrot.lane.b32.xlu0 %v2253, 96
  %v2292 = vpop.permute.xlu0 %2291
  %2293 = vrot.lane.b32.xlu0 %v2254, 96
  %v2294 = vpop.permute.xlu0 %2293
  %2295 = vrot.lane.b32.xlu0 %v2255, 96
  %v2296 = vpop.permute.xlu0 %2295
  %2297 = vrot.lane.b32.xlu0 %v2256, 96
  %v2298 = vpop.permute.xlu0 %2297
  %2299 = vrot.lane.b32.xlu0 %v2257, 96
  %v2300 = vpop.permute.xlu0 %2299
  %2301 = vrot.lane.b32.xlu0 %v2258, 96
  %v2302 = vpop.permute.xlu0 %2301
  %2303 = vrot.lane.b32.xlu0 %v2259, 96
  %v2304 = vpop.permute.xlu0 %2303
  %2305 = vrot.lane.b32.xlu0 %v2260, 96
  %v2306 = vpop.permute.xlu0 %2305
  %2307 = vrot.lane.b32.xlu0 %v2261, 96
  %v2308 = vpop.permute.xlu0 %2307
  %2309 = vrot.lane.b32.xlu0 %v2262, 96
  %v2310 = vpop.permute.xlu0 %2309
  %2327 = vst.msk [vmem:[#allocation2 + $0x4] sm:$0xf] %vm1667, %v2280
  %2328 = vst.msk [vmem:[#allocation2 + $0x10] sm:$0xf] %vm1667, %v2282
  %2329 = vst.msk [vmem:[#allocation2 + $0x1c] sm:$0xf] %vm1667, %v2284
  %2330 = vst.msk [vmem:[#allocation2 + $0x28] sm:$0xf] %vm1667, %v2286
  %2331 = vst.msk [vmem:[#allocation2 + $0x34] sm:$0xf] %vm1667, %v2288
  %2332 = vst.msk [vmem:[#allocation2 + $0x40] sm:$0xf] %vm1667, %v2290
  %2333 = vst.msk [vmem:[#allocation2 + $0x4c] sm:$0xf] %vm1667, %v2292
  %2334 = vst.msk [vmem:[#allocation2 + $0x58] sm:$0xf] %vm1667, %v2294
  %2335 = vst.msk [vmem:[#allocation2 + $0x64] sm:$0xf] %vm1667, %v2296
  %2336 = vst.msk [vmem:[#allocation2 + $0x70] sm:$0xf] %vm1667, %v2298
  %2337 = vst.msk [vmem:[#allocation2 + $0x7c] sm:$0xf] %vm1667, %v2300
  %2338 = vst.msk [vmem:[#allocation2 + $0x88] sm:$0xf] %vm1667, %v2302
  %2339 = vst.msk [vmem:[#allocation2 + $0x94] sm:$0xf] %vm1667, %v2304
  %2340 = vst.msk [vmem:[#allocation2 + $0xa0] sm:$0xf] %vm1667, %v2306
  %2341 = vst.msk [vmem:[#allocation2 + $0xac] sm:$0xf] %vm1667, %v2308
  %2342 = vst.msk [vmem:[#allocation2 + $0xb8] sm:$0xf] %vm1667, %v2310
  %s2343 = scalar_lea.vmem %s14, 1024
  %v2344 = vld [vmem:[%s2343] sm:$0xff]
  %v2345 = vld [vmem:[%s2343 + $0x8] sm:$0xff]
  %v2346 = vld [vmem:[%s2343 + $0x10] sm:$0xff]
  %v2347 = vld [vmem:[%s2343 + $0x18] sm:$0xff]
  %v2348 = vld [vmem:[%s2343 + $0x20] sm:$0xff]
  %v2349 = vld [vmem:[%s2343 + $0x28] sm:$0xff]
  %v2350 = vld [vmem:[%s2343 + $0x30] sm:$0xff]
  %v2351 = vld [vmem:[%s2343 + $0x38] sm:$0xff]
  %v2352 = vld [vmem:[%s2343 + $0x40] sm:$0xff]
  %v2353 = vld [vmem:[%s2343 + $0x48] sm:$0xff]
  %v2354 = vld [vmem:[%s2343 + $0x50] sm:$0xff]
  %v2355 = vld [vmem:[%s2343 + $0x58] sm:$0xff]
  %v2356 = vld [vmem:[%s2343 + $0x60] sm:$0xff]
  %v2357 = vld [vmem:[%s2343 + $0x68] sm:$0xff]
  %v2358 = vld [vmem:[%s2343 + $0x70] sm:$0xff]
  %v2359 = vld [vmem:[%s2343 + $0x78] sm:$0xff]
  %2361 = vset.pattern.permute.xlu0 0
  %2362 = vperm.xlu0 %2361, %v2344
  %v2363 = vpop.permute.xlu0 %2362
  %2366 = vset.pattern.permute.xlu0 0
  %2367 = vperm.xlu0 %2366, %v2345
  %v2368 = vpop.permute.xlu0 %2367
  %2371 = vset.pattern.permute.xlu0 0
  %2372 = vperm.xlu0 %2371, %v2346
  %v2373 = vpop.permute.xlu0 %2372
  %2376 = vset.pattern.permute.xlu0 0
  %2377 = vperm.xlu0 %2376, %v2347
  %v2378 = vpop.permute.xlu0 %2377
  %2381 = vset.pattern.permute.xlu0 0
  %2382 = vperm.xlu0 %2381, %v2348
  %v2383 = vpop.permute.xlu0 %2382
  %2386 = vset.pattern.permute.xlu0 0
  %2387 = vperm.xlu0 %2386, %v2349
  %v2388 = vpop.permute.xlu0 %2387
  %2391 = vset.pattern.permute.xlu0 0
  %2392 = vperm.xlu0 %2391, %v2350
  %v2393 = vpop.permute.xlu0 %2392
  %2396 = vset.pattern.permute.xlu0 0
  %2397 = vperm.xlu0 %2396, %v2351
  %v2398 = vpop.permute.xlu0 %2397
  %2401 = vset.pattern.permute.xlu0 0
  %2402 = vperm.xlu0 %2401, %v2352
  %v2403 = vpop.permute.xlu0 %2402
  %2406 = vset.pattern.permute.xlu0 0
  %2407 = vperm.xlu0 %2406, %v2353
  %v2408 = vpop.permute.xlu0 %2407
  %2411 = vset.pattern.permute.xlu0 0
  %2412 = vperm.xlu0 %2411, %v2354
  %v2413 = vpop.permute.xlu0 %2412
  %2416 = vset.pattern.permute.xlu0 0
  %2417 = vperm.xlu0 %2416, %v2355
  %v2418 = vpop.permute.xlu0 %2417
  %2421 = vset.pattern.permute.xlu0 0
  %2422 = vperm.xlu0 %2421, %v2356
  %v2423 = vpop.permute.xlu0 %2422
  %2426 = vset.pattern.permute.xlu0 0
  %2427 = vperm.xlu0 %2426, %v2357
  %v2428 = vpop.permute.xlu0 %2427
  %2431 = vset.pattern.permute.xlu0 0
  %2432 = vperm.xlu0 %2431, %v2358
  %v2433 = vpop.permute.xlu0 %2432
  %2436 = vset.pattern.permute.xlu0 0
  %2437 = vperm.xlu0 %2436, %v2359
  %v2438 = vpop.permute.xlu0 %2437
  %v2440 = vmul.f32 %v1261, %v2363
  %v2441 = vmul.f32 %v1260, %v2368
  %v2442 = vmul.f32 %v1259, %v2373
  %v2443 = vmul.f32 %v1258, %v2378
  %v2444 = vmul.f32 %v1257, %v2383
  %v2445 = vmul.f32 %v1256, %v2388
  %v2446 = vmul.f32 %v1255, %v2393
  %v2447 = vmul.f32 %v1254, %v2398
  %v2448 = vmul.f32 %v1253, %v2403
  %v2449 = vmul.f32 %v1252, %v2408
  %v2450 = vmul.f32 %v1251, %v2413
  %v2451 = vmul.f32 %v1250, %v2418
  %v2452 = vmul.f32 %v1249, %v2423
  %v2453 = vmul.f32 %v1248, %v2428
  %v2454 = vmul.f32 %v1263, %v2433
  %v2455 = vmul.f32 %v1262, %v2438
  %v2456 = vpack.c.bf16 %v2440, %v2440
  %v2457 = vpack.c.bf16 %v2441, %v2441
  %v2458 = vpack.c.bf16 %v2442, %v2442
  %v2459 = vpack.c.bf16 %v2443, %v2443
  %v2460 = vpack.c.bf16 %v2444, %v2444
  %v2461 = vpack.c.bf16 %v2445, %v2445
  %v2462 = vpack.c.bf16 %v2446, %v2446
  %v2463 = vpack.c.bf16 %v2447, %v2447
  %v2464 = vpack.c.bf16 %v2448, %v2448
  %v2465 = vpack.c.bf16 %v2449, %v2449
  %v2466 = vpack.c.bf16 %v2450, %v2450
  %v2467 = vpack.c.bf16 %v2451, %v2451
  %v2468 = vpack.c.bf16 %v2452, %v2452
  %v2469 = vpack.c.bf16 %v2453, %v2453
  %v2470 = vpack.c.bf16 %v2454, %v2454
  %v2471 = vpack.c.bf16 %v2455, %v2455
  %2472 = vst.msk [vmem:[#allocation2 + $0x8] sm:$0xf] %vm1004, %v2456
  %2473 = vst.msk [vmem:[#allocation2 + $0x14] sm:$0xf] %vm1004, %v2457
  %2474 = vst.msk [vmem:[#allocation2 + $0x20] sm:$0xf] %vm1004, %v2458
  %2475 = vst.msk [vmem:[#allocation2 + $0x2c] sm:$0xf] %vm1004, %v2459
  %2476 = vst.msk [vmem:[#allocation2 + $0x38] sm:$0xf] %vm1004, %v2460
  %2477 = vst.msk [vmem:[#allocation2 + $0x44] sm:$0xf] %vm1004, %v2461
  %2478 = vst.msk [vmem:[#allocation2 + $0x50] sm:$0xf] %vm1004, %v2462
  %2479 = vst.msk [vmem:[#allocation2 + $0x5c] sm:$0xf] %vm1004, %v2463
  %2480 = vst.msk [vmem:[#allocation2 + $0x68] sm:$0xf] %vm1004, %v2464
  %2481 = vst.msk [vmem:[#allocation2 + $0x74] sm:$0xf] %vm1004, %v2465
  %2482 = vst.msk [vmem:[#allocation2 + $0x80] sm:$0xf] %vm1004, %v2466
  %2483 = vst.msk [vmem:[#allocation2 + $0x8c] sm:$0xf] %vm1004, %v2467
  %2484 = vst.msk [vmem:[#allocation2 + $0x98] sm:$0xf] %vm1004, %v2468
  %2485 = vst.msk [vmem:[#allocation2 + $0xa4] sm:$0xf] %vm1004, %v2469
  %2486 = vst.msk [vmem:[#allocation2 + $0xb0] sm:$0xf] %vm1004, %v2470
  %2487 = vst.msk [vmem:[#allocation2 + $0xbc] sm:$0xf] %vm1004, %v2471
  %v2488 = vld [vmem:[#allocation2] sm:$0xff]
  %v2489 = vld [vmem:[#allocation2 + $0x8] sm:$0xf]
  %v2490 = vld [vmem:[#allocation2 + $0xc] sm:$0xff]
  %v2491 = vld [vmem:[#allocation2 + $0x14] sm:$0xf]
  %v2492 = vld [vmem:[#allocation2 + $0x18] sm:$0xff]
  %v2493 = vld [vmem:[#allocation2 + $0x20] sm:$0xf]
  %v2494 = vld [vmem:[#allocation2 + $0x24] sm:$0xff]
  %v2495 = vld [vmem:[#allocation2 + $0x2c] sm:$0xf]
  %v2496 = vld [vmem:[#allocation2 + $0x30] sm:$0xff]
  %v2497 = vld [vmem:[#allocation2 + $0x38] sm:$0xf]
  %v2498 = vld [vmem:[#allocation2 + $0x3c] sm:$0xff]
  %v2499 = vld [vmem:[#allocation2 + $0x44] sm:$0xf]
  %v2500 = vld [vmem:[#allocation2 + $0x48] sm:$0xff]
  %v2501 = vld [vmem:[#allocation2 + $0x50] sm:$0xf]
  %v2502 = vld [vmem:[#allocation2 + $0x54] sm:$0xff]
  %v2503 = vld [vmem:[#allocation2 + $0x5c] sm:$0xf]
  %v2504 = vld [vmem:[#allocation2 + $0x60] sm:$0xff]
  %v2505 = vld [vmem:[#allocation2 + $0x68] sm:$0xf]
  %v2506 = vld [vmem:[#allocation2 + $0x6c] sm:$0xff]
  %v2507 = vld [vmem:[#allocation2 + $0x74] sm:$0xf]
  %v2508 = vld [vmem:[#allocation2 + $0x78] sm:$0xff]
  %v2509 = vld [vmem:[#allocation2 + $0x80] sm:$0xf]
  %v2510 = vld [vmem:[#allocation2 + $0x84] sm:$0xff]
  %v2511 = vld [vmem:[#allocation2 + $0x8c] sm:$0xf]
  %v2512 = vld [vmem:[#allocation2 + $0x90] sm:$0xff]
  %v2513 = vld [vmem:[#allocation2 + $0x98] sm:$0xf]
  %v2514 = vld [vmem:[#allocation2 + $0x9c] sm:$0xff]
  %v2515 = vld [vmem:[#allocation2 + $0xa4] sm:$0xf]
  %v2516 = vld [vmem:[#allocation2 + $0xa8] sm:$0xff]
  %v2517 = vld [vmem:[#allocation2 + $0xb0] sm:$0xf]
  %v2518 = vld [vmem:[#allocation2 + $0xb4] sm:$0xff]
  %v2519 = vld [vmem:[#allocation2 + $0xbc] sm:$0xf]
  %v2520 = vld [vmem:[%s4] sm:$0xf]
  %v2521 = vld [vmem:[%s4 + $0x4] sm:$0xf]
  %v2522 = vld [vmem:[%s4 + $0x8] sm:$0xf]
  %v2523 = vld [vmem:[%s4 + $0xc] sm:$0xf]
  %v2524 = vld [vmem:[%s4 + $0x10] sm:$0xf]
  %v2525 = vld [vmem:[%s4 + $0x14] sm:$0xf]
  %v2526 = vld [vmem:[%s4 + $0x18] sm:$0xf]
  %v2527 = vld [vmem:[%s4 + $0x1c] sm:$0xf]
  %v2528 = vld [vmem:[%s4 + $0x20] sm:$0xf]
  %v2529 = vld [vmem:[%s4 + $0x24] sm:$0xf]
  %v2530 = vld [vmem:[%s4 + $0x28] sm:$0xf]
  %v2531 = vld [vmem:[%s4 + $0x2c] sm:$0xf]
  %v2532 = vld [vmem:[%s4 + $0x30] sm:$0xf]
  %v2533 = vld [vmem:[%s4 + $0x34] sm:$0xf]
  %v2534 = vld [vmem:[%s4 + $0x38] sm:$0xf]
  %v2535 = vld [vmem:[%s4 + $0x3c] sm:$0xf]
  %v2536 = vld [vmem:[%s4 + $0x40] sm:$0xf]
  %v2537 = vld [vmem:[%s4 + $0x44] sm:$0xf]
  %v2538 = vld [vmem:[%s4 + $0x48] sm:$0xf]
  %v2539 = vld [vmem:[%s4 + $0x4c] sm:$0xf]
  %v2540 = vld [vmem:[%s4 + $0x50] sm:$0xf]
  %v2541 = vld [vmem:[%s4 + $0x54] sm:$0xf]
  %v2542 = vld [vmem:[%s4 + $0x58] sm:$0xf]
  %v2543 = vld [vmem:[%s4 + $0x5c] sm:$0xf]
  %v2544 = vld [vmem:[%s4 + $0x60] sm:$0xf]
  %v2545 = vld [vmem:[%s4 + $0x64] sm:$0xf]
  %v2546 = vld [vmem:[%s4 + $0x68] sm:$0xf]
  %v2547 = vld [vmem:[%s4 + $0x6c] sm:$0xf]
  %v2548 = vld [vmem:[%s4 + $0x70] sm:$0xf]
  %v2549 = vld [vmem:[%s4 + $0x74] sm:$0xf]
  %v2550 = vld [vmem:[%s4 + $0x78] sm:$0xf]
  %v2551 = vld [vmem:[%s4 + $0x7c] sm:$0xf]
  %v2552 = vld [vmem:[%s4 + $0x80] sm:$0xf]
  %v2553 = vld [vmem:[%s4 + $0x84] sm:$0xf]
  %v2554 = vld [vmem:[%s4 + $0x88] sm:$0xf]
  %v2555 = vld [vmem:[%s4 + $0x8c] sm:$0xf]
  %v2557 = vperm.slane %v840, 0
  %v2591 = vunpack.c.l.b16 %v2488
  %v2592 = vunpack.c.h.b16 %v2488
  %v2593 = vunpack.c.l.b16 %v2489
  %v2594 = vunpack.c.l.b16 %v2490
  %v2595 = vunpack.c.h.b16 %v2490
  %v2596 = vunpack.c.l.b16 %v2491
  %v2597 = vunpack.c.l.b16 %v2492
  %v2598 = vunpack.c.h.b16 %v2492
  %v2599 = vunpack.c.l.b16 %v2493
  %v2600 = vunpack.c.l.b16 %v2494
  %v2601 = vunpack.c.h.b16 %v2494
  %v2602 = vunpack.c.l.b16 %v2495
  %v2603 = vunpack.c.l.b16 %v2496
  %v2604 = vunpack.c.h.b16 %v2496
  %v2605 = vunpack.c.l.b16 %v2497
  %v2606 = vunpack.c.l.b16 %v2498
  %v2607 = vunpack.c.h.b16 %v2498
  %v2608 = vunpack.c.l.b16 %v2499
  %v2609 = vunpack.c.l.b16 %v2500
  %v2610 = vunpack.c.h.b16 %v2500
  %v2611 = vunpack.c.l.b16 %v2501
  %v2612 = vunpack.c.l.b16 %v2502
  %v2613 = vunpack.c.h.b16 %v2502
  %v2614 = vunpack.c.l.b16 %v2503
  %v2615 = vunpack.c.l.b16 %v2504
  %v2616 = vunpack.c.h.b16 %v2504
  %v2617 = vunpack.c.l.b16 %v2505
  %v2618 = vunpack.c.l.b16 %v2506
  %v2619 = vunpack.c.h.b16 %v2506
  %v2620 = vunpack.c.l.b16 %v2507
  %v2621 = vunpack.c.l.b16 %v2508
  %v2622 = vunpack.c.h.b16 %v2508
  %v2623 = vunpack.c.l.b16 %v2509
  %v2624 = vunpack.c.l.b16 %v2510
  %v2625 = vunpack.c.h.b16 %v2510
  %v2626 = vunpack.c.l.b16 %v2511
  %v2627 = vunpack.c.l.b16 %v2512
  %v2628 = vunpack.c.h.b16 %v2512
  %v2629 = vunpack.c.l.b16 %v2513
  %v2630 = vunpack.c.l.b16 %v2514
  %v2631 = vunpack.c.h.b16 %v2514
  %v2632 = vunpack.c.l.b16 %v2515
  %v2633 = vunpack.c.l.b16 %v2516
  %v2634 = vunpack.c.h.b16 %v2516
  %v2635 = vunpack.c.l.b16 %v2517
  %v2636 = vunpack.c.l.b16 %v2518
  %v2637 = vunpack.c.h.b16 %v2518
  %v2638 = vunpack.c.l.b16 %v2519
  %v2639 = vpack.c.b16 %v2594, %v2591
  %v2640 = vpack.c.b16 %v2595, %v2592
  %v2641 = vpack.c.b16 %v2596, %v2593
  %v2642 = vpack.c.b16 %v2600, %v2597
  %v2643 = vpack.c.b16 %v2601, %v2598
  %v2644 = vpack.c.b16 %v2602, %v2599
  %v2645 = vpack.c.b16 %v2606, %v2603
  %v2646 = vpack.c.b16 %v2607, %v2604
  %v2647 = vpack.c.b16 %v2608, %v2605
  %v2648 = vpack.c.b16 %v2612, %v2609
  %v2649 = vpack.c.b16 %v2613, %v2610
  %v2650 = vpack.c.b16 %v2614, %v2611
  %v2651 = vpack.c.b16 %v2618, %v2615
  %v2652 = vpack.c.b16 %v2619, %v2616
  %v2653 = vpack.c.b16 %v2620, %v2617
  %v2654 = vpack.c.b16 %v2624, %v2621
  %v2655 = vpack.c.b16 %v2625, %v2622
  %v2656 = vpack.c.b16 %v2626, %v2623
  %v2657 = vpack.c.b16 %v2630, %v2627
  %v2658 = vpack.c.b16 %v2631, %v2628
  %v2659 = vpack.c.b16 %v2632, %v2629
  %v2660 = vpack.c.b16 %v2636, %v2633
  %v2661 = vpack.c.b16 %v2637, %v2634
  %v2662 = vpack.c.b16 %v2638, %v2635
  %v2715 = vunpack.c.l.b16 %v2520
  %v2716 = vunpack.c.l.b16 %v2521
  %v2717 = vunpack.c.l.b16 %v2522
  %v2718 = vunpack.c.l.b16 %v2523
  %v2719 = vunpack.c.l.b16 %v2524
  %v2720 = vunpack.c.l.b16 %v2525
  %v2721 = vunpack.c.l.b16 %v2526
  %v2722 = vunpack.c.l.b16 %v2527
  %v2723 = vunpack.c.l.b16 %v2528
  %v2724 = vunpack.c.l.b16 %v2529
  %v2725 = vunpack.c.l.b16 %v2530
  %v2726 = vunpack.c.l.b16 %v2531
  %v2727 = vunpack.c.l.b16 %v2532
  %v2728 = vunpack.c.l.b16 %v2533
  %v2729 = vunpack.c.l.b16 %v2534
  %v2730 = vunpack.c.l.b16 %v2535
  %v2731 = vunpack.c.l.b16 %v2536
  %v2732 = vunpack.c.l.b16 %v2537
  %v2733 = vunpack.c.l.b16 %v2538
  %v2734 = vunpack.c.l.b16 %v2539
  %v2735 = vunpack.c.l.b16 %v2540
  %v2736 = vunpack.c.l.b16 %v2541
  %v2737 = vunpack.c.l.b16 %v2542
  %v2738 = vunpack.c.l.b16 %v2543
  %v2739 = vunpack.c.l.b16 %v2544
  %v2740 = vunpack.c.l.b16 %v2545
  %v2741 = vunpack.c.l.b16 %v2546
  %v2742 = vunpack.c.l.b16 %v2547
  %v2743 = vunpack.c.l.b16 %v2548
  %v2744 = vunpack.c.l.b16 %v2549
  %v2745 = vunpack.c.l.b16 %v2550
  %v2746 = vunpack.c.l.b16 %v2551
  %v2747 = vunpack.c.l.b16 %v2552
  %v2748 = vunpack.c.l.b16 %v2553
  %v2749 = vunpack.c.l.b16 %v2554
  %v2750 = vunpack.c.l.b16 %v2555
  %v2751 = vpack.c.b16 %v2716, %v2715
  %v2752 = vpack.c.b16 %v2718, %v2717
  %v2753 = vpack.c.b16 %v2720, %v2719
  %v2754 = vpack.c.b16 %v2722, %v2721
  %v2755 = vpack.c.b16 %v2724, %v2723
  %v2756 = vpack.c.b16 %v2726, %v2725
  %v2757 = vpack.c.b16 %v2728, %v2727
  %v2758 = vpack.c.b16 %v2730, %v2729
  %v2759 = vpack.c.b16 %v2732, %v2731
  %v2760 = vpack.c.b16 %v2734, %v2733
  %v2761 = vpack.c.b16 %v2736, %v2735
  %v2762 = vpack.c.b16 %v2738, %v2737
  %v2763 = vpack.c.b16 %v2740, %v2739
  %v2764 = vpack.c.b16 %v2742, %v2741
  %v2765 = vpack.c.b16 %v2744, %v2743
  %v2766 = vpack.c.b16 %v2746, %v2745
  %v2767 = vpack.c.b16 %v2748, %v2747
  %v2768 = vpack.c.b16 %v2750, %v2749
  %v2788 = vsel %vm156, %v2641, 0
  %v2791 = vsel %vm156, %v2644, 0
  %v2794 = vsel %vm156, %v2647, 0
  %v2797 = vsel %vm156, %v2650, 0
  %v2800 = vsel %vm156, %v2653, 0
  %v2803 = vsel %vm156, %v2656, 0
  %v2806 = vsel %vm156, %v2659, 0
  %v2809 = vsel %vm156, %v2662, 0
  %2811 = vmatpush.bf16.msra.mxu0 %v2758
  %2812 = vmatpush.bf16.msra.mxu0 %v2757
  %2813 = vmatpush.bf16.msra.mxu0 %v2756
  %2814 = vmatpush.bf16.msra.mxu0 %v2755
  %2815 = vmatpush.bf16.msra.mxu0 %v2754
  %2816 = vmatpush.bf16.msra.mxu0 %v2753
  %2817 = vmatpush.bf16.msra.mxu0 %v2752
  %2818 = vmatpush.bf16.msra.mxu0 %v2751
  %2819 = vmatmul.bf16.gmra.mxu0 %v2639
  %v2820 = vpop.f32.mrf.mxu0
  %v2821 = vadd.f32 %v2557, %v2820
  %v2822 = vpop.f32.mrf.mxu0
  %v2823 = vadd.f32 %v2557, %v2822
  %2824 = vmatmul.bf16.gmra.mxu0 %v2642
  %v2825 = vpop.f32.mrf.mxu0
  %v2826 = vadd.f32 %v2557, %v2825
  %v2827 = vpop.f32.mrf.mxu0
  %v2828 = vadd.f32 %v2557, %v2827
  %2829 = vmatmul.bf16.gmra.mxu0 %v2645
  %v2830 = vpop.f32.mrf.mxu0
  %v2831 = vadd.f32 %v2557, %v2830
  %v2832 = vpop.f32.mrf.mxu0
  %v2833 = vadd.f32 %v2557, %v2832
  %2834 = vmatmul.bf16.gmra.mxu0 %v2648
  %v2835 = vpop.f32.mrf.mxu0
  %v2836 = vadd.f32 %v2557, %v2835
  %v2837 = vpop.f32.mrf.mxu0
  %v2838 = vadd.f32 %v2557, %v2837
  %2839 = vmatmul.bf16.gmra.mxu0 %v2651
  %v2840 = vpop.f32.mrf.mxu0
  %v2841 = vadd.f32 %v2557, %v2840
  %v2842 = vpop.f32.mrf.mxu0
  %v2843 = vadd.f32 %v2557, %v2842
  %2844 = vmatmul.bf16.gmra.mxu0 %v2654
  %v2845 = vpop.f32.mrf.mxu0
  %v2846 = vadd.f32 %v2557, %v2845
  %v2847 = vpop.f32.mrf.mxu0
  %v2848 = vadd.f32 %v2557, %v2847
  %2849 = vmatmul.bf16.gmra.mxu0 %v2657
  %v2850 = vpop.f32.mrf.mxu0
  %v2851 = vadd.f32 %v2557, %v2850
  %v2852 = vpop.f32.mrf.mxu0
  %v2853 = vadd.f32 %v2557, %v2852
  %2854 = vmatmul.bf16.gmra.mxu0 %v2660
  %v2855 = vpop.f32.mrf.mxu0
  %v2856 = vadd.f32 %v2557, %v2855
  %v2857 = vpop.f32.mrf.mxu0
  %v2858 = vadd.f32 %v2557, %v2857
  %2859 = vdwg.mxu0
  %2860 = vmatpush.bf16.msra.mxu0 %v2766
  %2861 = vmatpush.bf16.msra.mxu0 %v2765
  %2862 = vmatpush.bf16.msra.mxu0 %v2764
  %2863 = vmatpush.bf16.msra.mxu0 %v2763
  %2864 = vmatpush.bf16.msra.mxu0 %v2762
  %2865 = vmatpush.bf16.msra.mxu0 %v2761
  %2866 = vmatpush.bf16.msra.mxu0 %v2760
  %2867 = vmatpush.bf16.msra.mxu0 %v2759
  %2868 = vmatmul.bf16.gmra.mxu0 %v2640
  %v2869 = vpop.f32.mrf.mxu0
  %v2870 = vadd.f32 %v2821, %v2869
  %v2871 = vpop.f32.mrf.mxu0
  %v2872 = vadd.f32 %v2823, %v2871
  %2873 = vmatmul.bf16.gmra.mxu0 %v2643
  %v2874 = vpop.f32.mrf.mxu0
  %v2875 = vadd.f32 %v2826, %v2874
  %v2876 = vpop.f32.mrf.mxu0
  %v2877 = vadd.f32 %v2828, %v2876
  %2878 = vmatmul.bf16.gmra.mxu0 %v2646
  %v2879 = vpop.f32.mrf.mxu0
  %v2880 = vadd.f32 %v2831, %v2879
  %v2881 = vpop.f32.mrf.mxu0
  %v2882 = vadd.f32 %v2833, %v2881
  %2883 = vmatmul.bf16.gmra.mxu0 %v2649
  %v2884 = vpop.f32.mrf.mxu0
  %v2885 = vadd.f32 %v2836, %v2884
  %v2886 = vpop.f32.mrf.mxu0
  %v2887 = vadd.f32 %v2838, %v2886
  %2888 = vmatmul.bf16.gmra.mxu0 %v2652
  %v2889 = vpop.f32.mrf.mxu0
  %v2890 = vadd.f32 %v2841, %v2889
  %v2891 = vpop.f32.mrf.mxu0
  %v2892 = vadd.f32 %v2843, %v2891
  %2893 = vmatmul.bf16.gmra.mxu0 %v2655
  %v2894 = vpop.f32.mrf.mxu0
  %v2895 = vadd.f32 %v2846, %v2894
  %v2896 = vpop.f32.mrf.mxu0
  %v2897 = vadd.f32 %v2848, %v2896
  %2898 = vmatmul.bf16.gmra.mxu0 %v2658
  %v2899 = vpop.f32.mrf.mxu0
  %v2900 = vadd.f32 %v2851, %v2899
  %v2901 = vpop.f32.mrf.mxu0
  %v2902 = vadd.f32 %v2853, %v2901
  %2903 = vmatmul.bf16.gmra.mxu0 %v2661
  %v2904 = vpop.f32.mrf.mxu0
  %v2905 = vadd.f32 %v2856, %v2904
  %v2906 = vpop.f32.mrf.mxu0
  %v2907 = vadd.f32 %v2858, %v2906
  %2908 = vdwg.mxu0
  %2909 = vmatpush.bf16.msra.mxu0 0
  %2910 = vmatpush.bf16.msra.mxu0 0
  %2911 = vmatpush.bf16.msra.mxu0 0
  %2912 = vmatpush.bf16.msra.mxu0 0
  %2913 = vmatpush.bf16.msra.mxu0 0
  %2914 = vmatpush.bf16.msra.mxu0 0
  %2915 = vmatpush.bf16.msra.mxu0 %v2768
  %2916 = vmatpush.bf16.msra.mxu0 %v2767
  %2917 = vmatmul.bf16.gmra.mxu0 %v2788
  %v2918 = vpop.f32.mrf.mxu0
  %v2919 = vadd.f32 %v2870, %v2918
  %v2920 = vpop.f32.mrf.mxu0
  %v2921 = vadd.f32 %v2872, %v2920
  %2922 = vmatmul.bf16.gmra.mxu0 %v2791
  %v2923 = vpop.f32.mrf.mxu0
  %v2924 = vadd.f32 %v2875, %v2923
  %v2925 = vpop.f32.mrf.mxu0
  %v2926 = vadd.f32 %v2877, %v2925
  %2927 = vmatmul.bf16.gmra.mxu0 %v2794
  %v2928 = vpop.f32.mrf.mxu0
  %v2929 = vadd.f32 %v2880, %v2928
  %v2930 = vpop.f32.mrf.mxu0
  %v2931 = vadd.f32 %v2882, %v2930
  %2932 = vmatmul.bf16.gmra.mxu0 %v2797
  %v2933 = vpop.f32.mrf.mxu0
  %v2934 = vadd.f32 %v2885, %v2933
  %v2935 = vpop.f32.mrf.mxu0
  %v2936 = vadd.f32 %v2887, %v2935
  %2937 = vmatmul.bf16.gmra.mxu0 %v2800
  %v2938 = vpop.f32.mrf.mxu0
  %v2939 = vadd.f32 %v2890, %v2938
  %v2940 = vpop.f32.mrf.mxu0
  %v2941 = vadd.f32 %v2892, %v2940
  %2942 = vmatmul.bf16.gmra.mxu0 %v2803
  %v2943 = vpop.f32.mrf.mxu0
  %v2944 = vadd.f32 %v2895, %v2943
  %v2945 = vpop.f32.mrf.mxu0
  %v2946 = vadd.f32 %v2897, %v2945
  %2947 = vmatmul.bf16.gmra.mxu0 %v2806
  %v2948 = vpop.f32.mrf.mxu0
  %v2949 = vadd.f32 %v2900, %v2948
  %v2950 = vpop.f32.mrf.mxu0
  %v2951 = vadd.f32 %v2902, %v2950
  %2952 = vmatmul.bf16.gmra.mxu0 %v2809
  %v2953 = vpop.f32.mrf.mxu0
  %v2954 = vadd.f32 %v2905, %v2953
  %v2955 = vpop.f32.mrf.mxu0
  %v2956 = vadd.f32 %v2907, %v2955
  %2957 = vdwg.mxu0
  %v2958 = vld [vmem:[%s1] sm:$0x1]
  %v2959 = vld [vmem:[%s1 + $0x1] sm:$0x1]
  %v2960 = vxor.u32 %v2958, 2147483648
  %v2961 = vxor.u32 %v2959, 2147483648
  %v2962 = vmul.f32 %v2960, 1.442695
  %v2963 = vpow.pop %v2962
  %v2964 = vmul.f32 %v2961, 1.442695
  %v2965 = vpow.pop %v2964
  %v2966 = vadd.f32 %v2963, 1.0
  %v2967 = vadd.f32 %v2965, 1.0
  %v2968 = vrcp.pop %v2966
  %v2969 = vmul.f32 %v2966, %v2968
  %v2970 = vsub.f32 1.0, %v2969
  %v2971 = vmul.f32 %v2968, %v2970
  %v2972 = vadd.f32 %v2968, %v2971
  %vm2973 = vweird.f32 %v2966
  %vm2974 = vweird.f32 %v2968
  %vm2975 = vmor %vm2973, %vm2974
  %v2976 = vsel %vm2975, %v2968, %v2972
  %v2977 = vand.u32 2147483647, %v2966
  %vm2978 = vcmp.eq.f32.partialorder %v2977, 8.507059e+37
  %v2979 = vand.u32 %v2966, 2147483648
  %v2980 = vor.u32 1.1754944e-38, %v2979
  %v2981 = vsel %vm2978, %v2980, %v2976
  %v2982 = vmul.f32 1.0, %v2981
  %v2983 = vrcp.pop %v2967
  %v2984 = vmul.f32 %v2967, %v2983
  %v2985 = vsub.f32 1.0, %v2984
  %v2986 = vmul.f32 %v2983, %v2985
  %v2987 = vadd.f32 %v2983, %v2986
  %vm2988 = vweird.f32 %v2967
  %vm2989 = vweird.f32 %v2983
  %vm2990 = vmor %vm2988, %vm2989
  %v2991 = vsel %vm2990, %v2983, %v2987
  %v2992 = vand.u32 2147483647, %v2967
  %vm2993 = vcmp.eq.f32.partialorder %v2992, 8.507059e+37
  %v2994 = vand.u32 %v2967, 2147483648
  %v2995 = vor.u32 1.1754944e-38, %v2994
  %v2996 = vsel %vm2993, %v2995, %v2991
  %v2997 = vmul.f32 1.0, %v2996
  %v2998 = vmul.f32 %v2958, %v2982
  %v2999 = vmul.f32 %v2959, %v2997
  %v3000 = vpack.c.bf16 %v2998, %v2998
  %v3001 = vpack.c.bf16 %v2999, %v2999
  %v3002 = vld [vmem:[%s6] sm:$0xf]
  %v3003 = vld [vmem:[%s6 + $0x4] sm:$0xf]
  %v3004 = vld [vmem:[%s7] sm:$0x1]
  %v3006 = vperm.slane %v3004, 0
  %v3010 = vunpack.c.l.b16 %v3000
  %v3011 = vunpack.c.l.b16 %v3001
  %v3012 = vrot.slane %v3011, 7
  %vm3013 = vcmask 1041409
  %v3014 = vsel %vm3013, %v3012, %v3010
  %v3015 = vpack.c.b16 %v3014, %v3014
  %v3018 = vunpack.c.l.b16 %v3002
  %v3019 = vunpack.c.l.b16 %v3003
  %v3020 = vpack.c.b16 %v3019, %v3018
  %vm3022 = vcmask 130048
  %v3024 = vsel %vm3022, %v3015, 0
  %3026 = vmatpush.bf16.msra.mxu0 0
  %3027 = vmatpush.bf16.msra.mxu0 0
  %3028 = vmatpush.bf16.msra.mxu0 0
  %3029 = vmatpush.bf16.msra.mxu0 0
  %3030 = vmatpush.bf16.msra.mxu0 0
  %3031 = vmatpush.bf16.msra.mxu0 0
  %3032 = vmatpush.bf16.msra.mxu0 0
  %3033 = vmatpush.bf16.msra.mxu0 %v3020
  %3034 = vmatmul.bf16.gmra.mxu0 %v3024
  %v3035 = vpop.f32.mrf.mxu0
  %v3036 = vadd.f32 %v3006, %v3035
  %v3037 = vpop.f32.mrf.mxu0
  %3038 = vdwg.mxu0
  %v3040 = vsel %vm290, %v3036, 0
  %3042 = vmatpush.msra.mxu0 0.0
  %3043 = vmatpush.msra.mxu0 0.0
  %3044 = vmatpush.msra.mxu0 0.0
  %3045 = vmatpush.msra.mxu0 0.0
  %3046 = vmatpush.msra.mxu0 0.0
  %3047 = vmatpush.msra.mxu0 0.0
  %3048 = vmatpush.msra.mxu0 0.0
  %3049 = vmatpush.msra.mxu0 0.0
  %3050 = vmatpush.msra.mxu0 0.0
  %3051 = vmatpush.msra.mxu0 0.0
  %3052 = vmatpush.msra.mxu0 0.0
  %3053 = vmatpush.msra.mxu0 0.0
  %3054 = vmatpush.msra.mxu0 0.0
  %3055 = vmatpush.msra.mxu0 0.0
  %3056 = vmatpush.msra.mxu0 0.0
  %3057 = vmatpush.msra.mxu0 %v3040
  %3058 = vmatmul.f32.gmra.mxu0 %v243
  %v3059 = vpop.f32.mrf.mxu0
  %v3060 = vadd.f32 0.0, %v3059
  %3061 = vmatmul.f32.gmra.mxu0 %v246
  %v3062 = vpop.f32.mrf.mxu0
  %v3063 = vadd.f32 0.0, %v3062
  %3064 = vmatmul.f32.gmra.mxu0 %v249
  %v3065 = vpop.f32.mrf.mxu0
  %v3066 = vadd.f32 0.0, %v3065
  %3067 = vmatmul.f32.gmra.mxu0 %v252
  %v3068 = vpop.f32.mrf.mxu0
  %v3069 = vadd.f32 0.0, %v3068
  %3070 = vmatmul.f32.gmra.mxu0 %v255
  %v3071 = vpop.f32.mrf.mxu0
  %v3072 = vadd.f32 0.0, %v3071
  %3073 = vmatmul.f32.gmra.mxu0 %v258
  %v3074 = vpop.f32.mrf.mxu0
  %v3075 = vadd.f32 0.0, %v3074
  %3076 = vmatmul.f32.gmra.mxu0 %v261
  %v3077 = vpop.f32.mrf.mxu0
  %v3078 = vadd.f32 0.0, %v3077
  %3079 = vmatmul.f32.gmra.mxu0 %v264
  %v3080 = vpop.f32.mrf.mxu0
  %v3081 = vadd.f32 0.0, %v3080
  %3082 = vmatmul.f32.gmra.mxu0 %v267
  %v3083 = vpop.f32.mrf.mxu0
  %v3084 = vadd.f32 0.0, %v3083
  %3085 = vmatmul.f32.gmra.mxu0 %v270
  %v3086 = vpop.f32.mrf.mxu0
  %v3087 = vadd.f32 0.0, %v3086
  %3088 = vmatmul.f32.gmra.mxu0 %v273
  %v3089 = vpop.f32.mrf.mxu0
  %v3090 = vadd.f32 0.0, %v3089
  %3091 = vmatmul.f32.gmra.mxu0 %v276
  %v3092 = vpop.f32.mrf.mxu0
  %v3093 = vadd.f32 0.0, %v3092
  %3094 = vmatmul.f32.gmra.mxu0 %v279
  %v3095 = vpop.f32.mrf.mxu0
  %v3096 = vadd.f32 0.0, %v3095
  %3097 = vmatmul.f32.gmra.mxu0 %v282
  %v3098 = vpop.f32.mrf.mxu0
  %v3099 = vadd.f32 0.0, %v3098
  %3100 = vmatmul.f32.gmra.mxu0 %v285
  %v3101 = vpop.f32.mrf.mxu0
  %v3102 = vadd.f32 0.0, %v3101
  %3103 = vmatmul.f32.gmra.mxu0 %v288
  %v3104 = vpop.f32.mrf.mxu0
  %v3105 = vadd.f32 0.0, %v3104
  %3106 = vdwg.mxu0
  %v3107 = vadd.f32 %v2919, %v3060
  %v3108 = vadd.f32 %v2921, %v3063
  %v3109 = vadd.f32 %v2924, %v3066
  %v3110 = vadd.f32 %v2926, %v3069
  %v3111 = vadd.f32 %v2929, %v3072
  %v3112 = vadd.f32 %v2931, %v3075
  %v3113 = vadd.f32 %v2934, %v3078
  %v3114 = vadd.f32 %v2936, %v3081
  %v3115 = vadd.f32 %v2939, %v3084
  %v3116 = vadd.f32 %v2941, %v3087
  %v3117 = vadd.f32 %v2944, %v3090
  %v3118 = vadd.f32 %v2946, %v3093
  %v3119 = vadd.f32 %v2949, %v3096
  %v3120 = vadd.f32 %v2951, %v3099
  %v3121 = vadd.f32 %v2954, %v3102
  %v3122 = vadd.f32 %v2956, %v3105
  %v3123 = vld [vmem:[%s8] sm:$0x1]
  %v3124 = vld [vmem:[%s9] sm:$0x1]
  %3125 = vmatpush.msra.mxu0 %v3122
  %3126 = vmatpush.msra.mxu0 %v3121
  %3127 = vmatpush.msra.mxu0 %v3120
  %3128 = vmatpush.msra.mxu0 %v3119
  %3129 = vmatpush.msra.mxu0 %v3118
  %3130 = vmatpush.msra.mxu0 %v3117
  %3131 = vmatpush.msra.mxu0 %v3116
  %3132 = vmatpush.msra.mxu0 %v3115
  %3133 = vmatpush.msra.mxu0 %v3114
  %3134 = vmatpush.msra.mxu0 %v3113
  %3135 = vmatpush.msra.mxu0 %v3112
  %3136 = vmatpush.msra.mxu0 %v3111
  %3137 = vmatpush.msra.mxu0 %v3110
  %3138 = vmatpush.msra.mxu0 %v3109
  %3139 = vmatpush.msra.mxu0 %v3108
  %3140 = vmatpush.msra.mxu0 %v3107
  %3141 = vmatmul.f32.gmra.mxu0 %v73
  %v3142 = vpop.f32.mrf.mxu0
  %v3143 = vadd.f32 0.0, %v3142
  %3144 = vdwg.mxu0
  %v3145 = vmul.f32 %v3107, %v3107
  %v3146 = vmul.f32 %v3108, %v3108
  %v3147 = vmul.f32 %v3109, %v3109
  %v3148 = vmul.f32 %v3110, %v3110
  %v3149 = vmul.f32 %v3111, %v3111
  %v3150 = vmul.f32 %v3112, %v3112
  %v3151 = vmul.f32 %v3113, %v3113
  %v3152 = vmul.f32 %v3114, %v3114
  %v3153 = vmul.f32 %v3115, %v3115
  %v3154 = vmul.f32 %v3116, %v3116
  %v3155 = vmul.f32 %v3117, %v3117
  %v3156 = vmul.f32 %v3118, %v3118
  %v3157 = vmul.f32 %v3119, %v3119
  %v3158 = vmul.f32 %v3120, %v3120
  %v3159 = vmul.f32 %v3121, %v3121
  %v3160 = vmul.f32 %v3122, %v3122
  %3161 = vmatpush.msra.mxu0 %v3160
  %3162 = vmatpush.msra.mxu0 %v3159
  %3163 = vmatpush.msra.mxu0 %v3158
  %3164 = vmatpush.msra.mxu0 %v3157
  %3165 = vmatpush.msra.mxu0 %v3156
  %3166 = vmatpush.msra.mxu0 %v3155
  %3167 = vmatpush.msra.mxu0 %v3154
  %3168 = vmatpush.msra.mxu0 %v3153
  %3169 = vmatpush.msra.mxu0 %v3152
  %3170 = vmatpush.msra.mxu0 %v3151
  %3171 = vmatpush.msra.mxu0 %v3150
  %3172 = vmatpush.msra.mxu0 %v3149
  %3173 = vmatpush.msra.mxu0 %v3148
  %3174 = vmatpush.msra.mxu0 %v3147
  %3175 = vmatpush.msra.mxu0 %v3146
  %3176 = vmatpush.msra.mxu0 %v3145
  %3177 = vmatmul.f32.gmra.mxu0 %v73
  %v3178 = vpop.f32.mrf.mxu0
  %v3179 = vadd.f32 0.0, %v3178
  %3180 = vdwg.mxu0
  %v3182 = vsel %vm156, %v3143, 0
  %3184 = vmatpush.msra.mxu0 0.0
  %3185 = vmatpush.msra.mxu0 0.0
  %3186 = vmatpush.msra.mxu0 0.0
  %3187 = vmatpush.msra.mxu0 0.0
  %3188 = vmatpush.msra.mxu0 0.0
  %3189 = vmatpush.msra.mxu0 0.0
  %3190 = vmatpush.msra.mxu0 0.0
  %3191 = vmatpush.msra.mxu0 0.0
  %3192 = vmatpush.msra.mxu0 0.0
  %3193 = vmatpush.msra.mxu0 0.0
  %3194 = vmatpush.msra.mxu0 0.0
  %3195 = vmatpush.msra.mxu0 0.0
  %3196 = vmatpush.msra.mxu0 %v93
  %3197 = vmatpush.msra.mxu0 %v92
  %3198 = vmatpush.msra.mxu0 %v91
  %3199 = vmatpush.msra.mxu0 %v90
  %3200 = vmatmul.f32.gmra.mxu0 %v3182
  %v3201 = vpop.f32.mrf.mxu0
  %v3202 = vadd.f32 0.0, %v3201
  %3203 = vdwg.mxu0
  %v3204 = vmul.f32 %v3202, 0.015625
  %v3206 = vsel %vm156, %v3179, 0
  %3208 = vmatpush.msra.mxu0 0.0
  %3209 = vmatpush.msra.mxu0 0.0
  %3210 = vmatpush.msra.mxu0 0.0
  %3211 = vmatpush.msra.mxu0 0.0
  %3212 = vmatpush.msra.mxu0 0.0
  %3213 = vmatpush.msra.mxu0 0.0
  %3214 = vmatpush.msra.mxu0 0.0
  %3215 = vmatpush.msra.mxu0 0.0
  %3216 = vmatpush.msra.mxu0 0.0
  %3217 = vmatpush.msra.mxu0 0.0
  %3218 = vmatpush.msra.mxu0 0.0
  %3219 = vmatpush.msra.mxu0 0.0
  %3220 = vmatpush.msra.mxu0 %v93
  %3221 = vmatpush.msra.mxu0 %v92
  %3222 = vmatpush.msra.mxu0 %v91
  %3223 = vmatpush.msra.mxu0 %v90
  %3224 = vmatmul.f32.gmra.mxu0 %v3206
  %v3225 = vpop.f32.mrf.mxu0
  %v3226 = vadd.f32 0.0, %v3225
  %3227 = vdwg.mxu0
  %v3228 = vmul.f32 %v3226, 0.015625
  %v3229 = vmul.f32 %v3204, %v3204
  %v3230 = vsub.f32 %v3228, %v3229
  %v3231 = vadd.f32 %v3230, 1e-05
  %v3232 = vrsqrt.pop %v3231
  %v3233 = vmul.f32 %v3232, %v3231
  %v3234 = vmul.f32 %v3233, %v3232
  %v3235 = vmul.f32 0.5, %v3234
  %v3236 = vsub.f32 1.5, %v3235
  %v3237 = vmul.f32 %v3232, %v3236
  %vm3238 = vweird.f32 %v3231
  %vm3239 = vweird.f32 %v3232
  %vm3240 = vmor %vm3238, %vm3239
  %v3241 = vsel %vm3240, %v3232, %v3237
  %v3243 = vsel %vm156, %v3204, 0
  %3245 = vmatpush.msra.mxu0 0.0
  %3246 = vmatpush.msra.mxu0 0.0
  %3247 = vmatpush.msra.mxu0 0.0
  %3248 = vmatpush.msra.mxu0 0.0
  %3249 = vmatpush.msra.mxu0 0.0
  %3250 = vmatpush.msra.mxu0 0.0
  %3251 = vmatpush.msra.mxu0 0.0
  %3252 = vmatpush.msra.mxu0 0.0
  %3253 = vmatpush.msra.mxu0 0.0
  %3254 = vmatpush.msra.mxu0 0.0
  %3255 = vmatpush.msra.mxu0 0.0
  %3256 = vmatpush.msra.mxu0 0.0
  %3257 = vmatpush.msra.mxu0 %v97
  %3258 = vmatpush.msra.mxu0 %v96
  %3259 = vmatpush.msra.mxu0 %v95
  %3260 = vmatpush.msra.mxu0 %v94
  %3261 = vmatmul.f32.gmra.mxu0 %v3243
  %v3262 = vpop.f32.mrf.mxu0
  %v3263 = vadd.f32 0.0, %v3262
  %3264 = vdwg.mxu0
  %v3266 = vsel %vm290, %v3263, 0
  %3268 = vmatpush.msra.mxu0 0.0
  %3269 = vmatpush.msra.mxu0 0.0
  %3270 = vmatpush.msra.mxu0 0.0
  %3271 = vmatpush.msra.mxu0 0.0
  %3272 = vmatpush.msra.mxu0 0.0
  %3273 = vmatpush.msra.mxu0 0.0
  %3274 = vmatpush.msra.mxu0 0.0
  %3275 = vmatpush.msra.mxu0 0.0
  %3276 = vmatpush.msra.mxu0 0.0
  %3277 = vmatpush.msra.mxu0 0.0
  %3278 = vmatpush.msra.mxu0 0.0
  %3279 = vmatpush.msra.mxu0 0.0
  %3280 = vmatpush.msra.mxu0 0.0
  %3281 = vmatpush.msra.mxu0 0.0
  %3282 = vmatpush.msra.mxu0 0.0
  %3283 = vmatpush.msra.mxu0 %v3266
  %3284 = vmatmul.f32.gmra.mxu0 %v243
  %v3285 = vpop.f32.mrf.mxu0
  %v3286 = vadd.f32 0.0, %v3285
  %3287 = vmatmul.f32.gmra.mxu0 %v246
  %v3288 = vpop.f32.mrf.mxu0
  %v3289 = vadd.f32 0.0, %v3288
  %3290 = vmatmul.f32.gmra.mxu0 %v249
  %v3291 = vpop.f32.mrf.mxu0
  %v3292 = vadd.f32 0.0, %v3291
  %3293 = vmatmul.f32.gmra.mxu0 %v252
  %v3294 = vpop.f32.mrf.mxu0
  %v3295 = vadd.f32 0.0, %v3294
  %3296 = vmatmul.f32.gmra.mxu0 %v255
  %v3297 = vpop.f32.mrf.mxu0
  %v3298 = vadd.f32 0.0, %v3297
  %3299 = vmatmul.f32.gmra.mxu0 %v258
  %v3300 = vpop.f32.mrf.mxu0
  %v3301 = vadd.f32 0.0, %v3300
  %3302 = vmatmul.f32.gmra.mxu0 %v261
  %v3303 = vpop.f32.mrf.mxu0
  %v3304 = vadd.f32 0.0, %v3303
  %3305 = vmatmul.f32.gmra.mxu0 %v264
  %v3306 = vpop.f32.mrf.mxu0
  %v3307 = vadd.f32 0.0, %v3306
  %3308 = vmatmul.f32.gmra.mxu0 %v267
  %v3309 = vpop.f32.mrf.mxu0
  %v3310 = vadd.f32 0.0, %v3309
  %3311 = vmatmul.f32.gmra.mxu0 %v270
  %v3312 = vpop.f32.mrf.mxu0
  %v3313 = vadd.f32 0.0, %v3312
  %3314 = vmatmul.f32.gmra.mxu0 %v273
  %v3315 = vpop.f32.mrf.mxu0
  %v3316 = vadd.f32 0.0, %v3315
  %3317 = vmatmul.f32.gmra.mxu0 %v276
  %v3318 = vpop.f32.mrf.mxu0
  %v3319 = vadd.f32 0.0, %v3318
  %3320 = vmatmul.f32.gmra.mxu0 %v279
  %v3321 = vpop.f32.mrf.mxu0
  %v3322 = vadd.f32 0.0, %v3321
  %3323 = vmatmul.f32.gmra.mxu0 %v282
  %v3324 = vpop.f32.mrf.mxu0
  %v3325 = vadd.f32 0.0, %v3324
  %3326 = vmatmul.f32.gmra.mxu0 %v285
  %v3327 = vpop.f32.mrf.mxu0
  %v3328 = vadd.f32 0.0, %v3327
  %3329 = vmatmul.f32.gmra.mxu0 %v288
  %v3330 = vpop.f32.mrf.mxu0
  %v3331 = vadd.f32 0.0, %v3330
  %3332 = vdwg.mxu0
  %v3334 = vsel %vm156, %v3241, 0
  %3336 = vmatpush.msra.mxu0 0.0
  %3337 = vmatpush.msra.mxu0 0.0
  %3338 = vmatpush.msra.mxu0 0.0
  %3339 = vmatpush.msra.mxu0 0.0
  %3340 = vmatpush.msra.mxu0 0.0
  %3341 = vmatpush.msra.mxu0 0.0
  %3342 = vmatpush.msra.mxu0 0.0
  %3343 = vmatpush.msra.mxu0 0.0
  %3344 = vmatpush.msra.mxu0 0.0
  %3345 = vmatpush.msra.mxu0 0.0
  %3346 = vmatpush.msra.mxu0 0.0
  %3347 = vmatpush.msra.mxu0 0.0
  %3348 = vmatpush.msra.mxu0 %v97
  %3349 = vmatpush.msra.mxu0 %v96
  %3350 = vmatpush.msra.mxu0 %v95
  %3351 = vmatpush.msra.mxu0 %v94
  %3352 = vmatmul.f32.gmra.mxu0 %v3334
  %v3353 = vpop.f32.mrf.mxu0
  %v3354 = vadd.f32 0.0, %v3353
  %3355 = vdwg.mxu0
  %v3357 = vsel %vm290, %v3354, 0
  %3359 = vmatpush.msra.mxu0 0.0
  %3360 = vmatpush.msra.mxu0 0.0
  %3361 = vmatpush.msra.mxu0 0.0
  %3362 = vmatpush.msra.mxu0 0.0
  %3363 = vmatpush.msra.mxu0 0.0
  %3364 = vmatpush.msra.mxu0 0.0
  %3365 = vmatpush.msra.mxu0 0.0
  %3366 = vmatpush.msra.mxu0 0.0
  %3367 = vmatpush.msra.mxu0 0.0
  %3368 = vmatpush.msra.mxu0 0.0
  %3369 = vmatpush.msra.mxu0 0.0
  %3370 = vmatpush.msra.mxu0 0.0
  %3371 = vmatpush.msra.mxu0 0.0
  %3372 = vmatpush.msra.mxu0 0.0
  %3373 = vmatpush.msra.mxu0 0.0
  %3374 = vmatpush.msra.mxu0 %v3357
  %3375 = vmatmul.f32.gmra.mxu0 %v243
  %v3376 = vpop.f32.mrf.mxu0
  %v3377 = vadd.f32 0.0, %v3376
  %3378 = vmatmul.f32.gmra.mxu0 %v246
  %v3379 = vpop.f32.mrf.mxu0
  %v3380 = vadd.f32 0.0, %v3379
  %3381 = vmatmul.f32.gmra.mxu0 %v249
  %v3382 = vpop.f32.mrf.mxu0
  %v3383 = vadd.f32 0.0, %v3382
  %3384 = vmatmul.f32.gmra.mxu0 %v252
  %v3385 = vpop.f32.mrf.mxu0
  %v3386 = vadd.f32 0.0, %v3385
  %3387 = vmatmul.f32.gmra.mxu0 %v255
  %v3388 = vpop.f32.mrf.mxu0
  %v3389 = vadd.f32 0.0, %v3388
  %3390 = vmatmul.f32.gmra.mxu0 %v258
  %v3391 = vpop.f32.mrf.mxu0
  %v3392 = vadd.f32 0.0, %v3391
  %3393 = vmatmul.f32.gmra.mxu0 %v261
  %v3394 = vpop.f32.mrf.mxu0
  %v3395 = vadd.f32 0.0, %v3394
  %3396 = vmatmul.f32.gmra.mxu0 %v264
  %v3397 = vpop.f32.mrf.mxu0
  %v3398 = vadd.f32 0.0, %v3397
  %3399 = vmatmul.f32.gmra.mxu0 %v267
  %v3400 = vpop.f32.mrf.mxu0
  %v3401 = vadd.f32 0.0, %v3400
  %3402 = vmatmul.f32.gmra.mxu0 %v270
  %v3403 = vpop.f32.mrf.mxu0
  %v3404 = vadd.f32 0.0, %v3403
  %3405 = vmatmul.f32.gmra.mxu0 %v273
  %v3406 = vpop.f32.mrf.mxu0
  %v3407 = vadd.f32 0.0, %v3406
  %3408 = vmatmul.f32.gmra.mxu0 %v276
  %v3409 = vpop.f32.mrf.mxu0
  %v3410 = vadd.f32 0.0, %v3409
  %3411 = vmatmul.f32.gmra.mxu0 %v279
  %v3412 = vpop.f32.mrf.mxu0
  %v3413 = vadd.f32 0.0, %v3412
  %3414 = vmatmul.f32.gmra.mxu0 %v282
  %v3415 = vpop.f32.mrf.mxu0
  %v3416 = vadd.f32 0.0, %v3415
  %3417 = vmatmul.f32.gmra.mxu0 %v285
  %v3418 = vpop.f32.mrf.mxu0
  %v3419 = vadd.f32 0.0, %v3418
  %3420 = vmatmul.f32.gmra.mxu0 %v288
  %v3421 = vpop.f32.mrf.mxu0
  %v3422 = vadd.f32 0.0, %v3421
  %3423 = vdwg.mxu0
  %v3424 = vsub.f32 %v3107, %v3286
  %v3425 = vsub.f32 %v3108, %v3289
  %v3426 = vsub.f32 %v3109, %v3292
  %v3427 = vsub.f32 %v3110, %v3295
  %v3428 = vsub.f32 %v3111, %v3298
  %v3429 = vsub.f32 %v3112, %v3301
  %v3430 = vsub.f32 %v3113, %v3304
  %v3431 = vsub.f32 %v3114, %v3307
  %v3432 = vsub.f32 %v3115, %v3310
  %v3433 = vsub.f32 %v3116, %v3313
  %v3434 = vsub.f32 %v3117, %v3316
  %v3435 = vsub.f32 %v3118, %v3319
  %v3436 = vsub.f32 %v3119, %v3322
  %v3437 = vsub.f32 %v3120, %v3325
  %v3438 = vsub.f32 %v3121, %v3328
  %v3439 = vsub.f32 %v3122, %v3331
  %v3440 = vmul.f32 %v3424, %v3377
  %v3441 = vmul.f32 %v3425, %v3380
  %v3442 = vmul.f32 %v3426, %v3383
  %v3443 = vmul.f32 %v3427, %v3386
  %v3444 = vmul.f32 %v3428, %v3389
  %v3445 = vmul.f32 %v3429, %v3392
  %v3446 = vmul.f32 %v3430, %v3395
  %v3447 = vmul.f32 %v3431, %v3398
  %v3448 = vmul.f32 %v3432, %v3401
  %v3449 = vmul.f32 %v3433, %v3404
  %v3450 = vmul.f32 %v3434, %v3407
  %v3451 = vmul.f32 %v3435, %v3410
  %v3452 = vmul.f32 %v3436, %v3413
  %v3453 = vmul.f32 %v3437, %v3416
  %v3454 = vmul.f32 %v3438, %v3419
  %v3455 = vmul.f32 %v3439, %v3422
  %v3457 = vperm.slane %v3123, 0
  %v3459 = vmul.f32 %v3440, %v3457
  %v3460 = vmul.f32 %v3441, %v3457
  %v3461 = vmul.f32 %v3442, %v3457
  %v3462 = vmul.f32 %v3443, %v3457
  %v3463 = vmul.f32 %v3444, %v3457
  %v3464 = vmul.f32 %v3445, %v3457
  %v3465 = vmul.f32 %v3446, %v3457
  %v3466 = vmul.f32 %v3447, %v3457
  %v3467 = vmul.f32 %v3448, %v3457
  %v3468 = vmul.f32 %v3449, %v3457
  %v3469 = vmul.f32 %v3450, %v3457
  %v3470 = vmul.f32 %v3451, %v3457
  %v3471 = vmul.f32 %v3452, %v3457
  %v3472 = vmul.f32 %v3453, %v3457
  %v3473 = vmul.f32 %v3454, %v3457
  %v3474 = vmul.f32 %v3455, %v3457
  %v3476 = vperm.slane %v3124, 0
  %v3478 = vadd.f32 %v3459, %v3476
  %v3479 = vadd.f32 %v3460, %v3476
  %v3480 = vadd.f32 %v3461, %v3476
  %v3481 = vadd.f32 %v3462, %v3476
  %v3482 = vadd.f32 %v3463, %v3476
  %v3483 = vadd.f32 %v3464, %v3476
  %v3484 = vadd.f32 %v3465, %v3476
  %v3485 = vadd.f32 %v3466, %v3476
  %v3486 = vadd.f32 %v3467, %v3476
  %v3487 = vadd.f32 %v3468, %v3476
  %v3488 = vadd.f32 %v3469, %v3476
  %v3489 = vadd.f32 %v3470, %v3476
  %v3490 = vadd.f32 %v3471, %v3476
  %v3491 = vadd.f32 %v3472, %v3476
  %v3492 = vadd.f32 %v3473, %v3476
  %v3493 = vadd.f32 %v3474, %v3476
  %v3494 = vxor.u32 %v3478, 2147483648
  %v3495 = vxor.u32 %v3479, 2147483648
  %v3496 = vxor.u32 %v3480, 2147483648
  %v3497 = vxor.u32 %v3481, 2147483648
  %v3498 = vxor.u32 %v3482, 2147483648
  %v3499 = vxor.u32 %v3483, 2147483648
  %v3500 = vxor.u32 %v3484, 2147483648
  %v3501 = vxor.u32 %v3485, 2147483648
  %v3502 = vxor.u32 %v3486, 2147483648
  %v3503 = vxor.u32 %v3487, 2147483648
  %v3504 = vxor.u32 %v3488, 2147483648
  %v3505 = vxor.u32 %v3489, 2147483648
  %v3506 = vxor.u32 %v3490, 2147483648
  %v3507 = vxor.u32 %v3491, 2147483648
  %v3508 = vxor.u32 %v3492, 2147483648
  %v3509 = vxor.u32 %v3493, 2147483648
  %v3510 = vmul.f32 %v3494, 1.442695
  %v3511 = vpow.pop %v3510
  %v3512 = vmul.f32 %v3495, 1.442695
  %v3513 = vpow.pop %v3512
  %v3514 = vmul.f32 %v3496, 1.442695
  %v3515 = vpow.pop %v3514
  %v3516 = vmul.f32 %v3497, 1.442695
  %v3517 = vpow.pop %v3516
  %v3518 = vmul.f32 %v3498, 1.442695
  %v3519 = vpow.pop %v3518
  %v3520 = vmul.f32 %v3499, 1.442695
  %v3521 = vpow.pop %v3520
  %v3522 = vmul.f32 %v3500, 1.442695
  %v3523 = vpow.pop %v3522
  %v3524 = vmul.f32 %v3501, 1.442695
  %v3525 = vpow.pop %v3524
  %v3526 = vmul.f32 %v3502, 1.442695
  %v3527 = vpow.pop %v3526
  %v3528 = vmul.f32 %v3503, 1.442695
  %v3529 = vpow.pop %v3528
  %v3530 = vmul.f32 %v3504, 1.442695
  %v3531 = vpow.pop %v3530
  %v3532 = vmul.f32 %v3505, 1.442695
  %v3533 = vpow.pop %v3532
  %v3534 = vmul.f32 %v3506, 1.442695
  %v3535 = vpow.pop %v3534
  %v3536 = vmul.f32 %v3507, 1.442695
  %v3537 = vpow.pop %v3536
  %v3538 = vmul.f32 %v3508, 1.442695
  %v3539 = vpow.pop %v3538
  %v3540 = vmul.f32 %v3509, 1.442695
  %v3541 = vpow.pop %v3540
  %v3542 = vadd.f32 %v3511, 1.0
  %v3543 = vadd.f32 %v3513, 1.0
  %v3544 = vadd.f32 %v3515, 1.0
  %v3545 = vadd.f32 %v3517, 1.0
  %v3546 = vadd.f32 %v3519, 1.0
  %v3547 = vadd.f32 %v3521, 1.0
  %v3548 = vadd.f32 %v3523, 1.0
  %v3549 = vadd.f32 %v3525, 1.0
  %v3550 = vadd.f32 %v3527, 1.0
  %v3551 = vadd.f32 %v3529, 1.0
  %v3552 = vadd.f32 %v3531, 1.0
  %v3553 = vadd.f32 %v3533, 1.0
  %v3554 = vadd.f32 %v3535, 1.0
  %v3555 = vadd.f32 %v3537, 1.0
  %v3556 = vadd.f32 %v3539, 1.0
  %v3557 = vadd.f32 %v3541, 1.0
  %v3558 = vrcp.pop %v3542
  %v3559 = vmul.f32 %v3542, %v3558
  %v3560 = vsub.f32 1.0, %v3559
  %v3561 = vmul.f32 %v3558, %v3560
  %v3562 = vadd.f32 %v3558, %v3561
  %vm3563 = vweird.f32 %v3542
  %vm3564 = vweird.f32 %v3558
  %vm3565 = vmor %vm3563, %vm3564
  %v3566 = vsel %vm3565, %v3558, %v3562
  %v3567 = vand.u32 2147483647, %v3542
  %vm3568 = vcmp.eq.f32.partialorder %v3567, 8.507059e+37
  %v3569 = vand.u32 %v3542, 2147483648
  %v3570 = vor.u32 1.1754944e-38, %v3569
  %v3571 = vsel %vm3568, %v3570, %v3566
  %v3572 = vmul.f32 1.0, %v3571
  %v3573 = vrcp.pop %v3543
  %v3574 = vmul.f32 %v3543, %v3573
  %v3575 = vsub.f32 1.0, %v3574
  %v3576 = vmul.f32 %v3573, %v3575
  %v3577 = vadd.f32 %v3573, %v3576
  %vm3578 = vweird.f32 %v3543
  %vm3579 = vweird.f32 %v3573
  %vm3580 = vmor %vm3578, %vm3579
  %v3581 = vsel %vm3580, %v3573, %v3577
  %v3582 = vand.u32 2147483647, %v3543
  %vm3583 = vcmp.eq.f32.partialorder %v3582, 8.507059e+37
  %v3584 = vand.u32 %v3543, 2147483648
  %v3585 = vor.u32 1.1754944e-38, %v3584
  %v3586 = vsel %vm3583, %v3585, %v3581
  %v3587 = vmul.f32 1.0, %v3586
  %v3588 = vrcp.pop %v3544
  %v3589 = vmul.f32 %v3544, %v3588
  %v3590 = vsub.f32 1.0, %v3589
  %v3591 = vmul.f32 %v3588, %v3590
  %v3592 = vadd.f32 %v3588, %v3591
  %vm3593 = vweird.f32 %v3544
  %vm3594 = vweird.f32 %v3588
  %vm3595 = vmor %vm3593, %vm3594
  %v3596 = vsel %vm3595, %v3588, %v3592
  %v3597 = vand.u32 2147483647, %v3544
  %vm3598 = vcmp.eq.f32.partialorder %v3597, 8.507059e+37
  %v3599 = vand.u32 %v3544, 2147483648
  %v3600 = vor.u32 1.1754944e-38, %v3599
  %v3601 = vsel %vm3598, %v3600, %v3596
  %v3602 = vmul.f32 1.0, %v3601
  %v3603 = vrcp.pop %v3545
  %v3604 = vmul.f32 %v3545, %v3603
  %v3605 = vsub.f32 1.0, %v3604
  %v3606 = vmul.f32 %v3603, %v3605
  %v3607 = vadd.f32 %v3603, %v3606
  %vm3608 = vweird.f32 %v3545
  %vm3609 = vweird.f32 %v3603
  %vm3610 = vmor %vm3608, %vm3609
  %v3611 = vsel %vm3610, %v3603, %v3607
  %v3612 = vand.u32 2147483647, %v3545
  %vm3613 = vcmp.eq.f32.partialorder %v3612, 8.507059e+37
  %v3614 = vand.u32 %v3545, 2147483648
  %v3615 = vor.u32 1.1754944e-38, %v3614
  %v3616 = vsel %vm3613, %v3615, %v3611
  %v3617 = vmul.f32 1.0, %v3616
  %v3618 = vrcp.pop %v3546
  %v3619 = vmul.f32 %v3546, %v3618
  %v3620 = vsub.f32 1.0, %v3619
  %v3621 = vmul.f32 %v3618, %v3620
  %v3622 = vadd.f32 %v3618, %v3621
  %vm3623 = vweird.f32 %v3546
  %vm3624 = vweird.f32 %v3618
  %vm3625 = vmor %vm3623, %vm3624
  %v3626 = vsel %vm3625, %v3618, %v3622
  %v3627 = vand.u32 2147483647, %v3546
  %vm3628 = vcmp.eq.f32.partialorder %v3627, 8.507059e+37
  %v3629 = vand.u32 %v3546, 2147483648
  %v3630 = vor.u32 1.1754944e-38, %v3629
  %v3631 = vsel %vm3628, %v3630, %v3626
  %v3632 = vmul.f32 1.0, %v3631
  %v3633 = vrcp.pop %v3547
  %v3634 = vmul.f32 %v3547, %v3633
  %v3635 = vsub.f32 1.0, %v3634
  %v3636 = vmul.f32 %v3633, %v3635
  %v3637 = vadd.f32 %v3633, %v3636
  %vm3638 = vweird.f32 %v3547
  %vm3639 = vweird.f32 %v3633
  %vm3640 = vmor %vm3638, %vm3639
  %v3641 = vsel %vm3640, %v3633, %v3637
  %v3642 = vand.u32 2147483647, %v3547
  %vm3643 = vcmp.eq.f32.partialorder %v3642, 8.507059e+37
  %v3644 = vand.u32 %v3547, 2147483648
  %v3645 = vor.u32 1.1754944e-38, %v3644
  %v3646 = vsel %vm3643, %v3645, %v3641
  %v3647 = vmul.f32 1.0, %v3646
  %v3648 = vrcp.pop %v3548
  %v3649 = vmul.f32 %v3548, %v3648
  %v3650 = vsub.f32 1.0, %v3649
  %v3651 = vmul.f32 %v3648, %v3650
  %v3652 = vadd.f32 %v3648, %v3651
  %vm3653 = vweird.f32 %v3548
  %vm3654 = vweird.f32 %v3648
  %vm3655 = vmor %vm3653, %vm3654
  %v3656 = vsel %vm3655, %v3648, %v3652
  %v3657 = vand.u32 2147483647, %v3548
  %vm3658 = vcmp.eq.f32.partialorder %v3657, 8.507059e+37
  %v3659 = vand.u32 %v3548, 2147483648
  %v3660 = vor.u32 1.1754944e-38, %v3659
  %v3661 = vsel %vm3658, %v3660, %v3656
  %v3662 = vmul.f32 1.0, %v3661
  %v3663 = vrcp.pop %v3549
  %v3664 = vmul.f32 %v3549, %v3663
  %v3665 = vsub.f32 1.0, %v3664
  %v3666 = vmul.f32 %v3663, %v3665
  %v3667 = vadd.f32 %v3663, %v3666
  %vm3668 = vweird.f32 %v3549
  %vm3669 = vweird.f32 %v3663
  %vm3670 = vmor %vm3668, %vm3669
  %v3671 = vsel %vm3670, %v3663, %v3667
  %v3672 = vand.u32 2147483647, %v3549
  %vm3673 = vcmp.eq.f32.partialorder %v3672, 8.507059e+37
  %v3674 = vand.u32 %v3549, 2147483648
  %v3675 = vor.u32 1.1754944e-38, %v3674
  %v3676 = vsel %vm3673, %v3675, %v3671
  %v3677 = vmul.f32 1.0, %v3676
  %v3678 = vrcp.pop %v3550
  %v3679 = vmul.f32 %v3550, %v3678
  %v3680 = vsub.f32 1.0, %v3679
  %v3681 = vmul.f32 %v3678, %v3680
  %v3682 = vadd.f32 %v3678, %v3681
  %vm3683 = vweird.f32 %v3550
  %vm3684 = vweird.f32 %v3678
  %vm3685 = vmor %vm3683, %vm3684
  %v3686 = vsel %vm3685, %v3678, %v3682
  %v3687 = vand.u32 2147483647, %v3550
  %vm3688 = vcmp.eq.f32.partialorder %v3687, 8.507059e+37
  %v3689 = vand.u32 %v3550, 2147483648
  %v3690 = vor.u32 1.1754944e-38, %v3689
  %v3691 = vsel %vm3688, %v3690, %v3686
  %v3692 = vmul.f32 1.0, %v3691
  %v3693 = vrcp.pop %v3551
  %v3694 = vmul.f32 %v3551, %v3693
  %v3695 = vsub.f32 1.0, %v3694
  %v3696 = vmul.f32 %v3693, %v3695
  %v3697 = vadd.f32 %v3693, %v3696
  %vm3698 = vweird.f32 %v3551
  %vm3699 = vweird.f32 %v3693
  %vm3700 = vmor %vm3698, %vm3699
  %v3701 = vsel %vm3700, %v3693, %v3697
  %v3702 = vand.u32 2147483647, %v3551
  %vm3703 = vcmp.eq.f32.partialorder %v3702, 8.507059e+37
  %v3704 = vand.u32 %v3551, 2147483648
  %v3705 = vor.u32 1.1754944e-38, %v3704
  %v3706 = vsel %vm3703, %v3705, %v3701
  %v3707 = vmul.f32 1.0, %v3706
  %v3708 = vrcp.pop %v3552
  %v3709 = vmul.f32 %v3552, %v3708
  %v3710 = vsub.f32 1.0, %v3709
  %v3711 = vmul.f32 %v3708, %v3710
  %v3712 = vadd.f32 %v3708, %v3711
  %vm3713 = vweird.f32 %v3552
  %vm3714 = vweird.f32 %v3708
  %vm3715 = vmor %vm3713, %vm3714
  %v3716 = vsel %vm3715, %v3708, %v3712
  %v3717 = vand.u32 2147483647, %v3552
  %vm3718 = vcmp.eq.f32.partialorder %v3717, 8.507059e+37
  %v3719 = vand.u32 %v3552, 2147483648
  %v3720 = vor.u32 1.1754944e-38, %v3719
  %v3721 = vsel %vm3718, %v3720, %v3716
  %v3722 = vmul.f32 1.0, %v3721
  %v3723 = vrcp.pop %v3553
  %v3724 = vmul.f32 %v3553, %v3723
  %v3725 = vsub.f32 1.0, %v3724
  %v3726 = vmul.f32 %v3723, %v3725
  %v3727 = vadd.f32 %v3723, %v3726
  %vm3728 = vweird.f32 %v3553
  %vm3729 = vweird.f32 %v3723
  %vm3730 = vmor %vm3728, %vm3729
  %v3731 = vsel %vm3730, %v3723, %v3727
  %v3732 = vand.u32 2147483647, %v3553
  %vm3733 = vcmp.eq.f32.partialorder %v3732, 8.507059e+37
  %v3734 = vand.u32 %v3553, 2147483648
  %v3735 = vor.u32 1.1754944e-38, %v3734
  %v3736 = vsel %vm3733, %v3735, %v3731
  %v3737 = vmul.f32 1.0, %v3736
  %v3738 = vrcp.pop %v3554
  %v3739 = vmul.f32 %v3554, %v3738
  %v3740 = vsub.f32 1.0, %v3739
  %v3741 = vmul.f32 %v3738, %v3740
  %v3742 = vadd.f32 %v3738, %v3741
  %vm3743 = vweird.f32 %v3554
  %vm3744 = vweird.f32 %v3738
  %vm3745 = vmor %vm3743, %vm3744
  %v3746 = vsel %vm3745, %v3738, %v3742
  %v3747 = vand.u32 2147483647, %v3554
  %vm3748 = vcmp.eq.f32.partialorder %v3747, 8.507059e+37
  %v3749 = vand.u32 %v3554, 2147483648
  %v3750 = vor.u32 1.1754944e-38, %v3749
  %v3751 = vsel %vm3748, %v3750, %v3746
  %v3752 = vmul.f32 1.0, %v3751
  %v3753 = vrcp.pop %v3555
  %v3754 = vmul.f32 %v3555, %v3753
  %v3755 = vsub.f32 1.0, %v3754
  %v3756 = vmul.f32 %v3753, %v3755
  %v3757 = vadd.f32 %v3753, %v3756
  %vm3758 = vweird.f32 %v3555
  %vm3759 = vweird.f32 %v3753
  %vm3760 = vmor %vm3758, %vm3759
  %v3761 = vsel %vm3760, %v3753, %v3757
  %v3762 = vand.u32 2147483647, %v3555
  %vm3763 = vcmp.eq.f32.partialorder %v3762, 8.507059e+37
  %v3764 = vand.u32 %v3555, 2147483648
  %v3765 = vor.u32 1.1754944e-38, %v3764
  %v3766 = vsel %vm3763, %v3765, %v3761
  %v3767 = vmul.f32 1.0, %v3766
  %v3768 = vrcp.pop %v3556
  %v3769 = vmul.f32 %v3556, %v3768
  %v3770 = vsub.f32 1.0, %v3769
  %v3771 = vmul.f32 %v3768, %v3770
  %v3772 = vadd.f32 %v3768, %v3771
  %vm3773 = vweird.f32 %v3556
  %vm3774 = vweird.f32 %v3768
  %vm3775 = vmor %vm3773, %vm3774
  %v3776 = vsel %vm3775, %v3768, %v3772
  %v3777 = vand.u32 2147483647, %v3556
  %vm3778 = vcmp.eq.f32.partialorder %v3777, 8.507059e+37
  %v3779 = vand.u32 %v3556, 2147483648
  %v3780 = vor.u32 1.1754944e-38, %v3779
  %v3781 = vsel %vm3778, %v3780, %v3776
  %v3782 = vmul.f32 1.0, %v3781
  %v3783 = vrcp.pop %v3557
  %v3784 = vmul.f32 %v3557, %v3783
  %v3785 = vsub.f32 1.0, %v3784
  %v3786 = vmul.f32 %v3783, %v3785
  %v3787 = vadd.f32 %v3783, %v3786
  %vm3788 = vweird.f32 %v3557
  %vm3789 = vweird.f32 %v3783
  %vm3790 = vmor %vm3788, %vm3789
  %v3791 = vsel %vm3790, %v3783, %v3787
  %v3792 = vand.u32 2147483647, %v3557
  %vm3793 = vcmp.eq.f32.partialorder %v3792, 8.507059e+37
  %v3794 = vand.u32 %v3557, 2147483648
  %v3795 = vor.u32 1.1754944e-38, %v3794
  %v3796 = vsel %vm3793, %v3795, %v3791
  %v3797 = vmul.f32 1.0, %v3796
  %v3798 = vmul.f32 %v3478, %v3572
  %v3799 = vmul.f32 %v3479, %v3587
  %v3800 = vmul.f32 %v3480, %v3602
  %v3801 = vmul.f32 %v3481, %v3617
  %v3802 = vmul.f32 %v3482, %v3632
  %v3803 = vmul.f32 %v3483, %v3647
  %v3804 = vmul.f32 %v3484, %v3662
  %v3805 = vmul.f32 %v3485, %v3677
  %v3806 = vmul.f32 %v3486, %v3692
  %v3807 = vmul.f32 %v3487, %v3707
  %v3808 = vmul.f32 %v3488, %v3722
  %v3809 = vmul.f32 %v3489, %v3737
  %v3810 = vmul.f32 %v3490, %v3752
  %v3811 = vmul.f32 %v3491, %v3767
  %v3812 = vmul.f32 %v3492, %v3782
  %v3813 = vmul.f32 %v3493, %v3797
  %v3814 = vld [vmem:[%s11] sm:$0x1]
  %v3815 = vrot.slane %v3798, 7
  %v3816 = vrot.slane %v3799, 7
  %v3817 = vrot.slane %v3800, 7
  %v3818 = vrot.slane %v3801, 7
  %v3819 = vrot.slane %v3802, 7
  %v3820 = vrot.slane %v3803, 7
  %v3821 = vrot.slane %v3804, 7
  %v3822 = vrot.slane %v3805, 7
  %v3823 = vrot.slane %v3806, 7
  %v3824 = vrot.slane %v3807, 7
  %v3825 = vrot.slane %v3808, 7
  %v3826 = vrot.slane %v3809, 7
  %v3827 = vrot.slane %v3810, 7
  %v3828 = vrot.slane %v3811, 7
  %v3829 = vrot.slane %v3812, 7
  %v3830 = vrot.slane %v3813, 7
  %v3831 = vsel %vm859, %v3829, %v3830
  %v3832 = vsel %vm859, %v3828, %v3829
  %v3833 = vsel %vm859, %v3827, %v3828
  %v3834 = vsel %vm859, %v3826, %v3827
  %v3835 = vsel %vm859, %v3825, %v3826
  %v3836 = vsel %vm859, %v3824, %v3825
  %v3837 = vsel %vm859, %v3823, %v3824
  %v3838 = vsel %vm859, %v3822, %v3823
  %v3839 = vsel %vm859, %v3821, %v3822
  %v3840 = vsel %vm859, %v3820, %v3821
  %v3841 = vsel %vm859, %v3819, %v3820
  %v3842 = vsel %vm859, %v3818, %v3819
  %v3843 = vsel %vm859, %v3817, %v3818
  %v3844 = vsel %vm859, %v3816, %v3817
  %v3845 = vsel %vm859, %v3815, %v3816
  %v3846 = vsel %vm859, %v3830, %v3815
  %v3847 = vld [vmem:[%s14] sm:$0xff]
  %v3848 = vld [vmem:[%s14 + $0x8] sm:$0xff]
  %v3849 = vld [vmem:[%s14 + $0x10] sm:$0xff]
  %v3850 = vld [vmem:[%s14 + $0x18] sm:$0xff]
  %v3851 = vld [vmem:[%s14 + $0x20] sm:$0xff]
  %v3852 = vld [vmem:[%s14 + $0x28] sm:$0xff]
  %v3853 = vld [vmem:[%s14 + $0x30] sm:$0xff]
  %v3854 = vld [vmem:[%s14 + $0x38] sm:$0xff]
  %v3855 = vld [vmem:[%s14 + $0x40] sm:$0xff]
  %v3856 = vld [vmem:[%s14 + $0x48] sm:$0xff]
  %v3857 = vld [vmem:[%s14 + $0x50] sm:$0xff]
  %v3858 = vld [vmem:[%s14 + $0x58] sm:$0xff]
  %v3859 = vld [vmem:[%s14 + $0x60] sm:$0xff]
  %v3860 = vld [vmem:[%s14 + $0x68] sm:$0xff]
  %v3861 = vld [vmem:[%s14 + $0x70] sm:$0xff]
  %v3862 = vld [vmem:[%s14 + $0x78] sm:$0xff]
  %3864 = vset.pattern.permute.xlu0 0
  %3865 = vperm.xlu0 %3864, %v3847
  %v3866 = vpop.permute.xlu0 %3865
  %3869 = vset.pattern.permute.xlu0 0
  %3870 = vperm.xlu0 %3869, %v3848
  %v3871 = vpop.permute.xlu0 %3870
  %3874 = vset.pattern.permute.xlu0 0
  %3875 = vperm.xlu0 %3874, %v3849
  %v3876 = vpop.permute.xlu0 %3875
  %3879 = vset.pattern.permute.xlu0 0
  %3880 = vperm.xlu0 %3879, %v3850
  %v3881 = vpop.permute.xlu0 %3880
  %3884 = vset.pattern.permute.xlu0 0
  %3885 = vperm.xlu0 %3884, %v3851
  %v3886 = vpop.permute.xlu0 %3885
  %3889 = vset.pattern.permute.xlu0 0
  %3890 = vperm.xlu0 %3889, %v3852
  %v3891 = vpop.permute.xlu0 %3890
  %3894 = vset.pattern.permute.xlu0 0
  %3895 = vperm.xlu0 %3894, %v3853
  %v3896 = vpop.permute.xlu0 %3895
  %3899 = vset.pattern.permute.xlu0 0
  %3900 = vperm.xlu0 %3899, %v3854
  %v3901 = vpop.permute.xlu0 %3900
  %3904 = vset.pattern.permute.xlu0 0
  %3905 = vperm.xlu0 %3904, %v3855
  %v3906 = vpop.permute.xlu0 %3905
  %3909 = vset.pattern.permute.xlu0 0
  %3910 = vperm.xlu0 %3909, %v3856
  %v3911 = vpop.permute.xlu0 %3910
  %3914 = vset.pattern.permute.xlu0 0
  %3915 = vperm.xlu0 %3914, %v3857
  %v3916 = vpop.permute.xlu0 %3915
  %3919 = vset.pattern.permute.xlu0 0
  %3920 = vperm.xlu0 %3919, %v3858
  %v3921 = vpop.permute.xlu0 %3920
  %3924 = vset.pattern.permute.xlu0 0
  %3925 = vperm.xlu0 %3924, %v3859
  %v3926 = vpop.permute.xlu0 %3925
  %3929 = vset.pattern.permute.xlu0 0
  %3930 = vperm.xlu0 %3929, %v3860
  %v3931 = vpop.permute.xlu0 %3930
  %3934 = vset.pattern.permute.xlu0 0
  %3935 = vperm.xlu0 %3934, %v3861
  %v3936 = vpop.permute.xlu0 %3935
  %3939 = vset.pattern.permute.xlu0 0
  %3940 = vperm.xlu0 %3939, %v3862
  %v3941 = vpop.permute.xlu0 %3940
  %v3943 = vmul.f32 %v3831, %v3866
  %v3944 = vmul.f32 %v3846, %v3871
  %v3945 = vmul.f32 %v3845, %v3876
  %v3946 = vmul.f32 %v3844, %v3881
  %v3947 = vmul.f32 %v3843, %v3886
  %v3948 = vmul.f32 %v3842, %v3891
  %v3949 = vmul.f32 %v3841, %v3896
  %v3950 = vmul.f32 %v3840, %v3901
  %v3951 = vmul.f32 %v3839, %v3906
  %v3952 = vmul.f32 %v3838, %v3911
  %v3953 = vmul.f32 %v3837, %v3916
  %v3954 = vmul.f32 %v3836, %v3921
  %v3955 = vmul.f32 %v3835, %v3926
  %v3956 = vmul.f32 %v3834, %v3931
  %v3957 = vmul.f32 %v3833, %v3936
  %v3958 = vmul.f32 %v3832, %v3941
  %v3959 = vpack.c.bf16 %v3943, %v3943
  %v3960 = vpack.c.bf16 %v3944, %v3944
  %v3961 = vpack.c.bf16 %v3945, %v3945
  %v3962 = vpack.c.bf16 %v3946, %v3946
  %v3963 = vpack.c.bf16 %v3947, %v3947
  %v3964 = vpack.c.bf16 %v3948, %v3948
  %v3965 = vpack.c.bf16 %v3949, %v3949
  %v3966 = vpack.c.bf16 %v3950, %v3950
  %v3967 = vpack.c.bf16 %v3951, %v3951
  %v3968 = vpack.c.bf16 %v3952, %v3952
  %v3969 = vpack.c.bf16 %v3953, %v3953
  %v3970 = vpack.c.bf16 %v3954, %v3954
  %v3971 = vpack.c.bf16 %v3955, %v3955
  %v3972 = vpack.c.bf16 %v3956, %v3956
  %v3973 = vpack.c.bf16 %v3957, %v3957
  %v3974 = vpack.c.bf16 %v3958, %v3958
  %3975 = vst.msk [vmem:[#allocation2] sm:$0xf] %vm1004, %v3959
  %3976 = vst.msk [vmem:[#allocation2 + $0xc] sm:$0xf] %vm1004, %v3960
  %3977 = vst.msk [vmem:[#allocation2 + $0x18] sm:$0xf] %vm1004, %v3961
  %3978 = vst.msk [vmem:[#allocation2 + $0x24] sm:$0xf] %vm1004, %v3962
  %3979 = vst.msk [vmem:[#allocation2 + $0x30] sm:$0xf] %vm1004, %v3963
  %3980 = vst.msk [vmem:[#allocation2 + $0x3c] sm:$0xf] %vm1004, %v3964
  %3981 = vst.msk [vmem:[#allocation2 + $0x48] sm:$0xf] %vm1004, %v3965
  %3982 = vst.msk [vmem:[#allocation2 + $0x54] sm:$0xf] %vm1004, %v3966
  %3983 = vst.msk [vmem:[#allocation2 + $0x60] sm:$0xf] %vm1004, %v3967
  %3984 = vst.msk [vmem:[#allocation2 + $0x6c] sm:$0xf] %vm1004, %v3968
  %3985 = vst.msk [vmem:[#allocation2 + $0x78] sm:$0xf] %vm1004, %v3969
  %3986 = vst.msk [vmem:[#allocation2 + $0x84] sm:$0xf] %vm1004, %v3970
  %3987 = vst.msk [vmem:[#allocation2 + $0x90] sm:$0xf] %vm1004, %v3971
  %3988 = vst.msk [vmem:[#allocation2 + $0x9c] sm:$0xf] %vm1004, %v3972
  %3989 = vst.msk [vmem:[#allocation2 + $0xa8] sm:$0xf] %vm1004, %v3973
  %3990 = vst.msk [vmem:[#allocation2 + $0xb4] sm:$0xf] %vm1004, %v3974
  %v3991 = vld [vmem:[%s1021] sm:$0xff]
  %v3992 = vld [vmem:[%s1021 + $0x8] sm:$0xff]
  %v3993 = vld [vmem:[%s1021 + $0x10] sm:$0xff]
  %v3994 = vld [vmem:[%s1021 + $0x18] sm:$0xff]
  %v3995 = vld [vmem:[%s1021 + $0x20] sm:$0xff]
  %v3996 = vld [vmem:[%s1021 + $0x28] sm:$0xff]
  %v3997 = vld [vmem:[%s1021 + $0x30] sm:$0xff]
  %v3998 = vld [vmem:[%s1021 + $0x38] sm:$0xff]
  %v3999 = vld [vmem:[%s1021 + $0x40] sm:$0xff]
  %v4000 = vld [vmem:[%s1021 + $0x48] sm:$0xff]
  %v4001 = vld [vmem:[%s1021 + $0x50] sm:$0xff]
  %v4002 = vld [vmem:[%s1021 + $0x58] sm:$0xff]
  %v4003 = vld [vmem:[%s1021 + $0x60] sm:$0xff]
  %v4004 = vld [vmem:[%s1021 + $0x68] sm:$0xff]
  %v4005 = vld [vmem:[%s1021 + $0x70] sm:$0xff]
  %v4006 = vld [vmem:[%s1021 + $0x78] sm:$0xff]
  %4008 = vset.pattern.permute.xlu0 0
  %4009 = vperm.xlu0 %4008, %v3991
  %v4010 = vpop.permute.xlu0 %4009
  %4013 = vset.pattern.permute.xlu0 0
  %4014 = vperm.xlu0 %4013, %v3992
  %v4015 = vpop.permute.xlu0 %4014
  %4018 = vset.pattern.permute.xlu0 0
  %4019 = vperm.xlu0 %4018, %v3993
  %v4020 = vpop.permute.xlu0 %4019
  %4023 = vset.pattern.permute.xlu0 0
  %4024 = vperm.xlu0 %4023, %v3994
  %v4025 = vpop.permute.xlu0 %4024
  %4028 = vset.pattern.permute.xlu0 0
  %4029 = vperm.xlu0 %4028, %v3995
  %v4030 = vpop.permute.xlu0 %4029
  %4033 = vset.pattern.permute.xlu0 0
  %4034 = vperm.xlu0 %4033, %v3996
  %v4035 = vpop.permute.xlu0 %4034
  %4038 = vset.pattern.permute.xlu0 0
  %4039 = vperm.xlu0 %4038, %v3997
  %v4040 = vpop.permute.xlu0 %4039
  %4043 = vset.pattern.permute.xlu0 0
  %4044 = vperm.xlu0 %4043, %v3998
  %v4045 = vpop.permute.xlu0 %4044
  %4048 = vset.pattern.permute.xlu0 0
  %4049 = vperm.xlu0 %4048, %v3999
  %v4050 = vpop.permute.xlu0 %4049
  %4053 = vset.pattern.permute.xlu0 0
  %4054 = vperm.xlu0 %4053, %v4000
  %v4055 = vpop.permute.xlu0 %4054
  %4058 = vset.pattern.permute.xlu0 0
  %4059 = vperm.xlu0 %4058, %v4001
  %v4060 = vpop.permute.xlu0 %4059
  %4063 = vset.pattern.permute.xlu0 0
  %4064 = vperm.xlu0 %4063, %v4002
  %v4065 = vpop.permute.xlu0 %4064
  %4068 = vset.pattern.permute.xlu0 0
  %4069 = vperm.xlu0 %4068, %v4003
  %v4070 = vpop.permute.xlu0 %4069
  %4073 = vset.pattern.permute.xlu0 0
  %4074 = vperm.xlu0 %4073, %v4004
  %v4075 = vpop.permute.xlu0 %4074
  %4078 = vset.pattern.permute.xlu0 0
  %4079 = vperm.xlu0 %4078, %v4005
  %v4080 = vpop.permute.xlu0 %4079
  %4083 = vset.pattern.permute.xlu0 0
  %4084 = vperm.xlu0 %4083, %v4006
  %v4085 = vpop.permute.xlu0 %4084
  %v4087 = vmul.f32 %v3813, %v4010
  %v4088 = vmul.f32 %v3798, %v4015
  %v4089 = vmul.f32 %v3799, %v4020
  %v4090 = vmul.f32 %v3800, %v4025
  %v4091 = vmul.f32 %v3801, %v4030
  %v4092 = vmul.f32 %v3802, %v4035
  %v4093 = vmul.f32 %v3803, %v4040
  %v4094 = vmul.f32 %v3804, %v4045
  %v4095 = vmul.f32 %v3805, %v4050
  %v4096 = vmul.f32 %v3806, %v4055
  %v4097 = vmul.f32 %v3807, %v4060
  %v4098 = vmul.f32 %v3808, %v4065
  %v4099 = vmul.f32 %v3809, %v4070
  %v4100 = vmul.f32 %v3810, %v4075
  %v4101 = vmul.f32 %v3811, %v4080
  %v4102 = vmul.f32 %v3812, %v4085
  %v4103 = vpack.c.bf16 %v4087, %v4087
  %v4104 = vpack.c.bf16 %v4088, %v4088
  %v4105 = vpack.c.bf16 %v4089, %v4089
  %v4106 = vpack.c.bf16 %v4090, %v4090
  %v4107 = vpack.c.bf16 %v4091, %v4091
  %v4108 = vpack.c.bf16 %v4092, %v4092
  %v4109 = vpack.c.bf16 %v4093, %v4093
  %v4110 = vpack.c.bf16 %v4094, %v4094
  %v4111 = vpack.c.bf16 %v4095, %v4095
  %v4112 = vpack.c.bf16 %v4096, %v4096
  %v4113 = vpack.c.bf16 %v4097, %v4097
  %v4114 = vpack.c.bf16 %v4098, %v4098
  %v4115 = vpack.c.bf16 %v4099, %v4099
  %v4116 = vpack.c.bf16 %v4100, %v4100
  %v4117 = vpack.c.bf16 %v4101, %v4101
  %v4118 = vpack.c.bf16 %v4102, %v4102
  %4135 = vrot.lane.b32.xlu0 %v4103, 32
  %v4136 = vpop.permute.xlu0 %4135
  %4137 = vrot.lane.b32.xlu0 %v4104, 32
  %v4138 = vpop.permute.xlu0 %4137
  %4139 = vrot.lane.b32.xlu0 %v4105, 32
  %v4140 = vpop.permute.xlu0 %4139
  %4141 = vrot.lane.b32.xlu0 %v4106, 32
  %v4142 = vpop.permute.xlu0 %4141
  %4143 = vrot.lane.b32.xlu0 %v4107, 32
  %v4144 = vpop.permute.xlu0 %4143
  %4145 = vrot.lane.b32.xlu0 %v4108, 32
  %v4146 = vpop.permute.xlu0 %4145
  %4147 = vrot.lane.b32.xlu0 %v4109, 32
  %v4148 = vpop.permute.xlu0 %4147
  %4149 = vrot.lane.b32.xlu0 %v4110, 32
  %v4150 = vpop.permute.xlu0 %4149
  %4151 = vrot.lane.b32.xlu0 %v4111, 32
  %v4152 = vpop.permute.xlu0 %4151
  %4153 = vrot.lane.b32.xlu0 %v4112, 32
  %v4154 = vpop.permute.xlu0 %4153
  %4155 = vrot.lane.b32.xlu0 %v4113, 32
  %v4156 = vpop.permute.xlu0 %4155
  %4157 = vrot.lane.b32.xlu0 %v4114, 32
  %v4158 = vpop.permute.xlu0 %4157
  %4159 = vrot.lane.b32.xlu0 %v4115, 32
  %v4160 = vpop.permute.xlu0 %4159
  %4161 = vrot.lane.b32.xlu0 %v4116, 32
  %v4162 = vpop.permute.xlu0 %4161
  %4163 = vrot.lane.b32.xlu0 %v4117, 32
  %v4164 = vpop.permute.xlu0 %4163
  %4165 = vrot.lane.b32.xlu0 %v4118, 32
  %v4166 = vpop.permute.xlu0 %4165
  %4183 = vst.msk [vmem:[#allocation2] sm:$0xf] %vm1214, %v4136
  %4184 = vst.msk [vmem:[#allocation2 + $0xc] sm:$0xf] %vm1214, %v4138
  %4185 = vst.msk [vmem:[#allocation2 + $0x18] sm:$0xf] %vm1214, %v4140
  %4186 = vst.msk [vmem:[#allocation2 + $0x24] sm:$0xf] %vm1214, %v4142
  %4187 = vst.msk [vmem:[#allocation2 + $0x30] sm:$0xf] %vm1214, %v4144
  %4188 = vst.msk [vmem:[#allocation2 + $0x3c] sm:$0xf] %vm1214, %v4146
  %4189 = vst.msk [vmem:[#allocation2 + $0x48] sm:$0xf] %vm1214, %v4148
  %4190 = vst.msk [vmem:[#allocation2 + $0x54] sm:$0xf] %vm1214, %v4150
  %4191 = vst.msk [vmem:[#allocation2 + $0x60] sm:$0xf] %vm1214, %v4152
  %4192 = vst.msk [vmem:[#allocation2 + $0x6c] sm:$0xf] %vm1214, %v4154
  %4193 = vst.msk [vmem:[#allocation2 + $0x78] sm:$0xf] %vm1214, %v4156
  %4194 = vst.msk [vmem:[#allocation2 + $0x84] sm:$0xf] %vm1214, %v4158
  %4195 = vst.msk [vmem:[#allocation2 + $0x90] sm:$0xf] %vm1214, %v4160
  %4196 = vst.msk [vmem:[#allocation2 + $0x9c] sm:$0xf] %vm1214, %v4162
  %4197 = vst.msk [vmem:[#allocation2 + $0xa8] sm:$0xf] %vm1214, %v4164
  %4198 = vst.msk [vmem:[#allocation2 + $0xb4] sm:$0xf] %vm1214, %v4166
  %v4199 = vrot.slane %v3798, 1
  %v4200 = vrot.slane %v3799, 1
  %v4201 = vrot.slane %v3800, 1
  %v4202 = vrot.slane %v3801, 1
  %v4203 = vrot.slane %v3802, 1
  %v4204 = vrot.slane %v3803, 1
  %v4205 = vrot.slane %v3804, 1
  %v4206 = vrot.slane %v3805, 1
  %v4207 = vrot.slane %v3806, 1
  %v4208 = vrot.slane %v3807, 1
  %v4209 = vrot.slane %v3808, 1
  %v4210 = vrot.slane %v3809, 1
  %v4211 = vrot.slane %v3810, 1
  %v4212 = vrot.slane %v3811, 1
  %v4213 = vrot.slane %v3812, 1
  %v4214 = vrot.slane %v3813, 1
  %v4215 = vsel %vm1247, %v4213, %v4214
  %v4216 = vsel %vm1247, %v4212, %v4213
  %v4217 = vsel %vm1247, %v4211, %v4212
  %v4218 = vsel %vm1247, %v4210, %v4211
  %v4219 = vsel %vm1247, %v4209, %v4210
  %v4220 = vsel %vm1247, %v4208, %v4209
  %v4221 = vsel %vm1247, %v4207, %v4208
  %v4222 = vsel %vm1247, %v4206, %v4207
  %v4223 = vsel %vm1247, %v4205, %v4206
  %v4224 = vsel %vm1247, %v4204, %v4205
  %v4225 = vsel %vm1247, %v4203, %v4204
  %v4226 = vsel %vm1247, %v4202, %v4203
  %v4227 = vsel %vm1247, %v4201, %v4202
  %v4228 = vsel %vm1247, %v4200, %v4201
  %v4229 = vsel %vm1247, %v4199, %v4200
  %v4230 = vsel %vm1247, %v4214, %v4199
  %v4231 = vld [vmem:[%s1264] sm:$0xff]
  %v4232 = vld [vmem:[%s1264 + $0x8] sm:$0xff]
  %v4233 = vld [vmem:[%s1264 + $0x10] sm:$0xff]
  %v4234 = vld [vmem:[%s1264 + $0x18] sm:$0xff]
  %v4235 = vld [vmem:[%s1264 + $0x20] sm:$0xff]
  %v4236 = vld [vmem:[%s1264 + $0x28] sm:$0xff]
  %v4237 = vld [vmem:[%s1264 + $0x30] sm:$0xff]
  %v4238 = vld [vmem:[%s1264 + $0x38] sm:$0xff]
  %v4239 = vld [vmem:[%s1264 + $0x40] sm:$0xff]
  %v4240 = vld [vmem:[%s1264 + $0x48] sm:$0xff]
  %v4241 = vld [vmem:[%s1264 + $0x50] sm:$0xff]
  %v4242 = vld [vmem:[%s1264 + $0x58] sm:$0xff]
  %v4243 = vld [vmem:[%s1264 + $0x60] sm:$0xff]
  %v4244 = vld [vmem:[%s1264 + $0x68] sm:$0xff]
  %v4245 = vld [vmem:[%s1264 + $0x70] sm:$0xff]
  %v4246 = vld [vmem:[%s1264 + $0x78] sm:$0xff]
  %4248 = vset.pattern.permute.xlu0 0
  %4249 = vperm.xlu0 %4248, %v4231
  %v4250 = vpop.permute.xlu0 %4249
  %4253 = vset.pattern.permute.xlu0 0
  %4254 = vperm.xlu0 %4253, %v4232
  %v4255 = vpop.permute.xlu0 %4254
  %4258 = vset.pattern.permute.xlu0 0
  %4259 = vperm.xlu0 %4258, %v4233
  %v4260 = vpop.permute.xlu0 %4259
  %4263 = vset.pattern.permute.xlu0 0
  %4264 = vperm.xlu0 %4263, %v4234
  %v4265 = vpop.permute.xlu0 %4264
  %4268 = vset.pattern.permute.xlu0 0
  %4269 = vperm.xlu0 %4268, %v4235
  %v4270 = vpop.permute.xlu0 %4269
  %4273 = vset.pattern.permute.xlu0 0
  %4274 = vperm.xlu0 %4273, %v4236
  %v4275 = vpop.permute.xlu0 %4274
  %4278 = vset.pattern.permute.xlu0 0
  %4279 = vperm.xlu0 %4278, %v4237
  %v4280 = vpop.permute.xlu0 %4279
  %4283 = vset.pattern.permute.xlu0 0
  %4284 = vperm.xlu0 %4283, %v4238
  %v4285 = vpop.permute.xlu0 %4284
  %4288 = vset.pattern.permute.xlu0 0
  %4289 = vperm.xlu0 %4288, %v4239
  %v4290 = vpop.permute.xlu0 %4289
  %4293 = vset.pattern.permute.xlu0 0
  %4294 = vperm.xlu0 %4293, %v4240
  %v4295 = vpop.permute.xlu0 %4294
  %4298 = vset.pattern.permute.xlu0 0
  %4299 = vperm.xlu0 %4298, %v4241
  %v4300 = vpop.permute.xlu0 %4299
  %4303 = vset.pattern.permute.xlu0 0
  %4304 = vperm.xlu0 %4303, %v4242
  %v4305 = vpop.permute.xlu0 %4304
  %4308 = vset.pattern.permute.xlu0 0
  %4309 = vperm.xlu0 %4308, %v4243
  %v4310 = vpop.permute.xlu0 %4309
  %4313 = vset.pattern.permute.xlu0 0
  %4314 = vperm.xlu0 %4313, %v4244
  %v4315 = vpop.permute.xlu0 %4314
  %4318 = vset.pattern.permute.xlu0 0
  %4319 = vperm.xlu0 %4318, %v4245
  %v4320 = vpop.permute.xlu0 %4319
  %4323 = vset.pattern.permute.xlu0 0
  %4324 = vperm.xlu0 %4323, %v4246
  %v4325 = vpop.permute.xlu0 %4324
  %v4327 = vmul.f32 %v4230, %v4250
  %v4328 = vmul.f32 %v4229, %v4255
  %v4329 = vmul.f32 %v4228, %v4260
  %v4330 = vmul.f32 %v4227, %v4265
  %v4331 = vmul.f32 %v4226, %v4270
  %v4332 = vmul.f32 %v4225, %v4275
  %v4333 = vmul.f32 %v4224, %v4280
  %v4334 = vmul.f32 %v4223, %v4285
  %v4335 = vmul.f32 %v4222, %v4290
  %v4336 = vmul.f32 %v4221, %v4295
  %v4337 = vmul.f32 %v4220, %v4300
  %v4338 = vmul.f32 %v4219, %v4305
  %v4339 = vmul.f32 %v4218, %v4310
  %v4340 = vmul.f32 %v4217, %v4315
  %v4341 = vmul.f32 %v4216, %v4320
  %v4342 = vmul.f32 %v4215, %v4325
  %v4343 = vpack.c.bf16 %v4327, %v4327
  %v4344 = vpack.c.bf16 %v4328, %v4328
  %v4345 = vpack.c.bf16 %v4329, %v4329
  %v4346 = vpack.c.bf16 %v4330, %v4330
  %v4347 = vpack.c.bf16 %v4331, %v4331
  %v4348 = vpack.c.bf16 %v4332, %v4332
  %v4349 = vpack.c.bf16 %v4333, %v4333
  %v4350 = vpack.c.bf16 %v4334, %v4334
  %v4351 = vpack.c.bf16 %v4335, %v4335
  %v4352 = vpack.c.bf16 %v4336, %v4336
  %v4353 = vpack.c.bf16 %v4337, %v4337
  %v4354 = vpack.c.bf16 %v4338, %v4338
  %v4355 = vpack.c.bf16 %v4339, %v4339
  %v4356 = vpack.c.bf16 %v4340, %v4340
  %v4357 = vpack.c.bf16 %v4341, %v4341
  %v4358 = vpack.c.bf16 %v4342, %v4342
  %4375 = vrot.lane.b32.xlu0 %v4343, 64
  %v4376 = vpop.permute.xlu0 %4375
  %4377 = vrot.lane.b32.xlu0 %v4344, 64
  %v4378 = vpop.permute.xlu0 %4377
  %4379 = vrot.lane.b32.xlu0 %v4345, 64
  %v4380 = vpop.permute.xlu0 %4379
  %4381 = vrot.lane.b32.xlu0 %v4346, 64
  %v4382 = vpop.permute.xlu0 %4381
  %4383 = vrot.lane.b32.xlu0 %v4347, 64
  %v4384 = vpop.permute.xlu0 %4383
  %4385 = vrot.lane.b32.xlu0 %v4348, 64
  %v4386 = vpop.permute.xlu0 %4385
  %4387 = vrot.lane.b32.xlu0 %v4349, 64
  %v4388 = vpop.permute.xlu0 %4387
  %4389 = vrot.lane.b32.xlu0 %v4350, 64
  %v4390 = vpop.permute.xlu0 %4389
  %4391 = vrot.lane.b32.xlu0 %v4351, 64
  %v4392 = vpop.permute.xlu0 %4391
  %4393 = vrot.lane.b32.xlu0 %v4352, 64
  %v4394 = vpop.permute.xlu0 %4393
  %4395 = vrot.lane.b32.xlu0 %v4353, 64
  %v4396 = vpop.permute.xlu0 %4395
  %4397 = vrot.lane.b32.xlu0 %v4354, 64
  %v4398 = vpop.permute.xlu0 %4397
  %4399 = vrot.lane.b32.xlu0 %v4355, 64
  %v4400 = vpop.permute.xlu0 %4399
  %4401 = vrot.lane.b32.xlu0 %v4356, 64
  %v4402 = vpop.permute.xlu0 %4401
  %4403 = vrot.lane.b32.xlu0 %v4357, 64
  %v4404 = vpop.permute.xlu0 %4403
  %4405 = vrot.lane.b32.xlu0 %v4358, 64
  %v4406 = vpop.permute.xlu0 %4405
  %4423 = vst.msk [vmem:[#allocation2] sm:$0xf] %vm1457, %v4376
  %4424 = vst.msk [vmem:[#allocation2 + $0xc] sm:$0xf] %vm1457, %v4378
  %4425 = vst.msk [vmem:[#allocation2 + $0x18] sm:$0xf] %vm1457, %v4380
  %4426 = vst.msk [vmem:[#allocation2 + $0x24] sm:$0xf] %vm1457, %v4382
  %4427 = vst.msk [vmem:[#allocation2 + $0x30] sm:$0xf] %vm1457, %v4384
  %4428 = vst.msk [vmem:[#allocation2 + $0x3c] sm:$0xf] %vm1457, %v4386
  %4429 = vst.msk [vmem:[#allocation2 + $0x48] sm:$0xf] %vm1457, %v4388
  %4430 = vst.msk [vmem:[#allocation2 + $0x54] sm:$0xf] %vm1457, %v4390
  %4431 = vst.msk [vmem:[#allocation2 + $0x60] sm:$0xf] %vm1457, %v4392
  %4432 = vst.msk [vmem:[#allocation2 + $0x6c] sm:$0xf] %vm1457, %v4394
  %4433 = vst.msk [vmem:[#allocation2 + $0x78] sm:$0xf] %vm1457, %v4396
  %4434 = vst.msk [vmem:[#allocation2 + $0x84] sm:$0xf] %vm1457, %v4398
  %4435 = vst.msk [vmem:[#allocation2 + $0x90] sm:$0xf] %vm1457, %v4400
  %4436 = vst.msk [vmem:[#allocation2 + $0x9c] sm:$0xf] %vm1457, %v4402
  %4437 = vst.msk [vmem:[#allocation2 + $0xa8] sm:$0xf] %vm1457, %v4404
  %4438 = vst.msk [vmem:[#allocation2 + $0xb4] sm:$0xf] %vm1457, %v4406
  %v4439 = vld [vmem:[%s1474] sm:$0xff]
  %v4440 = vld [vmem:[%s1474 + $0x8] sm:$0xff]
  %v4441 = vld [vmem:[%s1474 + $0x10] sm:$0xff]
  %v4442 = vld [vmem:[%s1474 + $0x18] sm:$0xff]
  %v4443 = vld [vmem:[%s1474 + $0x20] sm:$0xff]
  %v4444 = vld [vmem:[%s1474 + $0x28] sm:$0xff]
  %v4445 = vld [vmem:[%s1474 + $0x30] sm:$0xff]
  %v4446 = vld [vmem:[%s1474 + $0x38] sm:$0xff]
  %v4447 = vld [vmem:[%s1474 + $0x40] sm:$0xff]
  %v4448 = vld [vmem:[%s1474 + $0x48] sm:$0xff]
  %v4449 = vld [vmem:[%s1474 + $0x50] sm:$0xff]
  %v4450 = vld [vmem:[%s1474 + $0x58] sm:$0xff]
  %v4451 = vld [vmem:[%s1474 + $0x60] sm:$0xff]
  %v4452 = vld [vmem:[%s1474 + $0x68] sm:$0xff]
  %v4453 = vld [vmem:[%s1474 + $0x70] sm:$0xff]
  %v4454 = vld [vmem:[%s1474 + $0x78] sm:$0xff]
  %4456 = vset.pattern.permute.xlu0 0
  %4457 = vperm.xlu0 %4456, %v4439
  %v4458 = vpop.permute.xlu0 %4457
  %4461 = vset.pattern.permute.xlu0 0
  %4462 = vperm.xlu0 %4461, %v4440
  %v4463 = vpop.permute.xlu0 %4462
  %4466 = vset.pattern.permute.xlu0 0
  %4467 = vperm.xlu0 %4466, %v4441
  %v4468 = vpop.permute.xlu0 %4467
  %4471 = vset.pattern.permute.xlu0 0
  %4472 = vperm.xlu0 %4471, %v4442
  %v4473 = vpop.permute.xlu0 %4472
  %4476 = vset.pattern.permute.xlu0 0
  %4477 = vperm.xlu0 %4476, %v4443
  %v4478 = vpop.permute.xlu0 %4477
  %4481 = vset.pattern.permute.xlu0 0
  %4482 = vperm.xlu0 %4481, %v4444
  %v4483 = vpop.permute.xlu0 %4482
  %4486 = vset.pattern.permute.xlu0 0
  %4487 = vperm.xlu0 %4486, %v4445
  %v4488 = vpop.permute.xlu0 %4487
  %4491 = vset.pattern.permute.xlu0 0
  %4492 = vperm.xlu0 %4491, %v4446
  %v4493 = vpop.permute.xlu0 %4492
  %4496 = vset.pattern.permute.xlu0 0
  %4497 = vperm.xlu0 %4496, %v4447
  %v4498 = vpop.permute.xlu0 %4497
  %4501 = vset.pattern.permute.xlu0 0
  %4502 = vperm.xlu0 %4501, %v4448
  %v4503 = vpop.permute.xlu0 %4502
  %4506 = vset.pattern.permute.xlu0 0
  %4507 = vperm.xlu0 %4506, %v4449
  %v4508 = vpop.permute.xlu0 %4507
  %4511 = vset.pattern.permute.xlu0 0
  %4512 = vperm.xlu0 %4511, %v4450
  %v4513 = vpop.permute.xlu0 %4512
  %4516 = vset.pattern.permute.xlu0 0
  %4517 = vperm.xlu0 %4516, %v4451
  %v4518 = vpop.permute.xlu0 %4517
  %4521 = vset.pattern.permute.xlu0 0
  %4522 = vperm.xlu0 %4521, %v4452
  %v4523 = vpop.permute.xlu0 %4522
  %4526 = vset.pattern.permute.xlu0 0
  %4527 = vperm.xlu0 %4526, %v4453
  %v4528 = vpop.permute.xlu0 %4527
  %4531 = vset.pattern.permute.xlu0 0
  %4532 = vperm.xlu0 %4531, %v4454
  %v4533 = vpop.permute.xlu0 %4532
  %v4535 = vmul.f32 %v3846, %v4458
  %v4536 = vmul.f32 %v3845, %v4463
  %v4537 = vmul.f32 %v3844, %v4468
  %v4538 = vmul.f32 %v3843, %v4473
  %v4539 = vmul.f32 %v3842, %v4478
  %v4540 = vmul.f32 %v3841, %v4483
  %v4541 = vmul.f32 %v3840, %v4488
  %v4542 = vmul.f32 %v3839, %v4493
  %v4543 = vmul.f32 %v3838, %v4498
  %v4544 = vmul.f32 %v3837, %v4503
  %v4545 = vmul.f32 %v3836, %v4508
  %v4546 = vmul.f32 %v3835, %v4513
  %v4547 = vmul.f32 %v3834, %v4518
  %v4548 = vmul.f32 %v3833, %v4523
  %v4549 = vmul.f32 %v3832, %v4528
  %v4550 = vmul.f32 %v3831, %v4533
  %v4551 = vpack.c.bf16 %v4535, %v4535
  %v4552 = vpack.c.bf16 %v4536, %v4536
  %v4553 = vpack.c.bf16 %v4537, %v4537
  %v4554 = vpack.c.bf16 %v4538, %v4538
  %v4555 = vpack.c.bf16 %v4539, %v4539
  %v4556 = vpack.c.bf16 %v4540, %v4540
  %v4557 = vpack.c.bf16 %v4541, %v4541
  %v4558 = vpack.c.bf16 %v4542, %v4542
  %v4559 = vpack.c.bf16 %v4543, %v4543
  %v4560 = vpack.c.bf16 %v4544, %v4544
  %v4561 = vpack.c.bf16 %v4545, %v4545
  %v4562 = vpack.c.bf16 %v4546, %v4546
  %v4563 = vpack.c.bf16 %v4547, %v4547
  %v4564 = vpack.c.bf16 %v4548, %v4548
  %v4565 = vpack.c.bf16 %v4549, %v4549
  %v4566 = vpack.c.bf16 %v4550, %v4550
  %4583 = vrot.lane.b32.xlu0 %v4551, 96
  %v4584 = vpop.permute.xlu0 %4583
  %4585 = vrot.lane.b32.xlu0 %v4552, 96
  %v4586 = vpop.permute.xlu0 %4585
  %4587 = vrot.lane.b32.xlu0 %v4553, 96
  %v4588 = vpop.permute.xlu0 %4587
  %4589 = vrot.lane.b32.xlu0 %v4554, 96
  %v4590 = vpop.permute.xlu0 %4589
  %4591 = vrot.lane.b32.xlu0 %v4555, 96
  %v4592 = vpop.permute.xlu0 %4591
  %4593 = vrot.lane.b32.xlu0 %v4556, 96
  %v4594 = vpop.permute.xlu0 %4593
  %4595 = vrot.lane.b32.xlu0 %v4557, 96
  %v4596 = vpop.permute.xlu0 %4595
  %4597 = vrot.lane.b32.xlu0 %v4558, 96
  %v4598 = vpop.permute.xlu0 %4597
  %4599 = vrot.lane.b32.xlu0 %v4559, 96
  %v4600 = vpop.permute.xlu0 %4599
  %4601 = vrot.lane.b32.xlu0 %v4560, 96
  %v4602 = vpop.permute.xlu0 %4601
  %4603 = vrot.lane.b32.xlu0 %v4561, 96
  %v4604 = vpop.permute.xlu0 %4603
  %4605 = vrot.lane.b32.xlu0 %v4562, 96
  %v4606 = vpop.permute.xlu0 %4605
  %4607 = vrot.lane.b32.xlu0 %v4563, 96
  %v4608 = vpop.permute.xlu0 %4607
  %4609 = vrot.lane.b32.xlu0 %v4564, 96
  %v4610 = vpop.permute.xlu0 %4609
  %4611 = vrot.lane.b32.xlu0 %v4565, 96
  %v4612 = vpop.permute.xlu0 %4611
  %4613 = vrot.lane.b32.xlu0 %v4566, 96
  %v4614 = vpop.permute.xlu0 %4613
  %4631 = vst.msk [vmem:[#allocation2] sm:$0xf] %vm1667, %v4584
  %4632 = vst.msk [vmem:[#allocation2 + $0xc] sm:$0xf] %vm1667, %v4586
  %4633 = vst.msk [vmem:[#allocation2 + $0x18] sm:$0xf] %vm1667, %v4588
  %4634 = vst.msk [vmem:[#allocation2 + $0x24] sm:$0xf] %vm1667, %v4590
  %4635 = vst.msk [vmem:[#allocation2 + $0x30] sm:$0xf] %vm1667, %v4592
  %4636 = vst.msk [vmem:[#allocation2 + $0x3c] sm:$0xf] %vm1667, %v4594
  %4637 = vst.msk [vmem:[#allocation2 + $0x48] sm:$0xf] %vm1667, %v4596
  %4638 = vst.msk [vmem:[#allocation2 + $0x54] sm:$0xf] %vm1667, %v4598
  %4639 = vst.msk [vmem:[#allocation2 + $0x60] sm:$0xf] %vm1667, %v4600
  %4640 = vst.msk [vmem:[#allocation2 + $0x6c] sm:$0xf] %vm1667, %v4602
  %4641 = vst.msk [vmem:[#allocation2 + $0x78] sm:$0xf] %vm1667, %v4604
  %4642 = vst.msk [vmem:[#allocation2 + $0x84] sm:$0xf] %vm1667, %v4606
  %4643 = vst.msk [vmem:[#allocation2 + $0x90] sm:$0xf] %vm1667, %v4608
  %4644 = vst.msk [vmem:[#allocation2 + $0x9c] sm:$0xf] %vm1667, %v4610
  %4645 = vst.msk [vmem:[#allocation2 + $0xa8] sm:$0xf] %vm1667, %v4612
  %4646 = vst.msk [vmem:[#allocation2 + $0xb4] sm:$0xf] %vm1667, %v4614
  %v4647 = vpack.c.bf16 %v3798, %v3798
  %v4648 = vpack.c.bf16 %v3799, %v3799
  %v4649 = vpack.c.bf16 %v3800, %v3800
  %v4650 = vpack.c.bf16 %v3801, %v3801
  %v4651 = vpack.c.bf16 %v3802, %v3802
  %v4652 = vpack.c.bf16 %v3803, %v3803
  %v4653 = vpack.c.bf16 %v3804, %v3804
  %v4654 = vpack.c.bf16 %v3805, %v3805
  %v4655 = vpack.c.bf16 %v3806, %v3806
  %v4656 = vpack.c.bf16 %v3807, %v3807
  %v4657 = vpack.c.bf16 %v3808, %v3808
  %v4658 = vpack.c.bf16 %v3809, %v3809
  %v4659 = vpack.c.bf16 %v3810, %v3810
  %v4660 = vpack.c.bf16 %v3811, %v3811
  %v4661 = vpack.c.bf16 %v3812, %v3812
  %v4662 = vpack.c.bf16 %v3813, %v3813
  %4663 = vst.msk [vmem:[#allocation2 + $0x4] sm:$0xf] %vm1004, %v4647
  %4664 = vst.msk [vmem:[#allocation2 + $0x10] sm:$0xf] %vm1004, %v4648
  %4665 = vst.msk [vmem:[#allocation2 + $0x1c] sm:$0xf] %vm1004, %v4649
  %4666 = vst.msk [vmem:[#allocation2 + $0x28] sm:$0xf] %vm1004, %v4650
  %4667 = vst.msk [vmem:[#allocation2 + $0x34] sm:$0xf] %vm1004, %v4651
  %4668 = vst.msk [vmem:[#allocation2 + $0x40] sm:$0xf] %vm1004, %v4652
  %4669 = vst.msk [vmem:[#allocation2 + $0x4c] sm:$0xf] %vm1004, %v4653
  %4670 = vst.msk [vmem:[#allocation2 + $0x58] sm:$0xf] %vm1004, %v4654
  %4671 = vst.msk [vmem:[#allocation2 + $0x64] sm:$0xf] %vm1004, %v4655
  %4672 = vst.msk [vmem:[#allocation2 + $0x70] sm:$0xf] %vm1004, %v4656
  %4673 = vst.msk [vmem:[#allocation2 + $0x7c] sm:$0xf] %vm1004, %v4657
  %4674 = vst.msk [vmem:[#allocation2 + $0x88] sm:$0xf] %vm1004, %v4658
  %4675 = vst.msk [vmem:[#allocation2 + $0x94] sm:$0xf] %vm1004, %v4659
  %4676 = vst.msk [vmem:[#allocation2 + $0xa0] sm:$0xf] %vm1004, %v4660
  %4677 = vst.msk [vmem:[#allocation2 + $0xac] sm:$0xf] %vm1004, %v4661
  %4678 = vst.msk [vmem:[#allocation2 + $0xb8] sm:$0xf] %vm1004, %v4662
  %v4679 = vld [vmem:[%s1716] sm:$0xff]
  %v4680 = vld [vmem:[%s1716 + $0x8] sm:$0xff]
  %v4681 = vld [vmem:[%s1716 + $0x10] sm:$0xff]
  %v4682 = vld [vmem:[%s1716 + $0x18] sm:$0xff]
  %v4683 = vld [vmem:[%s1716 + $0x20] sm:$0xff]
  %v4684 = vld [vmem:[%s1716 + $0x28] sm:$0xff]
  %v4685 = vld [vmem:[%s1716 + $0x30] sm:$0xff]
  %v4686 = vld [vmem:[%s1716 + $0x38] sm:$0xff]
  %v4687 = vld [vmem:[%s1716 + $0x40] sm:$0xff]
  %v4688 = vld [vmem:[%s1716 + $0x48] sm:$0xff]
  %v4689 = vld [vmem:[%s1716 + $0x50] sm:$0xff]
  %v4690 = vld [vmem:[%s1716 + $0x58] sm:$0xff]
  %v4691 = vld [vmem:[%s1716 + $0x60] sm:$0xff]
  %v4692 = vld [vmem:[%s1716 + $0x68] sm:$0xff]
  %v4693 = vld [vmem:[%s1716 + $0x70] sm:$0xff]
  %v4694 = vld [vmem:[%s1716 + $0x78] sm:$0xff]
  %4696 = vset.pattern.permute.xlu0 0
  %4697 = vperm.xlu0 %4696, %v4679
  %v4698 = vpop.permute.xlu0 %4697
  %4701 = vset.pattern.permute.xlu0 0
  %4702 = vperm.xlu0 %4701, %v4680
  %v4703 = vpop.permute.xlu0 %4702
  %4706 = vset.pattern.permute.xlu0 0
  %4707 = vperm.xlu0 %4706, %v4681
  %v4708 = vpop.permute.xlu0 %4707
  %4711 = vset.pattern.permute.xlu0 0
  %4712 = vperm.xlu0 %4711, %v4682
  %v4713 = vpop.permute.xlu0 %4712
  %4716 = vset.pattern.permute.xlu0 0
  %4717 = vperm.xlu0 %4716, %v4683
  %v4718 = vpop.permute.xlu0 %4717
  %4721 = vset.pattern.permute.xlu0 0
  %4722 = vperm.xlu0 %4721, %v4684
  %v4723 = vpop.permute.xlu0 %4722
  %4726 = vset.pattern.permute.xlu0 0
  %4727 = vperm.xlu0 %4726, %v4685
  %v4728 = vpop.permute.xlu0 %4727
  %4731 = vset.pattern.permute.xlu0 0
  %4732 = vperm.xlu0 %4731, %v4686
  %v4733 = vpop.permute.xlu0 %4732
  %4736 = vset.pattern.permute.xlu0 0
  %4737 = vperm.xlu0 %4736, %v4687
  %v4738 = vpop.permute.xlu0 %4737
  %4741 = vset.pattern.permute.xlu0 0
  %4742 = vperm.xlu0 %4741, %v4688
  %v4743 = vpop.permute.xlu0 %4742
  %4746 = vset.pattern.permute.xlu0 0
  %4747 = vperm.xlu0 %4746, %v4689
  %v4748 = vpop.permute.xlu0 %4747
  %4751 = vset.pattern.permute.xlu0 0
  %4752 = vperm.xlu0 %4751, %v4690
  %v4753 = vpop.permute.xlu0 %4752
  %4756 = vset.pattern.permute.xlu0 0
  %4757 = vperm.xlu0 %4756, %v4691
  %v4758 = vpop.permute.xlu0 %4757
  %4761 = vset.pattern.permute.xlu0 0
  %4762 = vperm.xlu0 %4761, %v4692
  %v4763 = vpop.permute.xlu0 %4762
  %4766 = vset.pattern.permute.xlu0 0
  %4767 = vperm.xlu0 %4766, %v4693
  %v4768 = vpop.permute.xlu0 %4767
  %4771 = vset.pattern.permute.xlu0 0
  %4772 = vperm.xlu0 %4771, %v4694
  %v4773 = vpop.permute.xlu0 %4772
  %v4775 = vmul.f32 %v4229, %v4698
  %v4776 = vmul.f32 %v4228, %v4703
  %v4777 = vmul.f32 %v4227, %v4708
  %v4778 = vmul.f32 %v4226, %v4713
  %v4779 = vmul.f32 %v4225, %v4718
  %v4780 = vmul.f32 %v4224, %v4723
  %v4781 = vmul.f32 %v4223, %v4728
  %v4782 = vmul.f32 %v4222, %v4733
  %v4783 = vmul.f32 %v4221, %v4738
  %v4784 = vmul.f32 %v4220, %v4743
  %v4785 = vmul.f32 %v4219, %v4748
  %v4786 = vmul.f32 %v4218, %v4753
  %v4787 = vmul.f32 %v4217, %v4758
  %v4788 = vmul.f32 %v4216, %v4763
  %v4789 = vmul.f32 %v4215, %v4768
  %v4790 = vmul.f32 %v4230, %v4773
  %v4791 = vpack.c.bf16 %v4775, %v4775
  %v4792 = vpack.c.bf16 %v4776, %v4776
  %v4793 = vpack.c.bf16 %v4777, %v4777
  %v4794 = vpack.c.bf16 %v4778, %v4778
  %v4795 = vpack.c.bf16 %v4779, %v4779
  %v4796 = vpack.c.bf16 %v4780, %v4780
  %v4797 = vpack.c.bf16 %v4781, %v4781
  %v4798 = vpack.c.bf16 %v4782, %v4782
  %v4799 = vpack.c.bf16 %v4783, %v4783
  %v4800 = vpack.c.bf16 %v4784, %v4784
  %v4801 = vpack.c.bf16 %v4785, %v4785
  %v4802 = vpack.c.bf16 %v4786, %v4786
  %v4803 = vpack.c.bf16 %v4787, %v4787
  %v4804 = vpack.c.bf16 %v4788, %v4788
  %v4805 = vpack.c.bf16 %v4789, %v4789
  %v4806 = vpack.c.bf16 %v4790, %v4790
  %4823 = vrot.lane.b32.xlu0 %v4791, 32
  %v4824 = vpop.permute.xlu0 %4823
  %4825 = vrot.lane.b32.xlu0 %v4792, 32
  %v4826 = vpop.permute.xlu0 %4825
  %4827 = vrot.lane.b32.xlu0 %v4793, 32
  %v4828 = vpop.permute.xlu0 %4827
  %4829 = vrot.lane.b32.xlu0 %v4794, 32
  %v4830 = vpop.permute.xlu0 %4829
  %4831 = vrot.lane.b32.xlu0 %v4795, 32
  %v4832 = vpop.permute.xlu0 %4831
  %4833 = vrot.lane.b32.xlu0 %v4796, 32
  %v4834 = vpop.permute.xlu0 %4833
  %4835 = vrot.lane.b32.xlu0 %v4797, 32
  %v4836 = vpop.permute.xlu0 %4835
  %4837 = vrot.lane.b32.xlu0 %v4798, 32
  %v4838 = vpop.permute.xlu0 %4837
  %4839 = vrot.lane.b32.xlu0 %v4799, 32
  %v4840 = vpop.permute.xlu0 %4839
  %4841 = vrot.lane.b32.xlu0 %v4800, 32
  %v4842 = vpop.permute.xlu0 %4841
  %4843 = vrot.lane.b32.xlu0 %v4801, 32
  %v4844 = vpop.permute.xlu0 %4843
  %4845 = vrot.lane.b32.xlu0 %v4802, 32
  %v4846 = vpop.permute.xlu0 %4845
  %4847 = vrot.lane.b32.xlu0 %v4803, 32
  %v4848 = vpop.permute.xlu0 %4847
  %4849 = vrot.lane.b32.xlu0 %v4804, 32
  %v4850 = vpop.permute.xlu0 %4849
  %4851 = vrot.lane.b32.xlu0 %v4805, 32
  %v4852 = vpop.permute.xlu0 %4851
  %4853 = vrot.lane.b32.xlu0 %v4806, 32
  %v4854 = vpop.permute.xlu0 %4853
  %4871 = vst.msk [vmem:[#allocation2 + $0x4] sm:$0xf] %vm1214, %v4824
  %4872 = vst.msk [vmem:[#allocation2 + $0x10] sm:$0xf] %vm1214, %v4826
  %4873 = vst.msk [vmem:[#allocation2 + $0x1c] sm:$0xf] %vm1214, %v4828
  %4874 = vst.msk [vmem:[#allocation2 + $0x28] sm:$0xf] %vm1214, %v4830
  %4875 = vst.msk [vmem:[#allocation2 + $0x34] sm:$0xf] %vm1214, %v4832
  %4876 = vst.msk [vmem:[#allocation2 + $0x40] sm:$0xf] %vm1214, %v4834
  %4877 = vst.msk [vmem:[#allocation2 + $0x4c] sm:$0xf] %vm1214, %v4836
  %4878 = vst.msk [vmem:[#allocation2 + $0x58] sm:$0xf] %vm1214, %v4838
  %4879 = vst.msk [vmem:[#allocation2 + $0x64] sm:$0xf] %vm1214, %v4840
  %4880 = vst.msk [vmem:[#allocation2 + $0x70] sm:$0xf] %vm1214, %v4842
  %4881 = vst.msk [vmem:[#allocation2 + $0x7c] sm:$0xf] %vm1214, %v4844
  %4882 = vst.msk [vmem:[#allocation2 + $0x88] sm:$0xf] %vm1214, %v4846
  %4883 = vst.msk [vmem:[#allocation2 + $0x94] sm:$0xf] %vm1214, %v4848
  %4884 = vst.msk [vmem:[#allocation2 + $0xa0] sm:$0xf] %vm1214, %v4850
  %4885 = vst.msk [vmem:[#allocation2 + $0xac] sm:$0xf] %vm1214, %v4852
  %4886 = vst.msk [vmem:[#allocation2 + $0xb8] sm:$0xf] %vm1214, %v4854
  %v4887 = vld [vmem:[%s1925] sm:$0xff]
  %v4888 = vld [vmem:[%s1925 + $0x8] sm:$0xff]
  %v4889 = vld [vmem:[%s1925 + $0x10] sm:$0xff]
  %v4890 = vld [vmem:[%s1925 + $0x18] sm:$0xff]
  %v4891 = vld [vmem:[%s1925 + $0x20] sm:$0xff]
  %v4892 = vld [vmem:[%s1925 + $0x28] sm:$0xff]
  %v4893 = vld [vmem:[%s1925 + $0x30] sm:$0xff]
  %v4894 = vld [vmem:[%s1925 + $0x38] sm:$0xff]
  %v4895 = vld [vmem:[%s1925 + $0x40] sm:$0xff]
  %v4896 = vld [vmem:[%s1925 + $0x48] sm:$0xff]
  %v4897 = vld [vmem:[%s1925 + $0x50] sm:$0xff]
  %v4898 = vld [vmem:[%s1925 + $0x58] sm:$0xff]
  %v4899 = vld [vmem:[%s1925 + $0x60] sm:$0xff]
  %v4900 = vld [vmem:[%s1925 + $0x68] sm:$0xff]
  %v4901 = vld [vmem:[%s1925 + $0x70] sm:$0xff]
  %v4902 = vld [vmem:[%s1925 + $0x78] sm:$0xff]
  %4904 = vset.pattern.permute.xlu0 0
  %4905 = vperm.xlu0 %4904, %v4887
  %v4906 = vpop.permute.xlu0 %4905
  %4909 = vset.pattern.permute.xlu0 0
  %4910 = vperm.xlu0 %4909, %v4888
  %v4911 = vpop.permute.xlu0 %4910
  %4914 = vset.pattern.permute.xlu0 0
  %4915 = vperm.xlu0 %4914, %v4889
  %v4916 = vpop.permute.xlu0 %4915
  %4919 = vset.pattern.permute.xlu0 0
  %4920 = vperm.xlu0 %4919, %v4890
  %v4921 = vpop.permute.xlu0 %4920
  %4924 = vset.pattern.permute.xlu0 0
  %4925 = vperm.xlu0 %4924, %v4891
  %v4926 = vpop.permute.xlu0 %4925
  %4929 = vset.pattern.permute.xlu0 0
  %4930 = vperm.xlu0 %4929, %v4892
  %v4931 = vpop.permute.xlu0 %4930
  %4934 = vset.pattern.permute.xlu0 0
  %4935 = vperm.xlu0 %4934, %v4893
  %v4936 = vpop.permute.xlu0 %4935
  %4939 = vset.pattern.permute.xlu0 0
  %4940 = vperm.xlu0 %4939, %v4894
  %v4941 = vpop.permute.xlu0 %4940
  %4944 = vset.pattern.permute.xlu0 0
  %4945 = vperm.xlu0 %4944, %v4895
  %v4946 = vpop.permute.xlu0 %4945
  %4949 = vset.pattern.permute.xlu0 0
  %4950 = vperm.xlu0 %4949, %v4896
  %v4951 = vpop.permute.xlu0 %4950
  %4954 = vset.pattern.permute.xlu0 0
  %4955 = vperm.xlu0 %4954, %v4897
  %v4956 = vpop.permute.xlu0 %4955
  %4959 = vset.pattern.permute.xlu0 0
  %4960 = vperm.xlu0 %4959, %v4898
  %v4961 = vpop.permute.xlu0 %4960
  %4964 = vset.pattern.permute.xlu0 0
  %4965 = vperm.xlu0 %4964, %v4899
  %v4966 = vpop.permute.xlu0 %4965
  %4969 = vset.pattern.permute.xlu0 0
  %4970 = vperm.xlu0 %4969, %v4900
  %v4971 = vpop.permute.xlu0 %4970
  %4974 = vset.pattern.permute.xlu0 0
  %4975 = vperm.xlu0 %4974, %v4901
  %v4976 = vpop.permute.xlu0 %4975
  %4979 = vset.pattern.permute.xlu0 0
  %4980 = vperm.xlu0 %4979, %v4902
  %v4981 = vpop.permute.xlu0 %4980
  %v4983 = vmul.f32 %v3845, %v4906
  %v4984 = vmul.f32 %v3844, %v4911
  %v4985 = vmul.f32 %v3843, %v4916
  %v4986 = vmul.f32 %v3842, %v4921
  %v4987 = vmul.f32 %v3841, %v4926
  %v4988 = vmul.f32 %v3840, %v4931
  %v4989 = vmul.f32 %v3839, %v4936
  %v4990 = vmul.f32 %v3838, %v4941
  %v4991 = vmul.f32 %v3837, %v4946
  %v4992 = vmul.f32 %v3836, %v4951
  %v4993 = vmul.f32 %v3835, %v4956
  %v4994 = vmul.f32 %v3834, %v4961
  %v4995 = vmul.f32 %v3833, %v4966
  %v4996 = vmul.f32 %v3832, %v4971
  %v4997 = vmul.f32 %v3831, %v4976
  %v4998 = vmul.f32 %v3846, %v4981
  %v4999 = vpack.c.bf16 %v4983, %v4983
  %v5000 = vpack.c.bf16 %v4984, %v4984
  %v5001 = vpack.c.bf16 %v4985, %v4985
  %v5002 = vpack.c.bf16 %v4986, %v4986
  %v5003 = vpack.c.bf16 %v4987, %v4987
  %v5004 = vpack.c.bf16 %v4988, %v4988
  %v5005 = vpack.c.bf16 %v4989, %v4989
  %v5006 = vpack.c.bf16 %v4990, %v4990
  %v5007 = vpack.c.bf16 %v4991, %v4991
  %v5008 = vpack.c.bf16 %v4992, %v4992
  %v5009 = vpack.c.bf16 %v4993, %v4993
  %v5010 = vpack.c.bf16 %v4994, %v4994
  %v5011 = vpack.c.bf16 %v4995, %v4995
  %v5012 = vpack.c.bf16 %v4996, %v4996
  %v5013 = vpack.c.bf16 %v4997, %v4997
  %v5014 = vpack.c.bf16 %v4998, %v4998
  %5031 = vrot.lane.b32.xlu0 %v4999, 64
  %v5032 = vpop.permute.xlu0 %5031
  %5033 = vrot.lane.b32.xlu0 %v5000, 64
  %v5034 = vpop.permute.xlu0 %5033
  %5035 = vrot.lane.b32.xlu0 %v5001, 64
  %v5036 = vpop.permute.xlu0 %5035
  %5037 = vrot.lane.b32.xlu0 %v5002, 64
  %v5038 = vpop.permute.xlu0 %5037
  %5039 = vrot.lane.b32.xlu0 %v5003, 64
  %v5040 = vpop.permute.xlu0 %5039
  %5041 = vrot.lane.b32.xlu0 %v5004, 64
  %v5042 = vpop.permute.xlu0 %5041
  %5043 = vrot.lane.b32.xlu0 %v5005, 64
  %v5044 = vpop.permute.xlu0 %5043
  %5045 = vrot.lane.b32.xlu0 %v5006, 64
  %v5046 = vpop.permute.xlu0 %5045
  %5047 = vrot.lane.b32.xlu0 %v5007, 64
  %v5048 = vpop.permute.xlu0 %5047
  %5049 = vrot.lane.b32.xlu0 %v5008, 64
  %v5050 = vpop.permute.xlu0 %5049
  %5051 = vrot.lane.b32.xlu0 %v5009, 64
  %v5052 = vpop.permute.xlu0 %5051
  %5053 = vrot.lane.b32.xlu0 %v5010, 64
  %v5054 = vpop.permute.xlu0 %5053
  %5055 = vrot.lane.b32.xlu0 %v5011, 64
  %v5056 = vpop.permute.xlu0 %5055
  %5057 = vrot.lane.b32.xlu0 %v5012, 64
  %v5058 = vpop.permute.xlu0 %5057
  %5059 = vrot.lane.b32.xlu0 %v5013, 64
  %v5060 = vpop.permute.xlu0 %5059
  %5061 = vrot.lane.b32.xlu0 %v5014, 64
  %v5062 = vpop.permute.xlu0 %5061
  %5079 = vst.msk [vmem:[#allocation2 + $0x4] sm:$0xf] %vm1457, %v5032
  %5080 = vst.msk [vmem:[#allocation2 + $0x10] sm:$0xf] %vm1457, %v5034
  %5081 = vst.msk [vmem:[#allocation2 + $0x1c] sm:$0xf] %vm1457, %v5036
  %5082 = vst.msk [vmem:[#allocation2 + $0x28] sm:$0xf] %vm1457, %v5038
  %5083 = vst.msk [vmem:[#allocation2 + $0x34] sm:$0xf] %vm1457, %v5040
  %5084 = vst.msk [vmem:[#allocation2 + $0x40] sm:$0xf] %vm1457, %v5042
  %5085 = vst.msk [vmem:[#allocation2 + $0x4c] sm:$0xf] %vm1457, %v5044
  %5086 = vst.msk [vmem:[#allocation2 + $0x58] sm:$0xf] %vm1457, %v5046
  %5087 = vst.msk [vmem:[#allocation2 + $0x64] sm:$0xf] %vm1457, %v5048
  %5088 = vst.msk [vmem:[#allocation2 + $0x70] sm:$0xf] %vm1457, %v5050
  %5089 = vst.msk [vmem:[#allocation2 + $0x7c] sm:$0xf] %vm1457, %v5052
  %5090 = vst.msk [vmem:[#allocation2 + $0x88] sm:$0xf] %vm1457, %v5054
  %5091 = vst.msk [vmem:[#allocation2 + $0x94] sm:$0xf] %vm1457, %v5056
  %5092 = vst.msk [vmem:[#allocation2 + $0xa0] sm:$0xf] %vm1457, %v5058
  %5093 = vst.msk [vmem:[#allocation2 + $0xac] sm:$0xf] %vm1457, %v5060
  %5094 = vst.msk [vmem:[#allocation2 + $0xb8] sm:$0xf] %vm1457, %v5062
  %v5095 = vld [vmem:[%s2134] sm:$0xff]
  %v5096 = vld [vmem:[%s2134 + $0x8] sm:$0xff]
  %v5097 = vld [vmem:[%s2134 + $0x10] sm:$0xff]
  %v5098 = vld [vmem:[%s2134 + $0x18] sm:$0xff]
  %v5099 = vld [vmem:[%s2134 + $0x20] sm:$0xff]
  %v5100 = vld [vmem:[%s2134 + $0x28] sm:$0xff]
  %v5101 = vld [vmem:[%s2134 + $0x30] sm:$0xff]
  %v5102 = vld [vmem:[%s2134 + $0x38] sm:$0xff]
  %v5103 = vld [vmem:[%s2134 + $0x40] sm:$0xff]
  %v5104 = vld [vmem:[%s2134 + $0x48] sm:$0xff]
  %v5105 = vld [vmem:[%s2134 + $0x50] sm:$0xff]
  %v5106 = vld [vmem:[%s2134 + $0x58] sm:$0xff]
  %v5107 = vld [vmem:[%s2134 + $0x60] sm:$0xff]
  %v5108 = vld [vmem:[%s2134 + $0x68] sm:$0xff]
  %v5109 = vld [vmem:[%s2134 + $0x70] sm:$0xff]
  %v5110 = vld [vmem:[%s2134 + $0x78] sm:$0xff]
  %5112 = vset.pattern.permute.xlu0 0
  %5113 = vperm.xlu0 %5112, %v5095
  %v5114 = vpop.permute.xlu0 %5113
  %5117 = vset.pattern.permute.xlu0 0
  %5118 = vperm.xlu0 %5117, %v5096
  %v5119 = vpop.permute.xlu0 %5118
  %5122 = vset.pattern.permute.xlu0 0
  %5123 = vperm.xlu0 %5122, %v5097
  %v5124 = vpop.permute.xlu0 %5123
  %5127 = vset.pattern.permute.xlu0 0
  %5128 = vperm.xlu0 %5127, %v5098
  %v5129 = vpop.permute.xlu0 %5128
  %5132 = vset.pattern.permute.xlu0 0
  %5133 = vperm.xlu0 %5132, %v5099
  %v5134 = vpop.permute.xlu0 %5133
  %5137 = vset.pattern.permute.xlu0 0
  %5138 = vperm.xlu0 %5137, %v5100
  %v5139 = vpop.permute.xlu0 %5138
  %5142 = vset.pattern.permute.xlu0 0
  %5143 = vperm.xlu0 %5142, %v5101
  %v5144 = vpop.permute.xlu0 %5143
  %5147 = vset.pattern.permute.xlu0 0
  %5148 = vperm.xlu0 %5147, %v5102
  %v5149 = vpop.permute.xlu0 %5148
  %5152 = vset.pattern.permute.xlu0 0
  %5153 = vperm.xlu0 %5152, %v5103
  %v5154 = vpop.permute.xlu0 %5153
  %5157 = vset.pattern.permute.xlu0 0
  %5158 = vperm.xlu0 %5157, %v5104
  %v5159 = vpop.permute.xlu0 %5158
  %5162 = vset.pattern.permute.xlu0 0
  %5163 = vperm.xlu0 %5162, %v5105
  %v5164 = vpop.permute.xlu0 %5163
  %5167 = vset.pattern.permute.xlu0 0
  %5168 = vperm.xlu0 %5167, %v5106
  %v5169 = vpop.permute.xlu0 %5168
  %5172 = vset.pattern.permute.xlu0 0
  %5173 = vperm.xlu0 %5172, %v5107
  %v5174 = vpop.permute.xlu0 %5173
  %5177 = vset.pattern.permute.xlu0 0
  %5178 = vperm.xlu0 %5177, %v5108
  %v5179 = vpop.permute.xlu0 %5178
  %5182 = vset.pattern.permute.xlu0 0
  %5183 = vperm.xlu0 %5182, %v5109
  %v5184 = vpop.permute.xlu0 %5183
  %5187 = vset.pattern.permute.xlu0 0
  %5188 = vperm.xlu0 %5187, %v5110
  %v5189 = vpop.permute.xlu0 %5188
  %v5191 = vmul.f32 %v3799, %v5114
  %v5192 = vmul.f32 %v3800, %v5119
  %v5193 = vmul.f32 %v3801, %v5124
  %v5194 = vmul.f32 %v3802, %v5129
  %v5195 = vmul.f32 %v3803, %v5134
  %v5196 = vmul.f32 %v3804, %v5139
  %v5197 = vmul.f32 %v3805, %v5144
  %v5198 = vmul.f32 %v3806, %v5149
  %v5199 = vmul.f32 %v3807, %v5154
  %v5200 = vmul.f32 %v3808, %v5159
  %v5201 = vmul.f32 %v3809, %v5164
  %v5202 = vmul.f32 %v3810, %v5169
  %v5203 = vmul.f32 %v3811, %v5174
  %v5204 = vmul.f32 %v3812, %v5179
  %v5205 = vmul.f32 %v3813, %v5184
  %v5206 = vmul.f32 %v3798, %v5189
  %v5207 = vpack.c.bf16 %v5191, %v5191
  %v5208 = vpack.c.bf16 %v5192, %v5192
  %v5209 = vpack.c.bf16 %v5193, %v5193
  %v5210 = vpack.c.bf16 %v5194, %v5194
  %v5211 = vpack.c.bf16 %v5195, %v5195
  %v5212 = vpack.c.bf16 %v5196, %v5196
  %v5213 = vpack.c.bf16 %v5197, %v5197
  %v5214 = vpack.c.bf16 %v5198, %v5198
  %v5215 = vpack.c.bf16 %v5199, %v5199
  %v5216 = vpack.c.bf16 %v5200, %v5200
  %v5217 = vpack.c.bf16 %v5201, %v5201
  %v5218 = vpack.c.bf16 %v5202, %v5202
  %v5219 = vpack.c.bf16 %v5203, %v5203
  %v5220 = vpack.c.bf16 %v5204, %v5204
  %v5221 = vpack.c.bf16 %v5205, %v5205
  %v5222 = vpack.c.bf16 %v5206, %v5206
  %5239 = vrot.lane.b32.xlu0 %v5207, 96
  %v5240 = vpop.permute.xlu0 %5239
  %5241 = vrot.lane.b32.xlu0 %v5208, 96
  %v5242 = vpop.permute.xlu0 %5241
  %5243 = vrot.lane.b32.xlu0 %v5209, 96
  %v5244 = vpop.permute.xlu0 %5243
  %5245 = vrot.lane.b32.xlu0 %v5210, 96
  %v5246 = vpop.permute.xlu0 %5245
  %5247 = vrot.lane.b32.xlu0 %v5211, 96
  %v5248 = vpop.permute.xlu0 %5247
  %5249 = vrot.lane.b32.xlu0 %v5212, 96
  %v5250 = vpop.permute.xlu0 %5249
  %5251 = vrot.lane.b32.xlu0 %v5213, 96
  %v5252 = vpop.permute.xlu0 %5251
  %5253 = vrot.lane.b32.xlu0 %v5214, 96
  %v5254 = vpop.permute.xlu0 %5253
  %5255 = vrot.lane.b32.xlu0 %v5215, 96
  %v5256 = vpop.permute.xlu0 %5255
  %5257 = vrot.lane.b32.xlu0 %v5216, 96
  %v5258 = vpop.permute.xlu0 %5257
  %5259 = vrot.lane.b32.xlu0 %v5217, 96
  %v5260 = vpop.permute.xlu0 %5259
  %5261 = vrot.lane.b32.xlu0 %v5218, 96
  %v5262 = vpop.permute.xlu0 %5261
  %5263 = vrot.lane.b32.xlu0 %v5219, 96
  %v5264 = vpop.permute.xlu0 %5263
  %5265 = vrot.lane.b32.xlu0 %v5220, 96
  %v5266 = vpop.permute.xlu0 %5265
  %5267 = vrot.lane.b32.xlu0 %v5221, 96
  %v5268 = vpop.permute.xlu0 %5267
  %5269 = vrot.lane.b32.xlu0 %v5222, 96
  %v5270 = vpop.permute.xlu0 %5269
  %5287 = vst.msk [vmem:[#allocation2 + $0x4] sm:$0xf] %vm1667, %v5240
  %5288 = vst.msk [vmem:[#allocation2 + $0x10] sm:$0xf] %vm1667, %v5242
  %5289 = vst.msk [vmem:[#allocation2 + $0x1c] sm:$0xf] %vm1667, %v5244
  %5290 = vst.msk [vmem:[#allocation2 + $0x28] sm:$0xf] %vm1667, %v5246
  %5291 = vst.msk [vmem:[#allocation2 + $0x34] sm:$0xf] %vm1667, %v5248
  %5292 = vst.msk [vmem:[#allocation2 + $0x40] sm:$0xf] %vm1667, %v5250
  %5293 = vst.msk [vmem:[#allocation2 + $0x4c] sm:$0xf] %vm1667, %v5252
  %5294 = vst.msk [vmem:[#allocation2 + $0x58] sm:$0xf] %vm1667, %v5254
  %5295 = vst.msk [vmem:[#allocation2 + $0x64] sm:$0xf] %vm1667, %v5256
  %5296 = vst.msk [vmem:[#allocation2 + $0x70] sm:$0xf] %vm1667, %v5258
  %5297 = vst.msk [vmem:[#allocation2 + $0x7c] sm:$0xf] %vm1667, %v5260
  %5298 = vst.msk [vmem:[#allocation2 + $0x88] sm:$0xf] %vm1667, %v5262
  %5299 = vst.msk [vmem:[#allocation2 + $0x94] sm:$0xf] %vm1667, %v5264
  %5300 = vst.msk [vmem:[#allocation2 + $0xa0] sm:$0xf] %vm1667, %v5266
  %5301 = vst.msk [vmem:[#allocation2 + $0xac] sm:$0xf] %vm1667, %v5268
  %5302 = vst.msk [vmem:[#allocation2 + $0xb8] sm:$0xf] %vm1667, %v5270
  %v5303 = vld [vmem:[%s2343] sm:$0xff]
  %v5304 = vld [vmem:[%s2343 + $0x8] sm:$0xff]
  %v5305 = vld [vmem:[%s2343 + $0x10] sm:$0xff]
  %v5306 = vld [vmem:[%s2343 + $0x18] sm:$0xff]
  %v5307 = vld [vmem:[%s2343 + $0x20] sm:$0xff]
  %v5308 = vld [vmem:[%s2343 + $0x28] sm:$0xff]
  %v5309 = vld [vmem:[%s2343 + $0x30] sm:$0xff]
  %v5310 = vld [vmem:[%s2343 + $0x38] sm:$0xff]
  %v5311 = vld [vmem:[%s2343 + $0x40] sm:$0xff]
  %v5312 = vld [vmem:[%s2343 + $0x48] sm:$0xff]
  %v5313 = vld [vmem:[%s2343 + $0x50] sm:$0xff]
  %v5314 = vld [vmem:[%s2343 + $0x58] sm:$0xff]
  %v5315 = vld [vmem:[%s2343 + $0x60] sm:$0xff]
  %v5316 = vld [vmem:[%s2343 + $0x68] sm:$0xff]
  %v5317 = vld [vmem:[%s2343 + $0x70] sm:$0xff]
  %v5318 = vld [vmem:[%s2343 + $0x78] sm:$0xff]
  %5320 = vset.pattern.permute.xlu0 0
  %5321 = vperm.xlu0 %5320, %v5303
  %v5322 = vpop.permute.xlu0 %5321
  %5325 = vset.pattern.permute.xlu0 0
  %5326 = vperm.xlu0 %5325, %v5304
  %v5327 = vpop.permute.xlu0 %5326
  %5330 = vset.pattern.permute.xlu0 0
  %5331 = vperm.xlu0 %5330, %v5305
  %v5332 = vpop.permute.xlu0 %5331
  %5335 = vset.pattern.permute.xlu0 0
  %5336 = vperm.xlu0 %5335, %v5306
  %v5337 = vpop.permute.xlu0 %5336
  %5340 = vset.pattern.permute.xlu0 0
  %5341 = vperm.xlu0 %5340, %v5307
  %v5342 = vpop.permute.xlu0 %5341
  %5345 = vset.pattern.permute.xlu0 0
  %5346 = vperm.xlu0 %5345, %v5308
  %v5347 = vpop.permute.xlu0 %5346
  %5350 = vset.pattern.permute.xlu0 0
  %5351 = vperm.xlu0 %5350, %v5309
  %v5352 = vpop.permute.xlu0 %5351
  %5355 = vset.pattern.permute.xlu0 0
  %5356 = vperm.xlu0 %5355, %v5310
  %v5357 = vpop.permute.xlu0 %5356
  %5360 = vset.pattern.permute.xlu0 0
  %5361 = vperm.xlu0 %5360, %v5311
  %v5362 = vpop.permute.xlu0 %5361
  %5365 = vset.pattern.permute.xlu0 0
  %5366 = vperm.xlu0 %5365, %v5312
  %v5367 = vpop.permute.xlu0 %5366
  %5370 = vset.pattern.permute.xlu0 0
  %5371 = vperm.xlu0 %5370, %v5313
  %v5372 = vpop.permute.xlu0 %5371
  %5375 = vset.pattern.permute.xlu0 0
  %5376 = vperm.xlu0 %5375, %v5314
  %v5377 = vpop.permute.xlu0 %5376
  %5380 = vset.pattern.permute.xlu0 0
  %5381 = vperm.xlu0 %5380, %v5315
  %v5382 = vpop.permute.xlu0 %5381
  %5385 = vset.pattern.permute.xlu0 0
  %5386 = vperm.xlu0 %5385, %v5316
  %v5387 = vpop.permute.xlu0 %5386
  %5390 = vset.pattern.permute.xlu0 0
  %5391 = vperm.xlu0 %5390, %v5317
  %v5392 = vpop.permute.xlu0 %5391
  %5395 = vset.pattern.permute.xlu0 0
  %5396 = vperm.xlu0 %5395, %v5318
  %v5397 = vpop.permute.xlu0 %5396
  %v5399 = vmul.f32 %v4228, %v5322
  %v5400 = vmul.f32 %v4227, %v5327
  %v5401 = vmul.f32 %v4226, %v5332
  %v5402 = vmul.f32 %v4225, %v5337
  %v5403 = vmul.f32 %v4224, %v5342
  %v5404 = vmul.f32 %v4223, %v5347
  %v5405 = vmul.f32 %v4222, %v5352
  %v5406 = vmul.f32 %v4221, %v5357
  %v5407 = vmul.f32 %v4220, %v5362
  %v5408 = vmul.f32 %v4219, %v5367
  %v5409 = vmul.f32 %v4218, %v5372
  %v5410 = vmul.f32 %v4217, %v5377
  %v5411 = vmul.f32 %v4216, %v5382
  %v5412 = vmul.f32 %v4215, %v5387
  %v5413 = vmul.f32 %v4230, %v5392
  %v5414 = vmul.f32 %v4229, %v5397
  %v5415 = vpack.c.bf16 %v5399, %v5399
  %v5416 = vpack.c.bf16 %v5400, %v5400
  %v5417 = vpack.c.bf16 %v5401, %v5401
  %v5418 = vpack.c.bf16 %v5402, %v5402
  %v5419 = vpack.c.bf16 %v5403, %v5403
  %v5420 = vpack.c.bf16 %v5404, %v5404
  %v5421 = vpack.c.bf16 %v5405, %v5405
  %v5422 = vpack.c.bf16 %v5406, %v5406
  %v5423 = vpack.c.bf16 %v5407, %v5407
  %v5424 = vpack.c.bf16 %v5408, %v5408
  %v5425 = vpack.c.bf16 %v5409, %v5409
  %v5426 = vpack.c.bf16 %v5410, %v5410
  %v5427 = vpack.c.bf16 %v5411, %v5411
  %v5428 = vpack.c.bf16 %v5412, %v5412
  %v5429 = vpack.c.bf16 %v5413, %v5413
  %v5430 = vpack.c.bf16 %v5414, %v5414
  %5431 = vst.msk [vmem:[#allocation2 + $0x8] sm:$0xf] %vm1004, %v5415
  %5432 = vst.msk [vmem:[#allocation2 + $0x14] sm:$0xf] %vm1004, %v5416
  %5433 = vst.msk [vmem:[#allocation2 + $0x20] sm:$0xf] %vm1004, %v5417
  %5434 = vst.msk [vmem:[#allocation2 + $0x2c] sm:$0xf] %vm1004, %v5418
  %5435 = vst.msk [vmem:[#allocation2 + $0x38] sm:$0xf] %vm1004, %v5419
  %5436 = vst.msk [vmem:[#allocation2 + $0x44] sm:$0xf] %vm1004, %v5420
  %5437 = vst.msk [vmem:[#allocation2 + $0x50] sm:$0xf] %vm1004, %v5421
  %5438 = vst.msk [vmem:[#allocation2 + $0x5c] sm:$0xf] %vm1004, %v5422
  %5439 = vst.msk [vmem:[#allocation2 + $0x68] sm:$0xf] %vm1004, %v5423
  %5440 = vst.msk [vmem:[#allocation2 + $0x74] sm:$0xf] %vm1004, %v5424
  %5441 = vst.msk [vmem:[#allocation2 + $0x80] sm:$0xf] %vm1004, %v5425
  %5442 = vst.msk [vmem:[#allocation2 + $0x8c] sm:$0xf] %vm1004, %v5426
  %5443 = vst.msk [vmem:[#allocation2 + $0x98] sm:$0xf] %vm1004, %v5427
  %5444 = vst.msk [vmem:[#allocation2 + $0xa4] sm:$0xf] %vm1004, %v5428
  %5445 = vst.msk [vmem:[#allocation2 + $0xb0] sm:$0xf] %vm1004, %v5429
  %5446 = vst.msk [vmem:[#allocation2 + $0xbc] sm:$0xf] %vm1004, %v5430
  %v5447 = vld [vmem:[#allocation2] sm:$0xff]
  %v5448 = vld [vmem:[#allocation2 + $0x8] sm:$0xf]
  %v5449 = vld [vmem:[#allocation2 + $0xc] sm:$0xff]
  %v5450 = vld [vmem:[#allocation2 + $0x14] sm:$0xf]
  %v5451 = vld [vmem:[#allocation2 + $0x18] sm:$0xff]
  %v5452 = vld [vmem:[#allocation2 + $0x20] sm:$0xf]
  %v5453 = vld [vmem:[#allocation2 + $0x24] sm:$0xff]
  %v5454 = vld [vmem:[#allocation2 + $0x2c] sm:$0xf]
  %v5455 = vld [vmem:[#allocation2 + $0x30] sm:$0xff]
  %v5456 = vld [vmem:[#allocation2 + $0x38] sm:$0xf]
  %v5457 = vld [vmem:[#allocation2 + $0x3c] sm:$0xff]
  %v5458 = vld [vmem:[#allocation2 + $0x44] sm:$0xf]
  %v5459 = vld [vmem:[#allocation2 + $0x48] sm:$0xff]
  %v5460 = vld [vmem:[#allocation2 + $0x50] sm:$0xf]
  %v5461 = vld [vmem:[#allocation2 + $0x54] sm:$0xff]
  %v5462 = vld [vmem:[#allocation2 + $0x5c] sm:$0xf]
  %v5463 = vld [vmem:[#allocation2 + $0x60] sm:$0xff]
  %v5464 = vld [vmem:[#allocation2 + $0x68] sm:$0xf]
  %v5465 = vld [vmem:[#allocation2 + $0x6c] sm:$0xff]
  %v5466 = vld [vmem:[#allocation2 + $0x74] sm:$0xf]
  %v5467 = vld [vmem:[#allocation2 + $0x78] sm:$0xff]
  %v5468 = vld [vmem:[#allocation2 + $0x80] sm:$0xf]
  %v5469 = vld [vmem:[#allocation2 + $0x84] sm:$0xff]
  %v5470 = vld [vmem:[#allocation2 + $0x8c] sm:$0xf]
  %v5471 = vld [vmem:[#allocation2 + $0x90] sm:$0xff]
  %v5472 = vld [vmem:[#allocation2 + $0x98] sm:$0xf]
  %v5473 = vld [vmem:[#allocation2 + $0x9c] sm:$0xff]
  %v5474 = vld [vmem:[#allocation2 + $0xa4] sm:$0xf]
  %v5475 = vld [vmem:[#allocation2 + $0xa8] sm:$0xff]
  %v5476 = vld [vmem:[#allocation2 + $0xb0] sm:$0xf]
  %v5477 = vld [vmem:[#allocation2 + $0xb4] sm:$0xff]
  %v5478 = vld [vmem:[#allocation2 + $0xbc] sm:$0xf]
  %v5479 = vld [vmem:[%s10] sm:$0xf]
  %v5480 = vld [vmem:[%s10 + $0x4] sm:$0xf]
  %v5481 = vld [vmem:[%s10 + $0x8] sm:$0xf]
  %v5482 = vld [vmem:[%s10 + $0xc] sm:$0xf]
  %v5483 = vld [vmem:[%s10 + $0x10] sm:$0xf]
  %v5484 = vld [vmem:[%s10 + $0x14] sm:$0xf]
  %v5485 = vld [vmem:[%s10 + $0x18] sm:$0xf]
  %v5486 = vld [vmem:[%s10 + $0x1c] sm:$0xf]
  %v5487 = vld [vmem:[%s10 + $0x20] sm:$0xf]
  %v5488 = vld [vmem:[%s10 + $0x24] sm:$0xf]
  %v5489 = vld [vmem:[%s10 + $0x28] sm:$0xf]
  %v5490 = vld [vmem:[%s10 + $0x2c] sm:$0xf]
  %v5491 = vld [vmem:[%s10 + $0x30] sm:$0xf]
  %v5492 = vld [vmem:[%s10 + $0x34] sm:$0xf]
  %v5493 = vld [vmem:[%s10 + $0x38] sm:$0xf]
  %v5494 = vld [vmem:[%s10 + $0x3c] sm:$0xf]
  %v5495 = vld [vmem:[%s10 + $0x40] sm:$0xf]
  %v5496 = vld [vmem:[%s10 + $0x44] sm:$0xf]
  %v5497 = vld [vmem:[%s10 + $0x48] sm:$0xf]
  %v5498 = vld [vmem:[%s10 + $0x4c] sm:$0xf]
  %v5499 = vld [vmem:[%s10 + $0x50] sm:$0xf]
  %v5500 = vld [vmem:[%s10 + $0x54] sm:$0xf]
  %v5501 = vld [vmem:[%s10 + $0x58] sm:$0xf]
  %v5502 = vld [vmem:[%s10 + $0x5c] sm:$0xf]
  %v5503 = vld [vmem:[%s10 + $0x60] sm:$0xf]
  %v5504 = vld [vmem:[%s10 + $0x64] sm:$0xf]
  %v5505 = vld [vmem:[%s10 + $0x68] sm:$0xf]
  %v5506 = vld [vmem:[%s10 + $0x6c] sm:$0xf]
  %v5507 = vld [vmem:[%s10 + $0x70] sm:$0xf]
  %v5508 = vld [vmem:[%s10 + $0x74] sm:$0xf]
  %v5509 = vld [vmem:[%s10 + $0x78] sm:$0xf]
  %v5510 = vld [vmem:[%s10 + $0x7c] sm:$0xf]
  %v5511 = vld [vmem:[%s10 + $0x80] sm:$0xf]
  %v5512 = vld [vmem:[%s10 + $0x84] sm:$0xf]
  %v5513 = vld [vmem:[%s10 + $0x88] sm:$0xf]
  %v5514 = vld [vmem:[%s10 + $0x8c] sm:$0xf]
  %v5516 = vperm.slane %v3814, 0
  %v5550 = vunpack.c.l.b16 %v5447
  %v5551 = vunpack.c.h.b16 %v5447
  %v5552 = vunpack.c.l.b16 %v5448
  %v5553 = vunpack.c.l.b16 %v5449
  %v5554 = vunpack.c.h.b16 %v5449
  %v5555 = vunpack.c.l.b16 %v5450
  %v5556 = vunpack.c.l.b16 %v5451
  %v5557 = vunpack.c.h.b16 %v5451
  %v5558 = vunpack.c.l.b16 %v5452
  %v5559 = vunpack.c.l.b16 %v5453
  %v5560 = vunpack.c.h.b16 %v5453
  %v5561 = vunpack.c.l.b16 %v5454
  %v5562 = vunpack.c.l.b16 %v5455
  %v5563 = vunpack.c.h.b16 %v5455
  %v5564 = vunpack.c.l.b16 %v5456
  %v5565 = vunpack.c.l.b16 %v5457
  %v5566 = vunpack.c.h.b16 %v5457
  %v5567 = vunpack.c.l.b16 %v5458
  %v5568 = vunpack.c.l.b16 %v5459
  %v5569 = vunpack.c.h.b16 %v5459
  %v5570 = vunpack.c.l.b16 %v5460
  %v5571 = vunpack.c.l.b16 %v5461
  %v5572 = vunpack.c.h.b16 %v5461
  %v5573 = vunpack.c.l.b16 %v5462
  %v5574 = vunpack.c.l.b16 %v5463
  %v5575 = vunpack.c.h.b16 %v5463
  %v5576 = vunpack.c.l.b16 %v5464
  %v5577 = vunpack.c.l.b16 %v5465
  %v5578 = vunpack.c.h.b16 %v5465
  %v5579 = vunpack.c.l.b16 %v5466
  %v5580 = vunpack.c.l.b16 %v5467
  %v5581 = vunpack.c.h.b16 %v5467
  %v5582 = vunpack.c.l.b16 %v5468
  %v5583 = vunpack.c.l.b16 %v5469
  %v5584 = vunpack.c.h.b16 %v5469
  %v5585 = vunpack.c.l.b16 %v5470
  %v5586 = vunpack.c.l.b16 %v5471
  %v5587 = vunpack.c.h.b16 %v5471
  %v5588 = vunpack.c.l.b16 %v5472
  %v5589 = vunpack.c.l.b16 %v5473
  %v5590 = vunpack.c.h.b16 %v5473
  %v5591 = vunpack.c.l.b16 %v5474
  %v5592 = vunpack.c.l.b16 %v5475
  %v5593 = vunpack.c.h.b16 %v5475
  %v5594 = vunpack.c.l.b16 %v5476
  %v5595 = vunpack.c.l.b16 %v5477
  %v5596 = vunpack.c.h.b16 %v5477
  %v5597 = vunpack.c.l.b16 %v5478
  %v5598 = vpack.c.b16 %v5553, %v5550
  %v5599 = vpack.c.b16 %v5554, %v5551
  %v5600 = vpack.c.b16 %v5555, %v5552
  %v5601 = vpack.c.b16 %v5559, %v5556
  %v5602 = vpack.c.b16 %v5560, %v5557
  %v5603 = vpack.c.b16 %v5561, %v5558
  %v5604 = vpack.c.b16 %v5565, %v5562
  %v5605 = vpack.c.b16 %v5566, %v5563
  %v5606 = vpack.c.b16 %v5567, %v5564
  %v5607 = vpack.c.b16 %v5571, %v5568
  %v5608 = vpack.c.b16 %v5572, %v5569
  %v5609 = vpack.c.b16 %v5573, %v5570
  %v5610 = vpack.c.b16 %v5577, %v5574
  %v5611 = vpack.c.b16 %v5578, %v5575
  %v5612 = vpack.c.b16 %v5579, %v5576
  %v5613 = vpack.c.b16 %v5583, %v5580
  %v5614 = vpack.c.b16 %v5584, %v5581
  %v5615 = vpack.c.b16 %v5585, %v5582
  %v5616 = vpack.c.b16 %v5589, %v5586
  %v5617 = vpack.c.b16 %v5590, %v5587
  %v5618 = vpack.c.b16 %v5591, %v5588
  %v5619 = vpack.c.b16 %v5595, %v5592
  %v5620 = vpack.c.b16 %v5596, %v5593
  %v5621 = vpack.c.b16 %v5597, %v5594
  %v5674 = vunpack.c.l.b16 %v5479
  %v5675 = vunpack.c.l.b16 %v5480
  %v5676 = vunpack.c.l.b16 %v5481
  %v5677 = vunpack.c.l.b16 %v5482
  %v5678 = vunpack.c.l.b16 %v5483
  %v5679 = vunpack.c.l.b16 %v5484
  %v5680 = vunpack.c.l.b16 %v5485
  %v5681 = vunpack.c.l.b16 %v5486
  %v5682 = vunpack.c.l.b16 %v5487
  %v5683 = vunpack.c.l.b16 %v5488
  %v5684 = vunpack.c.l.b16 %v5489
  %v5685 = vunpack.c.l.b16 %v5490
  %v5686 = vunpack.c.l.b16 %v5491
  %v5687 = vunpack.c.l.b16 %v5492
  %v5688 = vunpack.c.l.b16 %v5493
  %v5689 = vunpack.c.l.b16 %v5494
  %v5690 = vunpack.c.l.b16 %v5495
  %v5691 = vunpack.c.l.b16 %v5496
  %v5692 = vunpack.c.l.b16 %v5497
  %v5693 = vunpack.c.l.b16 %v5498
  %v5694 = vunpack.c.l.b16 %v5499
  %v5695 = vunpack.c.l.b16 %v5500
  %v5696 = vunpack.c.l.b16 %v5501
  %v5697 = vunpack.c.l.b16 %v5502
  %v5698 = vunpack.c.l.b16 %v5503
  %v5699 = vunpack.c.l.b16 %v5504
  %v5700 = vunpack.c.l.b16 %v5505
  %v5701 = vunpack.c.l.b16 %v5506
  %v5702 = vunpack.c.l.b16 %v5507
  %v5703 = vunpack.c.l.b16 %v5508
  %v5704 = vunpack.c.l.b16 %v5509
  %v5705 = vunpack.c.l.b16 %v5510
  %v5706 = vunpack.c.l.b16 %v5511
  %v5707 = vunpack.c.l.b16 %v5512
  %v5708 = vunpack.c.l.b16 %v5513
  %v5709 = vunpack.c.l.b16 %v5514
  %v5710 = vpack.c.b16 %v5675, %v5674
  %v5711 = vpack.c.b16 %v5677, %v5676
  %v5712 = vpack.c.b16 %v5679, %v5678
  %v5713 = vpack.c.b16 %v5681, %v5680
  %v5714 = vpack.c.b16 %v5683, %v5682
  %v5715 = vpack.c.b16 %v5685, %v5684
  %v5716 = vpack.c.b16 %v5687, %v5686
  %v5717 = vpack.c.b16 %v5689, %v5688
  %v5718 = vpack.c.b16 %v5691, %v5690
  %v5719 = vpack.c.b16 %v5693, %v5692
  %v5720 = vpack.c.b16 %v5695, %v5694
  %v5721 = vpack.c.b16 %v5697, %v5696
  %v5722 = vpack.c.b16 %v5699, %v5698
  %v5723 = vpack.c.b16 %v5701, %v5700
  %v5724 = vpack.c.b16 %v5703, %v5702
  %v5725 = vpack.c.b16 %v5705, %v5704
  %v5726 = vpack.c.b16 %v5707, %v5706
  %v5727 = vpack.c.b16 %v5709, %v5708
  %v5747 = vsel %vm156, %v5600, 0
  %v5750 = vsel %vm156, %v5603, 0
  %v5753 = vsel %vm156, %v5606, 0
  %v5756 = vsel %vm156, %v5609, 0
  %v5759 = vsel %vm156, %v5612, 0
  %v5762 = vsel %vm156, %v5615, 0
  %v5765 = vsel %vm156, %v5618, 0
  %v5768 = vsel %vm156, %v5621, 0
  %5770 = vmatpush.bf16.msra.mxu0 %v5717
  %5771 = vmatpush.bf16.msra.mxu0 %v5716
  %5772 = vmatpush.bf16.msra.mxu0 %v5715
  %5773 = vmatpush.bf16.msra.mxu0 %v5714
  %5774 = vmatpush.bf16.msra.mxu0 %v5713
  %5775 = vmatpush.bf16.msra.mxu0 %v5712
  %5776 = vmatpush.bf16.msra.mxu0 %v5711
  %5777 = vmatpush.bf16.msra.mxu0 %v5710
  %5778 = vmatmul.bf16.gmra.mxu0 %v5598
  %v5779 = vpop.f32.mrf.mxu0
  %v5780 = vadd.f32 %v5516, %v5779
  %v5781 = vpop.f32.mrf.mxu0
  %v5782 = vadd.f32 %v5516, %v5781
  %5783 = vmatmul.bf16.gmra.mxu0 %v5601
  %v5784 = vpop.f32.mrf.mxu0
  %v5785 = vadd.f32 %v5516, %v5784
  %v5786 = vpop.f32.mrf.mxu0
  %v5787 = vadd.f32 %v5516, %v5786
  %5788 = vmatmul.bf16.gmra.mxu0 %v5604
  %v5789 = vpop.f32.mrf.mxu0
  %v5790 = vadd.f32 %v5516, %v5789
  %v5791 = vpop.f32.mrf.mxu0
  %v5792 = vadd.f32 %v5516, %v5791
  %5793 = vmatmul.bf16.gmra.mxu0 %v5607
  %v5794 = vpop.f32.mrf.mxu0
  %v5795 = vadd.f32 %v5516, %v5794
  %v5796 = vpop.f32.mrf.mxu0
  %v5797 = vadd.f32 %v5516, %v5796
  %5798 = vmatmul.bf16.gmra.mxu0 %v5610
  %v5799 = vpop.f32.mrf.mxu0
  %v5800 = vadd.f32 %v5516, %v5799
  %v5801 = vpop.f32.mrf.mxu0
  %v5802 = vadd.f32 %v5516, %v5801
  %5803 = vmatmul.bf16.gmra.mxu0 %v5613
  %v5804 = vpop.f32.mrf.mxu0
  %v5805 = vadd.f32 %v5516, %v5804
  %v5806 = vpop.f32.mrf.mxu0
  %v5807 = vadd.f32 %v5516, %v5806
  %5808 = vmatmul.bf16.gmra.mxu0 %v5616
  %v5809 = vpop.f32.mrf.mxu0
  %v5810 = vadd.f32 %v5516, %v5809
  %v5811 = vpop.f32.mrf.mxu0
  %v5812 = vadd.f32 %v5516, %v5811
  %5813 = vmatmul.bf16.gmra.mxu0 %v5619
  %v5814 = vpop.f32.mrf.mxu0
  %v5815 = vadd.f32 %v5516, %v5814
  %v5816 = vpop.f32.mrf.mxu0
  %v5817 = vadd.f32 %v5516, %v5816
  %5818 = vdwg.mxu0
  %5819 = vmatpush.bf16.msra.mxu0 %v5725
  %5820 = vmatpush.bf16.msra.mxu0 %v5724
  %5821 = vmatpush.bf16.msra.mxu0 %v5723
  %5822 = vmatpush.bf16.msra.mxu0 %v5722
  %5823 = vmatpush.bf16.msra.mxu0 %v5721
  %5824 = vmatpush.bf16.msra.mxu0 %v5720
  %5825 = vmatpush.bf16.msra.mxu0 %v5719
  %5826 = vmatpush.bf16.msra.mxu0 %v5718
  %5827 = vmatmul.bf16.gmra.mxu0 %v5599
  %v5828 = vpop.f32.mrf.mxu0
  %v5829 = vadd.f32 %v5780, %v5828
  %v5830 = vpop.f32.mrf.mxu0
  %v5831 = vadd.f32 %v5782, %v5830
  %5832 = vmatmul.bf16.gmra.mxu0 %v5602
  %v5833 = vpop.f32.mrf.mxu0
  %v5834 = vadd.f32 %v5785, %v5833
  %v5835 = vpop.f32.mrf.mxu0
  %v5836 = vadd.f32 %v5787, %v5835
  %5837 = vmatmul.bf16.gmra.mxu0 %v5605
  %v5838 = vpop.f32.mrf.mxu0
  %v5839 = vadd.f32 %v5790, %v5838
  %v5840 = vpop.f32.mrf.mxu0
  %v5841 = vadd.f32 %v5792, %v5840
  %5842 = vmatmul.bf16.gmra.mxu0 %v5608
  %v5843 = vpop.f32.mrf.mxu0
  %v5844 = vadd.f32 %v5795, %v5843
  %v5845 = vpop.f32.mrf.mxu0
  %v5846 = vadd.f32 %v5797, %v5845
  %5847 = vmatmul.bf16.gmra.mxu0 %v5611
  %v5848 = vpop.f32.mrf.mxu0
  %v5849 = vadd.f32 %v5800, %v5848
  %v5850 = vpop.f32.mrf.mxu0
  %v5851 = vadd.f32 %v5802, %v5850
  %5852 = vmatmul.bf16.gmra.mxu0 %v5614
  %v5853 = vpop.f32.mrf.mxu0
  %v5854 = vadd.f32 %v5805, %v5853
  %v5855 = vpop.f32.mrf.mxu0
  %v5856 = vadd.f32 %v5807, %v5855
  %5857 = vmatmul.bf16.gmra.mxu0 %v5617
  %v5858 = vpop.f32.mrf.mxu0
  %v5859 = vadd.f32 %v5810, %v5858
  %v5860 = vpop.f32.mrf.mxu0
  %v5861 = vadd.f32 %v5812, %v5860
  %5862 = vmatmul.bf16.gmra.mxu0 %v5620
  %v5863 = vpop.f32.mrf.mxu0
  %v5864 = vadd.f32 %v5815, %v5863
  %v5865 = vpop.f32.mrf.mxu0
  %v5866 = vadd.f32 %v5817, %v5865
  %5867 = vdwg.mxu0
  %5868 = vmatpush.bf16.msra.mxu0 0
  %5869 = vmatpush.bf16.msra.mxu0 0
  %5870 = vmatpush.bf16.msra.mxu0 0
  %5871 = vmatpush.bf16.msra.mxu0 0
  %5872 = vmatpush.bf16.msra.mxu0 0
  %5873 = vmatpush.bf16.msra.mxu0 0
  %5874 = vmatpush.bf16.msra.mxu0 %v5727
  %5875 = vmatpush.bf16.msra.mxu0 %v5726
  %5876 = vmatmul.bf16.gmra.mxu0 %v5747
  %v5877 = vpop.f32.mrf.mxu0
  %v5878 = vadd.f32 %v5829, %v5877
  %v5879 = vpop.f32.mrf.mxu0
  %v5880 = vadd.f32 %v5831, %v5879
  %5881 = vmatmul.bf16.gmra.mxu0 %v5750
  %v5882 = vpop.f32.mrf.mxu0
  %v5883 = vadd.f32 %v5834, %v5882
  %v5884 = vpop.f32.mrf.mxu0
  %v5885 = vadd.f32 %v5836, %v5884
  %5886 = vmatmul.bf16.gmra.mxu0 %v5753
  %v5887 = vpop.f32.mrf.mxu0
  %v5888 = vadd.f32 %v5839, %v5887
  %v5889 = vpop.f32.mrf.mxu0
  %v5890 = vadd.f32 %v5841, %v5889
  %5891 = vmatmul.bf16.gmra.mxu0 %v5756
  %v5892 = vpop.f32.mrf.mxu0
  %v5893 = vadd.f32 %v5844, %v5892
  %v5894 = vpop.f32.mrf.mxu0
  %v5895 = vadd.f32 %v5846, %v5894
  %5896 = vmatmul.bf16.gmra.mxu0 %v5759
  %v5897 = vpop.f32.mrf.mxu0
  %v5898 = vadd.f32 %v5849, %v5897
  %v5899 = vpop.f32.mrf.mxu0
  %v5900 = vadd.f32 %v5851, %v5899
  %5901 = vmatmul.bf16.gmra.mxu0 %v5762
  %v5902 = vpop.f32.mrf.mxu0
  %v5903 = vadd.f32 %v5854, %v5902
  %v5904 = vpop.f32.mrf.mxu0
  %v5905 = vadd.f32 %v5856, %v5904
  %5906 = vmatmul.bf16.gmra.mxu0 %v5765
  %v5907 = vpop.f32.mrf.mxu0
  %v5908 = vadd.f32 %v5859, %v5907
  %v5909 = vpop.f32.mrf.mxu0
  %v5910 = vadd.f32 %v5861, %v5909
  %5911 = vmatmul.bf16.gmra.mxu0 %v5768
  %v5912 = vpop.f32.mrf.mxu0
  %v5913 = vadd.f32 %v5864, %v5912
  %v5914 = vpop.f32.mrf.mxu0
  %v5915 = vadd.f32 %v5866, %v5914
  %5916 = vdwg.mxu0
  %v5917 = vadd.f32 %v57, %v5878
  %v5918 = vadd.f32 %v58, %v5880
  %v5919 = vadd.f32 %v59, %v5883
  %v5920 = vadd.f32 %v60, %v5885
  %v5921 = vadd.f32 %v61, %v5888
  %v5922 = vadd.f32 %v62, %v5890
  %v5923 = vadd.f32 %v63, %v5893
  %v5924 = vadd.f32 %v64, %v5895
  %v5925 = vadd.f32 %v65, %v5898
  %v5926 = vadd.f32 %v66, %v5900
  %v5927 = vadd.f32 %v67, %v5903
  %v5928 = vadd.f32 %v68, %v5905
  %v5929 = vadd.f32 %v69, %v5908
  %v5930 = vadd.f32 %v70, %v5910
  %v5931 = vadd.f32 %v71, %v5913
  %v5932 = vadd.f32 %v72, %v5915
  %5933 = vst.msk [vmem:[%s17] sm:$0xff] %vm156, %v5917
  %5934 = vst.msk [vmem:[%s17 + $0x8] sm:$0xff] %vm156, %v5918
  %5935 = vst.msk [vmem:[%s17 + $0x10] sm:$0xff] %vm156, %v5919
  %5936 = vst.msk [vmem:[%s17 + $0x18] sm:$0xff] %vm156, %v5920
  %5937 = vst.msk [vmem:[%s17 + $0x20] sm:$0xff] %vm156, %v5921
  %5938 = vst.msk [vmem:[%s17 + $0x28] sm:$0xff] %vm156, %v5922
  %5939 = vst.msk [vmem:[%s17 + $0x30] sm:$0xff] %vm156, %v5923
  %5940 = vst.msk [vmem:[%s17 + $0x38] sm:$0xff] %vm156, %v5924
  %5941 = vst.msk [vmem:[%s17 + $0x40] sm:$0xff] %vm156, %v5925
  %5942 = vst.msk [vmem:[%s17 + $0x48] sm:$0xff] %vm156, %v5926
  %5943 = vst.msk [vmem:[%s17 + $0x50] sm:$0xff] %vm156, %v5927
  %5944 = vst.msk [vmem:[%s17 + $0x58] sm:$0xff] %vm156, %v5928
  %5945 = vst.msk [vmem:[%s17 + $0x60] sm:$0xff] %vm156, %v5929
  %5946 = vst.msk [vmem:[%s17 + $0x68] sm:$0xff] %vm156, %v5930
  %5947 = vst.msk [vmem:[%s17 + $0x70] sm:$0xff] %vm156, %v5931
  %5948 = vst.msk [vmem:[%s17 + $0x78] sm:$0xff] %vm156, %v5932
  // Predicated region
  $region70: #{tpu_custom_call.1} parent=0 // pred_check
    _
  $region71: #{tpu_custom_call.1} parent=0 // pred_check_branch
    %5950 = sbr.rel (0) target = $region73
  $region72: #{tpu_custom_call.1} parent=0 // pred_region
    _
  $region73: #{tpu_custom_call.1} parent=0 // pred_fallthru
    _
  // Predicated region
  $region74: #{tpu_custom_call.1} parent=0 // pred_check
    _
  $region75: #{tpu_custom_call.1} parent=0 // pred_check_branch
    %5952 = sbr.rel (0) target = $region77
  $region76: #{tpu_custom_call.1} parent=0 // pred_region
    _
  $region77: #{tpu_custom_call.1} parent=0 // pred_fallthru
    _

</llo_original>
